<compile_context>
chip_gen: v7x
topology: tpu7x:2x2x1
jax: 0.10.0
libtpu: 0.0.40
codegen_flags: <defaults>
</compile_context>

<pallas_src>
import functools
import math

import jax
import jax.numpy as jnp
from jax.experimental import pallas as pl
from jax.experimental.pallas import tpu as pltpu


# --------------------------- in-kernel helpers ------------------------------

def _attention_heads(q, k, v, n_head, mxu_dtype):
    """q: [Lq, D], k/v: [Lk, D] (f32). Returns [Lq, D] (lane-dense, f32)."""
    D = q.shape[-1]
    dh = D // n_head
    scale = 1.0 / math.sqrt(dh)
    dn = (((1,), (1,)), ((), ()))          # contract last dims, no batch dims
    outs = []
    for h in range(n_head):                # static, unrolled loop over heads
        lo = h * dh
        qh = q[:, lo:lo + dh].astype(mxu_dtype)
        kh = k[:, lo:lo + dh].astype(mxu_dtype)
        vh = v[:, lo:lo + dh].astype(mxu_dtype)
        s = jax.lax.dot_general(qh, kh, dn,
                                preferred_element_type=jnp.float32) * scale
        # softmax along lanes; element-wise math kept in f32
        m = jnp.max(s, axis=-1, keepdims=True)
        p = jnp.exp(s - m)
        denom = jnp.sum(p, axis=-1, keepdims=True)
        p = p * pl.reciprocal(denom, approx=True)     # divide rides the EUP slot
        outs.append(jnp.dot(p.astype(mxu_dtype), vh,
                            preferred_element_type=jnp.float32))
    return jnp.concatenate(outs, axis=-1)  # [Lq, D]


def _add_layer_norm(x, res, gamma, beta, eps):
    """Residual add + LayerNorm (unbiased=False), all f32."""
    y = x + res
    mean = jnp.mean(y, axis=-1, keepdims=True)
    var = jnp.mean(jnp.square(y - mean), axis=-1, keepdims=True)
    return gamma * ((y - mean) * jax.lax.rsqrt(var + eps)) + beta


# ------------------------------ fused kernel --------------------------------

def decoder_layer_kernel(
    dec_ref, enc_ref,
    wqkv_ref, bqkv_ref, wos_ref, bos_ref,          # self-attn: fused QKV, out proj
    wqc_ref, bqc_ref, wkvc_ref, bkvc_ref, woc_ref, boc_ref,  # cross-attn
    w1_ref, fb1_ref, w2_ref, fb2_ref,              # FFN
    ln1_g_ref, ln1_b_ref, ln2_g_ref, ln2_b_ref, ln3_g_ref, ln3_b_ref,
    out_ref, *, n_head, eps, mxu_dtype,
):
    f32 = jnp.float32
    x0 = dec_ref[0].astype(f32)                    # [Lq, D]
    enc = enc_ref[0].astype(f32)                   # [Lk, D]
    D = x0.shape[-1]

    def mm(a, w_ref, b_ref):
        return (jnp.dot(a.astype(mxu_dtype), w_ref[...].astype(mxu_dtype),
                        preferred_element_type=f32) + b_ref[...])

    # ---- self attention (fused QKV projection) + residual + LN1 ----
    qkv = mm(x0, wqkv_ref, bqkv_ref)               # [Lq, 3D]
    q, k, v = qkv[:, 0:D], qkv[:, D:2 * D], qkv[:, 2 * D:3 * D]
    sa = mm(_attention_heads(q, k, v, n_head, mxu_dtype), wos_ref, bos_ref)
    x = _add_layer_norm(sa, x0, ln1_g_ref[...], ln1_b_ref[...], eps)

    # ---- encoder-decoder attention (fused KV projection) + residual + LN2 ----
    qc = mm(x, wqc_ref, bqc_ref)                   # [Lq, D]
    kvc = mm(enc, wkvc_ref, bkvc_ref)              # [Lk, 2D]
    kc, vc = kvc[:, 0:D], kvc[:, D:2 * D]
    ca = mm(_attention_heads(qc, kc, vc, n_head, mxu_dtype), woc_ref, boc_ref)
    x = _add_layer_norm(ca, x, ln2_g_ref[...], ln2_b_ref[...], eps)

    # ---- position-wise FFN + residual + LN3 (dropout = identity in eval) ----
    h = jnp.maximum(mm(x, w1_ref, fb1_ref), 0.0)
    f = mm(h, w2_ref, fb2_ref)
    x = _add_layer_norm(f, x, ln3_g_ref[...], ln3_b_ref[...], eps)

    out_ref[0] = x.astype(out_ref.dtype)


# ------------------------------- wrappers ------------------------------------

def pack_decoder_params(p):
    """One-time weight prep: fuse QKV / KV weights, reshape 1-D params to rows."""
    sa, ca, ff = p["self_attn"], p["cross_attn"], p["ffn"]
    row = lambda v: v[None, :]
    return (
        jnp.concatenate([sa["wq"], sa["wk"], sa["wv"]], axis=1),       # [D, 3D]
        row(jnp.concatenate([sa["bq"], sa["bk"], sa["bv"]])),          # [1, 3D]
        sa["wc"], row(sa["bc"]),
        ca["wq"], row(ca["bq"]),
        jnp.concatenate([ca["wk"], ca["wv"]], axis=1),                 # [D, 2D]
        row(jnp.concatenate([ca["bk"], ca["bv"]])),                    # [1, 2D]
        ca["wc"], row(ca["bc"]),
        ff["w1"], row(ff["b1"]), ff["w2"], row(ff["b2"]),
        row(p["ln1_g"]), row(p["ln1_b"]),
        row(p["ln2_g"]), row(p["ln2_b"]),
        row(p["ln3_g"]), row(p["ln3_b"]),
    )


def decoder_layer(dec, enc, packed, n_head, eps=1e-12, mxu_dtype=jnp.float32):
    """dec: [B, Lq, D], enc: [B, Lk, D] -> [B, Lq, D]; single fused pallas_call."""
    B, Lq, D = dec.shape
    Lk = enc.shape[1]

    kern = functools.partial(decoder_layer_kernel, n_head=n_head, eps=eps,
                             mxu_dtype=mxu_dtype)
    in_specs = (
        [pl.BlockSpec((1, Lq, D), lambda b: (b, 0, 0)),    # dec, per-batch block
         pl.BlockSpec((1, Lk, D), lambda b: (b, 0, 0))]    # enc, per-batch block
        # all weights: whole array, same block index every step -> stay resident
        + [pl.BlockSpec(w.shape, lambda b: (0, 0)) for w in packed]
    )
    return pl.pallas_call(
        kern,
        out_shape=jax.ShapeDtypeStruct((B, Lq, D), dec.dtype),
        grid=(B,),
        in_specs=in_specs,
        out_specs=pl.BlockSpec((1, Lq, D), lambda b: (b, 0, 0)),
        compiler_params=pltpu.CompilerParams(
            dimension_semantics=("parallel",),             # megacore sharding
        ),
    )(dec, enc, *packed)


# ---------------------------- parameter init ---------------------------------

def _init_linear(key, din, dout):
    k1, k2 = jax.random.split(key)
    bound = 1.0 / math.sqrt(din)
    w = jax.random.uniform(k1, (din, dout), jnp.float32, -bound, bound)
    b = jax.random.uniform(k2, (dout,), jnp.float32, -bound, bound)
    return w, b


def init_params(key, d_model, ffn_hidden):
    keys = jax.random.split(key, 4)

    def mha_params(k):
        ks = jax.random.split(k, 4)
        wq, bq = _init_linear(ks[0], d_model, d_model)
        wk, bk = _init_linear(ks[1], d_model, d_model)
        wv, bv = _init_linear(ks[2], d_model, d_model)
        wc, bc = _init_linear(ks[3], d_model, d_model)
        return dict(wq=wq, bq=bq, wk=wk, bk=bk, wv=wv, bv=bv, wc=wc, bc=bc)

    w1, b1 = _init_linear(keys[2], d_model, ffn_hidden)
    w2, b2 = _init_linear(keys[3], ffn_hidden, d_model)

    return dict(
        self_attn=mha_params(keys[0]),
        cross_attn=mha_params(keys[1]),
        ffn=dict(w1=w1, b1=b1, w2=w2, b2=b2),
        ln1_g=jnp.ones((d_model,), jnp.float32),
        ln1_b=jnp.zeros((d_model,), jnp.float32),
        ln2_g=jnp.ones((d_model,), jnp.float32),
        ln2_b=jnp.zeros((d_model,), jnp.float32),
        ln3_g=jnp.ones((d_model,), jnp.float32),
        ln3_b=jnp.zeros((d_model,), jnp.float32),
    )


# ------------------------- pure-JAX reference check --------------------------

def _ref_mha(q_in, k_in, v_in, p, n_head):
    B, Lq, D = q_in.shape
    Lk = k_in.shape[1]
    dh = D // n_head
    q = (q_in @ p["wq"] + p["bq"]).reshape(B, Lq, n_head, dh).transpose(0, 2, 1, 3)
    k = (k_in @ p["wk"] + p["bk"]).reshape(B, Lk, n_head, dh).transpose(0, 2, 1, 3)
    v = (v_in @ p["wv"] + p["bv"]).reshape(B, Lk, n_head, dh).transpose(0, 2, 1, 3)
    s = jnp.einsum("bhqd,bhkd->bhqk", q, k) / math.sqrt(dh)
    a = jax.nn.softmax(s, axis=-1)
    o = jnp.einsum("bhqk,bhkd->bhqd", a, v)
    o = o.transpose(0, 2, 1, 3).reshape(B, Lq, D)
    return o @ p["wc"] + p["bc"]


def _ref_ln(x, g, b, eps=1e-12):
    m = x.mean(-1, keepdims=True)
    v = ((x - m) ** 2).mean(-1, keepdims=True)
    return g * (x - m) / jnp.sqrt(v + eps) + b


def _ref_decoder(dec, enc, params, n_head):
    x = _ref_mha(dec, dec, dec, params["self_attn"], n_head)
    x = _ref_ln(x + dec, params["ln1_g"], params["ln1_b"])
    res = x
    x = _ref_mha(x, enc, enc, params["cross_attn"], n_head)
    x = _ref_ln(x + res, params["ln2_g"], params["ln2_b"])
    res = x
    h = jax.nn.relu(x @ params["ffn"]["w1"] + params["ffn"]["b1"])
    x = h @ params["ffn"]["w2"] + params["ffn"]["b2"]
    x = _ref_ln(x + res, params["ln3_g"], params["ln3_b"])
    return x


# ----------------------------------- main ------------------------------------

if __name__ == "__main__":
    batch, trg_seq, src_seq = 2, 8, 16
    d_model, n_head, ffn_hidden = 32, 4, 64

    key = jax.random.PRNGKey(0)
    k_dec, k_enc, k_par = jax.random.split(key, 3)
    dec = jax.random.normal(k_dec, (batch, trg_seq, d_model), jnp.float32)
    enc = jax.random.normal(k_enc, (batch, src_seq, d_model), jnp.float32)
    params = init_params(k_par, d_model, ffn_hidden)

    packed = pack_decoder_params(params)            # one-time weight prep
    fwd = jax.jit(functools.partial(decoder_layer, n_head=n_head))
    out = jax.block_until_ready(fwd(dec, enc, packed))

    ref = _ref_decoder(dec, enc, params, n_head)
    assert out.shape == (batch, trg_seq, d_model)
    # tolerance accounts for the EUP approximate reciprocal in the softmax
    assert jnp.allclose(out, ref, atol=1e-2, rtol=1e-2), float(
        jnp.max(jnp.abs(out - ref)))

    print("KERNEL_OK")
</pallas_src>

<mosaic_0001>
module attributes {stable_mosaic.version = 11 : i64} {
  func.func @decoder_layer_kernel(%arg0: i32, %arg1: memref<1x8x32xf32, #tpu.memory_space<vmem>>, %arg2: memref<1x16x32xf32, #tpu.memory_space<vmem>>, %arg3: memref<32x96xf32, #tpu.memory_space<vmem>>, %arg4: memref<1x96xf32, #tpu.memory_space<vmem>>, %arg5: memref<32x32xf32, #tpu.memory_space<vmem>>, %arg6: memref<1x32xf32, #tpu.memory_space<vmem>>, %arg7: memref<32x32xf32, #tpu.memory_space<vmem>>, %arg8: memref<1x32xf32, #tpu.memory_space<vmem>>, %arg9: memref<32x64xf32, #tpu.memory_space<vmem>>, %arg10: memref<1x64xf32, #tpu.memory_space<vmem>>, %arg11: memref<32x32xf32, #tpu.memory_space<vmem>>, %arg12: memref<1x32xf32, #tpu.memory_space<vmem>>, %arg13: memref<32x64xf32, #tpu.memory_space<vmem>>, %arg14: memref<1x64xf32, #tpu.memory_space<vmem>>, %arg15: memref<64x32xf32, #tpu.memory_space<vmem>>, %arg16: memref<1x32xf32, #tpu.memory_space<vmem>>, %arg17: memref<1x32xf32, #tpu.memory_space<vmem>>, %arg18: memref<1x32xf32, #tpu.memory_space<vmem>>, %arg19: memref<1x32xf32, #tpu.memory_space<vmem>>, %arg20: memref<1x32xf32, #tpu.memory_space<vmem>>, %arg21: memref<1x32xf32, #tpu.memory_space<vmem>>, %arg22: memref<1x32xf32, #tpu.memory_space<vmem>>, %arg23: memref<1x8x32xf32, #tpu.memory_space<vmem>>) attributes {dimension_semantics = [#tpu.dimension_semantics<parallel>], iteration_bounds = array<i64: 2>, scalar_prefetch = 0 : i64, scratch_operands = 0 : i64, tpu.core_type = #tpu.core_type<tc>, window_params = [{transform_indices = @transform_0, window_bounds = array<i64: 1, 8, 32>}, {transform_indices = @transform_1, window_bounds = array<i64: 1, 16, 32>}, {pipeline_mode = #tpu.pipeline_mode<synchronous>, transform_indices = @transform_2, window_bounds = array<i64: 32, 96>}, {pipeline_mode = #tpu.pipeline_mode<synchronous>, transform_indices = @transform_3, window_bounds = array<i64: 1, 96>}, {pipeline_mode = #tpu.pipeline_mode<synchronous>, transform_indices = @transform_4, window_bounds = array<i64: 32, 32>}, {pipeline_mode = #tpu.pipeline_mode<synchronous>, transform_indices = @transform_5, window_bounds = array<i64: 1, 32>}, {pipeline_mode = #tpu.pipeline_mode<synchronous>, transform_indices = @transform_6, window_bounds = array<i64: 32, 32>}, {pipeline_mode = #tpu.pipeline_mode<synchronous>, transform_indices = @transform_7, window_bounds = array<i64: 1, 32>}, {pipeline_mode = #tpu.pipeline_mode<synchronous>, transform_indices = @transform_8, window_bounds = array<i64: 32, 64>}, {pipeline_mode = #tpu.pipeline_mode<synchronous>, transform_indices = @transform_9, window_bounds = array<i64: 1, 64>}, {pipeline_mode = #tpu.pipeline_mode<synchronous>, transform_indices = @transform_10, window_bounds = array<i64: 32, 32>}, {pipeline_mode = #tpu.pipeline_mode<synchronous>, transform_indices = @transform_11, window_bounds = array<i64: 1, 32>}, {pipeline_mode = #tpu.pipeline_mode<synchronous>, transform_indices = @transform_12, window_bounds = array<i64: 32, 64>}, {pipeline_mode = #tpu.pipeline_mode<synchronous>, transform_indices = @transform_13, window_bounds = array<i64: 1, 64>}, {pipeline_mode = #tpu.pipeline_mode<synchronous>, transform_indices = @transform_14, window_bounds = array<i64: 64, 32>}, {pipeline_mode = #tpu.pipeline_mode<synchronous>, transform_indices = @transform_15, window_bounds = array<i64: 1, 32>}, {pipeline_mode = #tpu.pipeline_mode<synchronous>, transform_indices = @transform_16, window_bounds = array<i64: 1, 32>}, {pipeline_mode = #tpu.pipeline_mode<synchronous>, transform_indices = @transform_17, window_bounds = array<i64: 1, 32>}, {pipeline_mode = #tpu.pipeline_mode<synchronous>, transform_indices = @transform_18, window_bounds = array<i64: 1, 32>}, {pipeline_mode = #tpu.pipeline_mode<synchronous>, transform_indices = @transform_19, window_bounds = array<i64: 1, 32>}, {pipeline_mode = #tpu.pipeline_mode<synchronous>, transform_indices = @transform_20, window_bounds = array<i64: 1, 32>}, {pipeline_mode = #tpu.pipeline_mode<synchronous>, transform_indices = @transform_21, window_bounds = array<i64: 1, 32>}, {transform_indices = @transform_22, window_bounds = array<i64: 1, 8, 32>}]} {
    %c0 = arith.constant 0 : index
    %c0_0 = arith.constant 0 : index
    %c0_1 = arith.constant 0 : index
    %0 = vector.load %arg1[%c0, %c0_0, %c0_1] : memref<1x8x32xf32, #tpu.memory_space<vmem>>, vector<1x8x32xf32>
    %1 = vector.shape_cast %0 : vector<1x8x32xf32> to vector<8x32xf32>
    %c0_2 = arith.constant 0 : index
    %c0_3 = arith.constant 0 : index
    %c0_4 = arith.constant 0 : index
    %2 = vector.load %arg2[%c0_2, %c0_3, %c0_4] : memref<1x16x32xf32, #tpu.memory_space<vmem>>, vector<1x16x32xf32>
    %3 = vector.shape_cast %2 : vector<1x16x32xf32> to vector<16x32xf32>
    %c0_5 = arith.constant 0 : index
    %c0_6 = arith.constant 0 : index
    %4 = vector.load %arg3[%c0_5, %c0_6] : memref<32x96xf32, #tpu.memory_space<vmem>>, vector<32x96xf32>
    %cst = arith.constant dense<0.000000e+00> : vector<8x96xf32>
    %5 = tpu.matmul %1, %4, %cst {dimension_numbers = #tpu.dot_dimension_numbers<[1], [0], [0], [1], [0, 0, 1, 1], [], []>} : vector<8x32xf32>, vector<32x96xf32>, vector<8x96xf32> -> vector<8x96xf32>
    %c0_7 = arith.constant 0 : index
    %c0_8 = arith.constant 0 : index
    %6 = vector.load %arg4[%c0_7, %c0_8] : memref<1x96xf32, #tpu.memory_space<vmem>>, vector<1x96xf32>
    %7 = vector.broadcast %6 : vector<1x96xf32> to vector<8x96xf32>
    %8 = arith.addf %5, %7 : vector<8x96xf32>
    %9 = vector.extract_strided_slice %8 {offsets = [0, 0], sizes = [8, 32], strides = [1, 1]} : vector<8x96xf32> to vector<8x32xf32>
    %10 = vector.extract_strided_slice %8 {offsets = [0, 32], sizes = [8, 32], strides = [1, 1]} : vector<8x96xf32> to vector<8x32xf32>
    %11 = vector.extract_strided_slice %8 {offsets = [0, 64], sizes = [8, 32], strides = [1, 1]} : vector<8x96xf32> to vector<8x32xf32>
    %12 = vector.extract_strided_slice %9 {offsets = [0, 0], sizes = [8, 8], strides = [1, 1]} : vector<8x32xf32> to vector<8x8xf32>
    %13 = vector.extract_strided_slice %10 {offsets = [0, 0], sizes = [8, 8], strides = [1, 1]} : vector<8x32xf32> to vector<8x8xf32>
    %14 = vector.extract_strided_slice %11 {offsets = [0, 0], sizes = [8, 8], strides = [1, 1]} : vector<8x32xf32> to vector<8x8xf32>
    %cst_9 = arith.constant dense<0.000000e+00> : vector<8x8xf32>
    %15 = tpu.matmul %12, %13, %cst_9 {dimension_numbers = #tpu.dot_dimension_numbers<[1], [1], [0], [0], [0, 0, 1, 0], [], []>} : vector<8x8xf32>, vector<8x8xf32>, vector<8x8xf32> -> vector<8x8xf32>
    %cst_10 = arith.constant 0.353553385 : f32
    %16 = vector.broadcast %cst_10 : f32 to vector<8x8xf32>
    %17 = arith.mulf %15, %16 : vector<8x8xf32>
    %cst_11 = arith.constant dense<0xFF800000> : vector<8xf32>
    %18 = vector.multi_reduction <maximumf>, %17, %cst_11 [1] : vector<8x8xf32> to vector<8xf32>
    %19 = vector.shape_cast %18 : vector<8xf32> to vector<8x1xf32>
    %20 = vector.broadcast %19 : vector<8x1xf32> to vector<8x8xf32>
    %21 = arith.subf %17, %20 : vector<8x8xf32>
    %22 = math.exp %21 : vector<8x8xf32>
    %cst_12 = arith.constant dense<0.000000e+00> : vector<8xf32>
    %23 = vector.multi_reduction <add>, %22, %cst_12 [1] : vector<8x8xf32> to vector<8xf32>
    %24 = vector.shape_cast %23 : vector<8xf32> to vector<8x1xf32>
    %25 = tpu.reciprocal %24 {approx = true} : vector<8x1xf32> -> vector<8x1xf32>
    %26 = vector.broadcast %25 : vector<8x1xf32> to vector<8x8xf32>
    %27 = arith.mulf %22, %26 : vector<8x8xf32>
    %cst_13 = arith.constant dense<0.000000e+00> : vector<8x8xf32>
    %28 = tpu.matmul %27, %14, %cst_13 {dimension_numbers = #tpu.dot_dimension_numbers<[1], [0], [0], [1], [0, 0, 1, 1], [], []>} : vector<8x8xf32>, vector<8x8xf32>, vector<8x8xf32> -> vector<8x8xf32>
    %29 = vector.extract_strided_slice %9 {offsets = [0, 8], sizes = [8, 8], strides = [1, 1]} : vector<8x32xf32> to vector<8x8xf32>
    %30 = vector.extract_strided_slice %10 {offsets = [0, 8], sizes = [8, 8], strides = [1, 1]} : vector<8x32xf32> to vector<8x8xf32>
    %31 = vector.extract_strided_slice %11 {offsets = [0, 8], sizes = [8, 8], strides = [1, 1]} : vector<8x32xf32> to vector<8x8xf32>
    %cst_14 = arith.constant dense<0.000000e+00> : vector<8x8xf32>
    %32 = tpu.matmul %29, %30, %cst_14 {dimension_numbers = #tpu.dot_dimension_numbers<[1], [1], [0], [0], [0, 0, 1, 0], [], []>} : vector<8x8xf32>, vector<8x8xf32>, vector<8x8xf32> -> vector<8x8xf32>
    %cst_15 = arith.constant 0.353553385 : f32
    %33 = vector.broadcast %cst_15 : f32 to vector<8x8xf32>
    %34 = arith.mulf %32, %33 : vector<8x8xf32>
    %cst_16 = arith.constant dense<0xFF800000> : vector<8xf32>
    %35 = vector.multi_reduction <maximumf>, %34, %cst_16 [1] : vector<8x8xf32> to vector<8xf32>
    %36 = vector.shape_cast %35 : vector<8xf32> to vector<8x1xf32>
    %37 = vector.broadcast %36 : vector<8x1xf32> to vector<8x8xf32>
    %38 = arith.subf %34, %37 : vector<8x8xf32>
    %39 = math.exp %38 : vector<8x8xf32>
    %cst_17 = arith.constant dense<0.000000e+00> : vector<8xf32>
    %40 = vector.multi_reduction <add>, %39, %cst_17 [1] : vector<8x8xf32> to vector<8xf32>
    %41 = vector.shape_cast %40 : vector<8xf32> to vector<8x1xf32>
    %42 = tpu.reciprocal %41 {approx = true} : vector<8x1xf32> -> vector<8x1xf32>
    %43 = vector.broadcast %42 : vector<8x1xf32> to vector<8x8xf32>
    %44 = arith.mulf %39, %43 : vector<8x8xf32>
    %cst_18 = arith.constant dense<0.000000e+00> : vector<8x8xf32>
    %45 = tpu.matmul %44, %31, %cst_18 {dimension_numbers = #tpu.dot_dimension_numbers<[1], [0], [0], [1], [0, 0, 1, 1], [], []>} : vector<8x8xf32>, vector<8x8xf32>, vector<8x8xf32> -> vector<8x8xf32>
    %46 = vector.extract_strided_slice %9 {offsets = [0, 16], sizes = [8, 8], strides = [1, 1]} : vector<8x32xf32> to vector<8x8xf32>
    %47 = vector.extract_strided_slice %10 {offsets = [0, 16], sizes = [8, 8], strides = [1, 1]} : vector<8x32xf32> to vector<8x8xf32>
    %48 = vector.extract_strided_slice %11 {offsets = [0, 16], sizes = [8, 8], strides = [1, 1]} : vector<8x32xf32> to vector<8x8xf32>
    %cst_19 = arith.constant dense<0.000000e+00> : vector<8x8xf32>
    %49 = tpu.matmul %46, %47, %cst_19 {dimension_numbers = #tpu.dot_dimension_numbers<[1], [1], [0], [0], [0, 0, 1, 0], [], []>} : vector<8x8xf32>, vector<8x8xf32>, vector<8x8xf32> -> vector<8x8xf32>
    %cst_20 = arith.constant 0.353553385 : f32
    %50 = vector.broadcast %cst_20 : f32 to vector<8x8xf32>
    %51 = arith.mulf %49, %50 : vector<8x8xf32>
    %cst_21 = arith.constant dense<0xFF800000> : vector<8xf32>
    %52 = vector.multi_reduction <maximumf>, %51, %cst_21 [1] : vector<8x8xf32> to vector<8xf32>
    %53 = vector.shape_cast %52 : vector<8xf32> to vector<8x1xf32>
    %54 = vector.broadcast %53 : vector<8x1xf32> to vector<8x8xf32>
    %55 = arith.subf %51, %54 : vector<8x8xf32>
    %56 = math.exp %55 : vector<8x8xf32>
    %cst_22 = arith.constant dense<0.000000e+00> : vector<8xf32>
    %57 = vector.multi_reduction <add>, %56, %cst_22 [1] : vector<8x8xf32> to vector<8xf32>
    %58 = vector.shape_cast %57 : vector<8xf32> to vector<8x1xf32>
    %59 = tpu.reciprocal %58 {approx = true} : vector<8x1xf32> -> vector<8x1xf32>
    %60 = vector.broadcast %59 : vector<8x1xf32> to vector<8x8xf32>
    %61 = arith.mulf %56, %60 : vector<8x8xf32>
    %cst_23 = arith.constant dense<0.000000e+00> : vector<8x8xf32>
    %62 = tpu.matmul %61, %48, %cst_23 {dimension_numbers = #tpu.dot_dimension_numbers<[1], [0], [0], [1], [0, 0, 1, 1], [], []>} : vector<8x8xf32>, vector<8x8xf32>, vector<8x8xf32> -> vector<8x8xf32>
    %63 = vector.extract_strided_slice %9 {offsets = [0, 24], sizes = [8, 8], strides = [1, 1]} : vector<8x32xf32> to vector<8x8xf32>
    %64 = vector.extract_strided_slice %10 {offsets = [0, 24], sizes = [8, 8], strides = [1, 1]} : vector<8x32xf32> to vector<8x8xf32>
    %65 = vector.extract_strided_slice %11 {offsets = [0, 24], sizes = [8, 8], strides = [1, 1]} : vector<8x32xf32> to vector<8x8xf32>
    %cst_24 = arith.constant dense<0.000000e+00> : vector<8x8xf32>
    %66 = tpu.matmul %63, %64, %cst_24 {dimension_numbers = #tpu.dot_dimension_numbers<[1], [1], [0], [0], [0, 0, 1, 0], [], []>} : vector<8x8xf32>, vector<8x8xf32>, vector<8x8xf32> -> vector<8x8xf32>
    %cst_25 = arith.constant 0.353553385 : f32
    %67 = vector.broadcast %cst_25 : f32 to vector<8x8xf32>
    %68 = arith.mulf %66, %67 : vector<8x8xf32>
    %cst_26 = arith.constant dense<0xFF800000> : vector<8xf32>
    %69 = vector.multi_reduction <maximumf>, %68, %cst_26 [1] : vector<8x8xf32> to vector<8xf32>
    %70 = vector.shape_cast %69 : vector<8xf32> to vector<8x1xf32>
    %71 = vector.broadcast %70 : vector<8x1xf32> to vector<8x8xf32>
    %72 = arith.subf %68, %71 : vector<8x8xf32>
    %73 = math.exp %72 : vector<8x8xf32>
    %cst_27 = arith.constant dense<0.000000e+00> : vector<8xf32>
    %74 = vector.multi_reduction <add>, %73, %cst_27 [1] : vector<8x8xf32> to vector<8xf32>
    %75 = vector.shape_cast %74 : vector<8xf32> to vector<8x1xf32>
    %76 = tpu.reciprocal %75 {approx = true} : vector<8x1xf32> -> vector<8x1xf32>
    %77 = vector.broadcast %76 : vector<8x1xf32> to vector<8x8xf32>
    %78 = arith.mulf %73, %77 : vector<8x8xf32>
    %cst_28 = arith.constant dense<0.000000e+00> : vector<8x8xf32>
    %79 = tpu.matmul %78, %65, %cst_28 {dimension_numbers = #tpu.dot_dimension_numbers<[1], [0], [0], [1], [0, 0, 1, 1], [], []>} : vector<8x8xf32>, vector<8x8xf32>, vector<8x8xf32> -> vector<8x8xf32>
    %80 = tpu.concatenate %28, %45, %62, %79 in 1 : vector<8x8xf32>, vector<8x8xf32>, vector<8x8xf32>, vector<8x8xf32> -> vector<8x32xf32>
    %c0_29 = arith.constant 0 : index
    %c0_30 = arith.constant 0 : index
    %81 = vector.load %arg5[%c0_29, %c0_30] : memref<32x32xf32, #tpu.memory_space<vmem>>, vector<32x32xf32>
    %cst_31 = arith.constant dense<0.000000e+00> : vector<8x32xf32>
    %82 = tpu.matmul %80, %81, %cst_31 {dimension_numbers = #tpu.dot_dimension_numbers<[1], [0], [0], [1], [0, 0, 1, 1], [], []>} : vector<8x32xf32>, vector<32x32xf32>, vector<8x32xf32> -> vector<8x32xf32>
    %c0_32 = arith.constant 0 : index
    %c0_33 = arith.constant 0 : index
    %83 = vector.load %arg6[%c0_32, %c0_33] : memref<1x32xf32, #tpu.memory_space<vmem>>, vector<1x32xf32>
    %84 = vector.broadcast %83 : vector<1x32xf32> to vector<8x32xf32>
    %85 = arith.addf %82, %84 : vector<8x32xf32>
    %c0_34 = arith.constant 0 : index
    %c0_35 = arith.constant 0 : index
    %86 = vector.load %arg17[%c0_34, %c0_35] : memref<1x32xf32, #tpu.memory_space<vmem>>, vector<1x32xf32>
    %c0_36 = arith.constant 0 : index
    %c0_37 = arith.constant 0 : index
    %87 = vector.load %arg18[%c0_36, %c0_37] : memref<1x32xf32, #tpu.memory_space<vmem>>, vector<1x32xf32>
    %88 = arith.addf %85, %1 : vector<8x32xf32>
    %cst_38 = arith.constant dense<0.000000e+00> : vector<8xf32>
    %89 = vector.multi_reduction <add>, %88, %cst_38 [1] : vector<8x32xf32> to vector<8xf32>
    %90 = vector.shape_cast %89 : vector<8xf32> to vector<8x1xf32>
    %cst_39 = arith.constant 3.200000e+01 : f32
    %91 = vector.broadcast %cst_39 : f32 to vector<8x1xf32>
    %92 = arith.divf %90, %91 : vector<8x1xf32>
    %93 = vector.broadcast %92 : vector<8x1xf32> to vector<8x32xf32>
    %94 = arith.subf %88, %93 : vector<8x32xf32>
    %95 = arith.mulf %94, %94 : vector<8x32xf32>
    %cst_40 = arith.constant dense<0.000000e+00> : vector<8xf32>
    %96 = vector.multi_reduction <add>, %95, %cst_40 [1] : vector<8x32xf32> to vector<8xf32>
    %97 = vector.shape_cast %96 : vector<8xf32> to vector<8x1xf32>
    %cst_41 = arith.constant 3.200000e+01 : f32
    %98 = vector.broadcast %cst_41 : f32 to vector<8x1xf32>
    %99 = arith.divf %97, %98 : vector<8x1xf32>
    %100 = vector.broadcast %92 : vector<8x1xf32> to vector<8x32xf32>
    %101 = arith.subf %88, %100 : vector<8x32xf32>
    %cst_42 = arith.constant 9.99999996E-13 : f32
    %102 = vector.broadcast %cst_42 : f32 to vector<8x1xf32>
    %103 = arith.addf %99, %102 : vector<8x1xf32>
    %104 = math.rsqrt %103 : vector<8x1xf32>
    %105 = vector.broadcast %104 : vector<8x1xf32> to vector<8x32xf32>
    %106 = arith.mulf %101, %105 : vector<8x32xf32>
    %107 = vector.broadcast %86 : vector<1x32xf32> to vector<8x32xf32>
    %108 = arith.mulf %107, %106 : vector<8x32xf32>
    %109 = vector.broadcast %87 : vector<1x32xf32> to vector<8x32xf32>
    %110 = arith.addf %108, %109 : vector<8x32xf32>
    %c0_43 = arith.constant 0 : index
    %c0_44 = arith.constant 0 : index
    %111 = vector.load %arg7[%c0_43, %c0_44] : memref<32x32xf32, #tpu.memory_space<vmem>>, vector<32x32xf32>
    %cst_45 = arith.constant dense<0.000000e+00> : vector<8x32xf32>
    %112 = tpu.matmul %110, %111, %cst_45 {dimension_numbers = #tpu.dot_dimension_numbers<[1], [0], [0], [1], [0, 0, 1, 1], [], []>} : vector<8x32xf32>, vector<32x32xf32>, vector<8x32xf32> -> vector<8x32xf32>
    %c0_46 = arith.constant 0 : index
    %c0_47 = arith.constant 0 : index
    %113 = vector.load %arg8[%c0_46, %c0_47] : memref<1x32xf32, #tpu.memory_space<vmem>>, vector<1x32xf32>
    %114 = vector.broadcast %113 : vector<1x32xf32> to vector<8x32xf32>
    %115 = arith.addf %112, %114 : vector<8x32xf32>
    %c0_48 = arith.constant 0 : index
    %c0_49 = arith.constant 0 : index
    %116 = vector.load %arg9[%c0_48, %c0_49] : memref<32x64xf32, #tpu.memory_space<vmem>>, vector<32x64xf32>
    %cst_50 = arith.constant dense<0.000000e+00> : vector<16x64xf32>
    %117 = tpu.matmul %3, %116, %cst_50 {dimension_numbers = #tpu.dot_dimension_numbers<[1], [0], [0], [1], [0, 0, 1, 1], [], []>} : vector<16x32xf32>, vector<32x64xf32>, vector<16x64xf32> -> vector<16x64xf32>
    %c0_51 = arith.constant 0 : index
    %c0_52 = arith.constant 0 : index
    %118 = vector.load %arg10[%c0_51, %c0_52] : memref<1x64xf32, #tpu.memory_space<vmem>>, vector<1x64xf32>
    %119 = vector.broadcast %118 : vector<1x64xf32> to vector<16x64xf32>
    %120 = arith.addf %117, %119 : vector<16x64xf32>
    %121 = vector.extract_strided_slice %120 {offsets = [0, 0], sizes = [16, 32], strides = [1, 1]} : vector<16x64xf32> to vector<16x32xf32>
    %122 = vector.extract_strided_slice %120 {offsets = [0, 32], sizes = [16, 32], strides = [1, 1]} : vector<16x64xf32> to vector<16x32xf32>
    %123 = vector.extract_strided_slice %115 {offsets = [0, 0], sizes = [8, 8], strides = [1, 1]} : vector<8x32xf32> to vector<8x8xf32>
    %124 = vector.extract_strided_slice %121 {offsets = [0, 0], sizes = [16, 8], strides = [1, 1]} : vector<16x32xf32> to vector<16x8xf32>
    %125 = vector.extract_strided_slice %122 {offsets = [0, 0], sizes = [16, 8], strides = [1, 1]} : vector<16x32xf32> to vector<16x8xf32>
    %cst_53 = arith.constant dense<0.000000e+00> : vector<8x16xf32>
    %126 = tpu.matmul %123, %124, %cst_53 {dimension_numbers = #tpu.dot_dimension_numbers<[1], [1], [0], [0], [0, 0, 1, 0], [], []>} : vector<8x8xf32>, vector<16x8xf32>, vector<8x16xf32> -> vector<8x16xf32>
    %cst_54 = arith.constant 0.353553385 : f32
    %127 = vector.broadcast %cst_54 : f32 to vector<8x16xf32>
    %128 = arith.mulf %126, %127 : vector<8x16xf32>
    %cst_55 = arith.constant dense<0xFF800000> : vector<8xf32>
    %129 = vector.multi_reduction <maximumf>, %128, %cst_55 [1] : vector<8x16xf32> to vector<8xf32>
    %130 = vector.shape_cast %129 : vector<8xf32> to vector<8x1xf32>
    %131 = vector.broadcast %130 : vector<8x1xf32> to vector<8x16xf32>
    %132 = arith.subf %128, %131 : vector<8x16xf32>
    %133 = math.exp %132 : vector<8x16xf32>
    %cst_56 = arith.constant dense<0.000000e+00> : vector<8xf32>
    %134 = vector.multi_reduction <add>, %133, %cst_56 [1] : vector<8x16xf32> to vector<8xf32>
    %135 = vector.shape_cast %134 : vector<8xf32> to vector<8x1xf32>
    %136 = tpu.reciprocal %135 {approx = true} : vector<8x1xf32> -> vector<8x1xf32>
    %137 = vector.broadcast %136 : vector<8x1xf32> to vector<8x16xf32>
    %138 = arith.mulf %133, %137 : vector<8x16xf32>
    %cst_57 = arith.constant dense<0.000000e+00> : vector<8x8xf32>
    %139 = tpu.matmul %138, %125, %cst_57 {dimension_numbers = #tpu.dot_dimension_numbers<[1], [0], [0], [1], [0, 0, 1, 1], [], []>} : vector<8x16xf32>, vector<16x8xf32>, vector<8x8xf32> -> vector<8x8xf32>
    %140 = vector.extract_strided_slice %115 {offsets = [0, 8], sizes = [8, 8], strides = [1, 1]} : vector<8x32xf32> to vector<8x8xf32>
    %141 = vector.extract_strided_slice %121 {offsets = [0, 8], sizes = [16, 8], strides = [1, 1]} : vector<16x32xf32> to vector<16x8xf32>
    %142 = vector.extract_strided_slice %122 {offsets = [0, 8], sizes = [16, 8], strides = [1, 1]} : vector<16x32xf32> to vector<16x8xf32>
    %cst_58 = arith.constant dense<0.000000e+00> : vector<8x16xf32>
    %143 = tpu.matmul %140, %141, %cst_58 {dimension_numbers = #tpu.dot_dimension_numbers<[1], [1], [0], [0], [0, 0, 1, 0], [], []>} : vector<8x8xf32>, vector<16x8xf32>, vector<8x16xf32> -> vector<8x16xf32>
    %cst_59 = arith.constant 0.353553385 : f32
    %144 = vector.broadcast %cst_59 : f32 to vector<8x16xf32>
    %145 = arith.mulf %143, %144 : vector<8x16xf32>
    %cst_60 = arith.constant dense<0xFF800000> : vector<8xf32>
    %146 = vector.multi_reduction <maximumf>, %145, %cst_60 [1] : vector<8x16xf32> to vector<8xf32>
    %147 = vector.shape_cast %146 : vector<8xf32> to vector<8x1xf32>
    %148 = vector.broadcast %147 : vector<8x1xf32> to vector<8x16xf32>
    %149 = arith.subf %145, %148 : vector<8x16xf32>
    %150 = math.exp %149 : vector<8x16xf32>
    %cst_61 = arith.constant dense<0.000000e+00> : vector<8xf32>
    %151 = vector.multi_reduction <add>, %150, %cst_61 [1] : vector<8x16xf32> to vector<8xf32>
    %152 = vector.shape_cast %151 : vector<8xf32> to vector<8x1xf32>
    %153 = tpu.reciprocal %152 {approx = true} : vector<8x1xf32> -> vector<8x1xf32>
    %154 = vector.broadcast %153 : vector<8x1xf32> to vector<8x16xf32>
    %155 = arith.mulf %150, %154 : vector<8x16xf32>
    %cst_62 = arith.constant dense<0.000000e+00> : vector<8x8xf32>
    %156 = tpu.matmul %155, %142, %cst_62 {dimension_numbers = #tpu.dot_dimension_numbers<[1], [0], [0], [1], [0, 0, 1, 1], [], []>} : vector<8x16xf32>, vector<16x8xf32>, vector<8x8xf32> -> vector<8x8xf32>
    %157 = vector.extract_strided_slice %115 {offsets = [0, 16], sizes = [8, 8], strides = [1, 1]} : vector<8x32xf32> to vector<8x8xf32>
    %158 = vector.extract_strided_slice %121 {offsets = [0, 16], sizes = [16, 8], strides = [1, 1]} : vector<16x32xf32> to vector<16x8xf32>
    %159 = vector.extract_strided_slice %122 {offsets = [0, 16], sizes = [16, 8], strides = [1, 1]} : vector<16x32xf32> to vector<16x8xf32>
    %cst_63 = arith.constant dense<0.000000e+00> : vector<8x16xf32>
    %160 = tpu.matmul %157, %158, %cst_63 {dimension_numbers = #tpu.dot_dimension_numbers<[1], [1], [0], [0], [0, 0, 1, 0], [], []>} : vector<8x8xf32>, vector<16x8xf32>, vector<8x16xf32> -> vector<8x16xf32>
    %cst_64 = arith.constant 0.353553385 : f32
    %161 = vector.broadcast %cst_64 : f32 to vector<8x16xf32>
    %162 = arith.mulf %160, %161 : vector<8x16xf32>
    %cst_65 = arith.constant dense<0xFF800000> : vector<8xf32>
    %163 = vector.multi_reduction <maximumf>, %162, %cst_65 [1] : vector<8x16xf32> to vector<8xf32>
    %164 = vector.shape_cast %163 : vector<8xf32> to vector<8x1xf32>
    %165 = vector.broadcast %164 : vector<8x1xf32> to vector<8x16xf32>
    %166 = arith.subf %162, %165 : vector<8x16xf32>
    %167 = math.exp %166 : vector<8x16xf32>
    %cst_66 = arith.constant dense<0.000000e+00> : vector<8xf32>
    %168 = vector.multi_reduction <add>, %167, %cst_66 [1] : vector<8x16xf32> to vector<8xf32>
    %169 = vector.shape_cast %168 : vector<8xf32> to vector<8x1xf32>
    %170 = tpu.reciprocal %169 {approx = true} : vector<8x1xf32> -> vector<8x1xf32>
    %171 = vector.broadcast %170 : vector<8x1xf32> to vector<8x16xf32>
    %172 = arith.mulf %167, %171 : vector<8x16xf32>
    %cst_67 = arith.constant dense<0.000000e+00> : vector<8x8xf32>
    %173 = tpu.matmul %172, %159, %cst_67 {dimension_numbers = #tpu.dot_dimension_numbers<[1], [0], [0], [1], [0, 0, 1, 1], [], []>} : vector<8x16xf32>, vector<16x8xf32>, vector<8x8xf32> -> vector<8x8xf32>
    %174 = vector.extract_strided_slice %115 {offsets = [0, 24], sizes = [8, 8], strides = [1, 1]} : vector<8x32xf32> to vector<8x8xf32>
    %175 = vector.extract_strided_slice %121 {offsets = [0, 24], sizes = [16, 8], strides = [1, 1]} : vector<16x32xf32> to vector<16x8xf32>
    %176 = vector.extract_strided_slice %122 {offsets = [0, 24], sizes = [16, 8], strides = [1, 1]} : vector<16x32xf32> to vector<16x8xf32>
    %cst_68 = arith.constant dense<0.000000e+00> : vector<8x16xf32>
    %177 = tpu.matmul %174, %175, %cst_68 {dimension_numbers = #tpu.dot_dimension_numbers<[1], [1], [0], [0], [0, 0, 1, 0], [], []>} : vector<8x8xf32>, vector<16x8xf32>, vector<8x16xf32> -> vector<8x16xf32>
    %cst_69 = arith.constant 0.353553385 : f32
    %178 = vector.broadcast %cst_69 : f32 to vector<8x16xf32>
    %179 = arith.mulf %177, %178 : vector<8x16xf32>
    %cst_70 = arith.constant dense<0xFF800000> : vector<8xf32>
    %180 = vector.multi_reduction <maximumf>, %179, %cst_70 [1] : vector<8x16xf32> to vector<8xf32>
    %181 = vector.shape_cast %180 : vector<8xf32> to vector<8x1xf32>
    %182 = vector.broadcast %181 : vector<8x1xf32> to vector<8x16xf32>
    %183 = arith.subf %179, %182 : vector<8x16xf32>
    %184 = math.exp %183 : vector<8x16xf32>
    %cst_71 = arith.constant dense<0.000000e+00> : vector<8xf32>
    %185 = vector.multi_reduction <add>, %184, %cst_71 [1] : vector<8x16xf32> to vector<8xf32>
    %186 = vector.shape_cast %185 : vector<8xf32> to vector<8x1xf32>
    %187 = tpu.reciprocal %186 {approx = true} : vector<8x1xf32> -> vector<8x1xf32>
    %188 = vector.broadcast %187 : vector<8x1xf32> to vector<8x16xf32>
    %189 = arith.mulf %184, %188 : vector<8x16xf32>
    %cst_72 = arith.constant dense<0.000000e+00> : vector<8x8xf32>
    %190 = tpu.matmul %189, %176, %cst_72 {dimension_numbers = #tpu.dot_dimension_numbers<[1], [0], [0], [1], [0, 0, 1, 1], [], []>} : vector<8x16xf32>, vector<16x8xf32>, vector<8x8xf32> -> vector<8x8xf32>
    %191 = tpu.concatenate %139, %156, %173, %190 in 1 : vector<8x8xf32>, vector<8x8xf32>, vector<8x8xf32>, vector<8x8xf32> -> vector<8x32xf32>
    %c0_73 = arith.constant 0 : index
    %c0_74 = arith.constant 0 : index
    %192 = vector.load %arg11[%c0_73, %c0_74] : memref<32x32xf32, #tpu.memory_space<vmem>>, vector<32x32xf32>
    %cst_75 = arith.constant dense<0.000000e+00> : vector<8x32xf32>
    %193 = tpu.matmul %191, %192, %cst_75 {dimension_numbers = #tpu.dot_dimension_numbers<[1], [0], [0], [1], [0, 0, 1, 1], [], []>} : vector<8x32xf32>, vector<32x32xf32>, vector<8x32xf32> -> vector<8x32xf32>
    %c0_76 = arith.constant 0 : index
    %c0_77 = arith.constant 0 : index
    %194 = vector.load %arg12[%c0_76, %c0_77] : memref<1x32xf32, #tpu.memory_space<vmem>>, vector<1x32xf32>
    %195 = vector.broadcast %194 : vector<1x32xf32> to vector<8x32xf32>
    %196 = arith.addf %193, %195 : vector<8x32xf32>
    %c0_78 = arith.constant 0 : index
    %c0_79 = arith.constant 0 : index
    %197 = vector.load %arg19[%c0_78, %c0_79] : memref<1x32xf32, #tpu.memory_space<vmem>>, vector<1x32xf32>
    %c0_80 = arith.constant 0 : index
    %c0_81 = arith.constant 0 : index
    %198 = vector.load %arg20[%c0_80, %c0_81] : memref<1x32xf32, #tpu.memory_space<vmem>>, vector<1x32xf32>
    %199 = arith.addf %196, %110 : vector<8x32xf32>
    %cst_82 = arith.constant dense<0.000000e+00> : vector<8xf32>
    %200 = vector.multi_reduction <add>, %199, %cst_82 [1] : vector<8x32xf32> to vector<8xf32>
    %201 = vector.shape_cast %200 : vector<8xf32> to vector<8x1xf32>
    %cst_83 = arith.constant 3.200000e+01 : f32
    %202 = vector.broadcast %cst_83 : f32 to vector<8x1xf32>
    %203 = arith.divf %201, %202 : vector<8x1xf32>
    %204 = vector.broadcast %203 : vector<8x1xf32> to vector<8x32xf32>
    %205 = arith.subf %199, %204 : vector<8x32xf32>
    %206 = arith.mulf %205, %205 : vector<8x32xf32>
    %cst_84 = arith.constant dense<0.000000e+00> : vector<8xf32>
    %207 = vector.multi_reduction <add>, %206, %cst_84 [1] : vector<8x32xf32> to vector<8xf32>
    %208 = vector.shape_cast %207 : vector<8xf32> to vector<8x1xf32>
    %cst_85 = arith.constant 3.200000e+01 : f32
    %209 = vector.broadcast %cst_85 : f32 to vector<8x1xf32>
    %210 = arith.divf %208, %209 : vector<8x1xf32>
    %211 = vector.broadcast %203 : vector<8x1xf32> to vector<8x32xf32>
    %212 = arith.subf %199, %211 : vector<8x32xf32>
    %cst_86 = arith.constant 9.99999996E-13 : f32
    %213 = vector.broadcast %cst_86 : f32 to vector<8x1xf32>
    %214 = arith.addf %210, %213 : vector<8x1xf32>
    %215 = math.rsqrt %214 : vector<8x1xf32>
    %216 = vector.broadcast %215 : vector<8x1xf32> to vector<8x32xf32>
    %217 = arith.mulf %212, %216 : vector<8x32xf32>
    %218 = vector.broadcast %197 : vector<1x32xf32> to vector<8x32xf32>
    %219 = arith.mulf %218, %217 : vector<8x32xf32>
    %220 = vector.broadcast %198 : vector<1x32xf32> to vector<8x32xf32>
    %221 = arith.addf %219, %220 : vector<8x32xf32>
    %c0_87 = arith.constant 0 : index
    %c0_88 = arith.constant 0 : index
    %222 = vector.load %arg13[%c0_87, %c0_88] : memref<32x64xf32, #tpu.memory_space<vmem>>, vector<32x64xf32>
    %cst_89 = arith.constant dense<0.000000e+00> : vector<8x64xf32>
    %223 = tpu.matmul %221, %222, %cst_89 {dimension_numbers = #tpu.dot_dimension_numbers<[1], [0], [0], [1], [0, 0, 1, 1], [], []>} : vector<8x32xf32>, vector<32x64xf32>, vector<8x64xf32> -> vector<8x64xf32>
    %c0_90 = arith.constant 0 : index
    %c0_91 = arith.constant 0 : index
    %224 = vector.load %arg14[%c0_90, %c0_91] : memref<1x64xf32, #tpu.memory_space<vmem>>, vector<1x64xf32>
    %225 = vector.broadcast %224 : vector<1x64xf32> to vector<8x64xf32>
    %226 = arith.addf %223, %225 : vector<8x64xf32>
    %cst_92 = arith.constant 0.000000e+00 : f32
    %227 = vector.broadcast %cst_92 : f32 to vector<8x64xf32>
    %228 = arith.maximumf %226, %227 : vector<8x64xf32>
    %c0_93 = arith.constant 0 : index
    %c0_94 = arith.constant 0 : index
    %229 = vector.load %arg15[%c0_93, %c0_94] : memref<64x32xf32, #tpu.memory_space<vmem>>, vector<64x32xf32>
    %cst_95 = arith.constant dense<0.000000e+00> : vector<8x32xf32>
    %230 = tpu.matmul %228, %229, %cst_95 {dimension_numbers = #tpu.dot_dimension_numbers<[1], [0], [0], [1], [0, 0, 1, 1], [], []>} : vector<8x64xf32>, vector<64x32xf32>, vector<8x32xf32> -> vector<8x32xf32>
    %c0_96 = arith.constant 0 : index
    %c0_97 = arith.constant 0 : index
    %231 = vector.load %arg16[%c0_96, %c0_97] : memref<1x32xf32, #tpu.memory_space<vmem>>, vector<1x32xf32>
    %232 = vector.broadcast %231 : vector<1x32xf32> to vector<8x32xf32>
    %233 = arith.addf %230, %232 : vector<8x32xf32>
    %c0_98 = arith.constant 0 : index
    %c0_99 = arith.constant 0 : index
    %234 = vector.load %arg21[%c0_98, %c0_99] : memref<1x32xf32, #tpu.memory_space<vmem>>, vector<1x32xf32>
    %c0_100 = arith.constant 0 : index
    %c0_101 = arith.constant 0 : index
    %235 = vector.load %arg22[%c0_100, %c0_101] : memref<1x32xf32, #tpu.memory_space<vmem>>, vector<1x32xf32>
    %236 = arith.addf %233, %221 : vector<8x32xf32>
    %cst_102 = arith.constant dense<0.000000e+00> : vector<8xf32>
    %237 = vector.multi_reduction <add>, %236, %cst_102 [1] : vector<8x32xf32> to vector<8xf32>
    %238 = vector.shape_cast %237 : vector<8xf32> to vector<8x1xf32>
    %cst_103 = arith.constant 3.200000e+01 : f32
    %239 = vector.broadcast %cst_103 : f32 to vector<8x1xf32>
    %240 = arith.divf %238, %239 : vector<8x1xf32>
    %241 = vector.broadcast %240 : vector<8x1xf32> to vector<8x32xf32>
    %242 = arith.subf %236, %241 : vector<8x32xf32>
    %243 = arith.mulf %242, %242 : vector<8x32xf32>
    %cst_104 = arith.constant dense<0.000000e+00> : vector<8xf32>
    %244 = vector.multi_reduction <add>, %243, %cst_104 [1] : vector<8x32xf32> to vector<8xf32>
    %245 = vector.shape_cast %244 : vector<8xf32> to vector<8x1xf32>
    %cst_105 = arith.constant 3.200000e+01 : f32
    %246 = vector.broadcast %cst_105 : f32 to vector<8x1xf32>
    %247 = arith.divf %245, %246 : vector<8x1xf32>
    %248 = vector.broadcast %240 : vector<8x1xf32> to vector<8x32xf32>
    %249 = arith.subf %236, %248 : vector<8x32xf32>
    %cst_106 = arith.constant 9.99999996E-13 : f32
    %250 = vector.broadcast %cst_106 : f32 to vector<8x1xf32>
    %251 = arith.addf %247, %250 : vector<8x1xf32>
    %252 = math.rsqrt %251 : vector<8x1xf32>
    %253 = vector.broadcast %252 : vector<8x1xf32> to vector<8x32xf32>
    %254 = arith.mulf %249, %253 : vector<8x32xf32>
    %255 = vector.broadcast %234 : vector<1x32xf32> to vector<8x32xf32>
    %256 = arith.mulf %255, %254 : vector<8x32xf32>
    %257 = vector.broadcast %235 : vector<1x32xf32> to vector<8x32xf32>
    %258 = arith.addf %256, %257 : vector<8x32xf32>
    %c0_107 = arith.constant 0 : index
    %c0_108 = arith.constant 0 : index
    %c0_109 = arith.constant 0 : index
    %259 = vector.load %arg23[%c0_107, %c0_108, %c0_109] : memref<1x8x32xf32, #tpu.memory_space<vmem>>, vector<1x8x32xf32>
    %260 = vector.shape_cast %259 : vector<1x8x32xf32> to vector<8x32xf32>
    %261 = vector.shape_cast %258 : vector<8x32xf32> to vector<1x8x32xf32>
    tpu.vector_store %arg23[%c0_107, %c0_108, %c0_109], %261 {strides = array<i32>} : memref<1x8x32xf32, #tpu.memory_space<vmem>>, vector<1x8x32xf32>,
    return
  }
  func.func @transform_0(%arg0: i32) -> (i32, i32, i32) {
    %c0_i32 = arith.constant 0 : i32
    %c0_i32_0 = arith.constant 0 : i32
    %c0_i32_1 = arith.constant 0 : i32
    return %arg0, %c0_i32, %c0_i32_0 : i32, i32, i32
  }
  func.func @transform_1(%arg0: i32) -> (i32, i32, i32) {
    %c0_i32 = arith.constant 0 : i32
    %c0_i32_0 = arith.constant 0 : i32
    %c0_i32_1 = arith.constant 0 : i32
    return %arg0, %c0_i32, %c0_i32_0 : i32, i32, i32
  }
  func.func @transform_2(%arg0: i32) -> (i32, i32) {
    %c0_i32 = arith.constant 0 : i32
    %c0_i32_0 = arith.constant 0 : i32
    %c0_i32_1 = arith.constant 0 : i32
    return %c0_i32, %c0_i32_0 : i32, i32
  }
  func.func @transform_3(%arg0: i32) -> (i32, i32) {
    %c0_i32 = arith.constant 0 : i32
    %c0_i32_0 = arith.constant 0 : i32
    %c0_i32_1 = arith.constant 0 : i32
    return %c0_i32, %c0_i32_0 : i32, i32
  }
  func.func @transform_4(%arg0: i32) -> (i32, i32) {
    %c0_i32 = arith.constant 0 : i32
    %c0_i32_0 = arith.constant 0 : i32
    %c0_i32_1 = arith.constant 0 : i32
    return %c0_i32, %c0_i32_0 : i32, i32
  }
  func.func @transform_5(%arg0: i32) -> (i32, i32) {
    %c0_i32 = arith.constant 0 : i32
    %c0_i32_0 = arith.constant 0 : i32
    %c0_i32_1 = arith.constant 0 : i32
    return %c0_i32, %c0_i32_0 : i32, i32
  }
  func.func @transform_6(%arg0: i32) -> (i32, i32) {
    %c0_i32 = arith.constant 0 : i32
    %c0_i32_0 = arith.constant 0 : i32
    %c0_i32_1 = arith.constant 0 : i32
    return %c0_i32, %c0_i32_0 : i32, i32
  }
  func.func @transform_7(%arg0: i32) -> (i32, i32) {
    %c0_i32 = arith.constant 0 : i32
    %c0_i32_0 = arith.constant 0 : i32
    %c0_i32_1 = arith.constant 0 : i32
    return %c0_i32, %c0_i32_0 : i32, i32
  }
  func.func @transform_8(%arg0: i32) -> (i32, i32) {
    %c0_i32 = arith.constant 0 : i32
    %c0_i32_0 = arith.constant 0 : i32
    %c0_i32_1 = arith.constant 0 : i32
    return %c0_i32, %c0_i32_0 : i32, i32
  }
  func.func @transform_9(%arg0: i32) -> (i32, i32) {
    %c0_i32 = arith.constant 0 : i32
    %c0_i32_0 = arith.constant 0 : i32
    %c0_i32_1 = arith.constant 0 : i32
    return %c0_i32, %c0_i32_0 : i32, i32
  }
  func.func @transform_10(%arg0: i32) -> (i32, i32) {
    %c0_i32 = arith.constant 0 : i32
    %c0_i32_0 = arith.constant 0 : i32
    %c0_i32_1 = arith.constant 0 : i32
    return %c0_i32, %c0_i32_0 : i32, i32
  }
  func.func @transform_11(%arg0: i32) -> (i32, i32) {
    %c0_i32 = arith.constant 0 : i32
    %c0_i32_0 = arith.constant 0 : i32
    %c0_i32_1 = arith.constant 0 : i32
    return %c0_i32, %c0_i32_0 : i32, i32
  }
  func.func @transform_12(%arg0: i32) -> (i32, i32) {
    %c0_i32 = arith.constant 0 : i32
    %c0_i32_0 = arith.constant 0 : i32
    %c0_i32_1 = arith.constant 0 : i32
    return %c0_i32, %c0_i32_0 : i32, i32
  }
  func.func @transform_13(%arg0: i32) -> (i32, i32) {
    %c0_i32 = arith.constant 0 : i32
    %c0_i32_0 = arith.constant 0 : i32
    %c0_i32_1 = arith.constant 0 : i32
    return %c0_i32, %c0_i32_0 : i32, i32
  }
  func.func @transform_14(%arg0: i32) -> (i32, i32) {
    %c0_i32 = arith.constant 0 : i32
    %c0_i32_0 = arith.constant 0 : i32
    %c0_i32_1 = arith.constant 0 : i32
    return %c0_i32, %c0_i32_0 : i32, i32
  }
  func.func @transform_15(%arg0: i32) -> (i32, i32) {
    %c0_i32 = arith.constant 0 : i32
    %c0_i32_0 = arith.constant 0 : i32
    %c0_i32_1 = arith.constant 0 : i32
    return %c0_i32, %c0_i32_0 : i32, i32
  }
  func.func @transform_16(%arg0: i32) -> (i32, i32) {
    %c0_i32 = arith.constant 0 : i32
    %c0_i32_0 = arith.constant 0 : i32
    %c0_i32_1 = arith.constant 0 : i32
    return %c0_i32, %c0_i32_0 : i32, i32
  }
  func.func @transform_17(%arg0: i32) -> (i32, i32) {
    %c0_i32 = arith.constant 0 : i32
    %c0_i32_0 = arith.constant 0 : i32
    %c0_i32_1 = arith.constant 0 : i32
    return %c0_i32, %c0_i32_0 : i32, i32
  }
  func.func @transform_18(%arg0: i32) -> (i32, i32) {
    %c0_i32 = arith.constant 0 : i32
    %c0_i32_0 = arith.constant 0 : i32
    %c0_i32_1 = arith.constant 0 : i32
    return %c0_i32, %c0_i32_0 : i32, i32
  }
  func.func @transform_19(%arg0: i32) -> (i32, i32) {
    %c0_i32 = arith.constant 0 : i32
    %c0_i32_0 = arith.constant 0 : i32
    %c0_i32_1 = arith.constant 0 : i32
    return %c0_i32, %c0_i32_0 : i32, i32
  }
  func.func @transform_20(%arg0: i32) -> (i32, i32) {
    %c0_i32 = arith.constant 0 : i32
    %c0_i32_0 = arith.constant 0 : i32
    %c0_i32_1 = arith.constant 0 : i32
    return %c0_i32, %c0_i32_0 : i32, i32
  }
  func.func @transform_21(%arg0: i32) -> (i32, i32) {
    %c0_i32 = arith.constant 0 : i32
    %c0_i32_0 = arith.constant 0 : i32
    %c0_i32_1 = arith.constant 0 : i32
    return %c0_i32, %c0_i32_0 : i32, i32
  }
  func.func @transform_22(%arg0: i32) -> (i32, i32, i32) {
    %c0_i32 = arith.constant 0 : i32
    %c0_i32_0 = arith.constant 0 : i32
    %c0_i32_1 = arith.constant 0 : i32
    return %arg0, %c0_i32, %c0_i32_0 : i32, i32, i32
  }
}

</mosaic_0001>

<llo_original>
// kernel: decoder_layer.1
$region0: #{decoder_layer.1}
  #allocation0 [shape = 'u32[]', space=smem, size = 0x4, offset = 0x4, fixed_abs, tag = 'smem constant byte address 0x4 - core index']
  #allocation1 [shape = 'u32[144,128]{1,0:T(1,128)}', space=vmem, size = 0x12000, scoped, tag = 'internal scratch']
  %s0 = inlined_call_operand.hbm [shape: f32[2,8,32], index: 0, kind: input, shape index: {}]
  %s1 = inlined_call_operand.vmem [shape: f32[2,16,32], index: 1, kind: input, shape index: {}]
  %s2 = inlined_call_operand.vmem [shape: f32[32,96], index: 2, kind: input, shape index: {}]
  %s3 = inlined_call_operand.vmem [shape: f32[1,96], index: 3, kind: input, shape index: {}]
  %s4 = inlined_call_operand.vmem [shape: f32[32,32], index: 4, kind: input, shape index: {}]
  %s5 = inlined_call_operand.vmem [shape: f32[1,32], index: 5, kind: input, shape index: {}]
  %s6 = inlined_call_operand.hbm [shape: f32[32,32], index: 6, kind: input, shape index: {}]
  %s7 = inlined_call_operand.vmem [shape: f32[1,32], index: 7, kind: input, shape index: {}]
  %s8 = inlined_call_operand.hbm [shape: f32[32,64], index: 8, kind: input, shape index: {}]
  %s9 = inlined_call_operand.vmem [shape: f32[1,64], index: 9, kind: input, shape index: {}]
  %s10 = inlined_call_operand.hbm [shape: f32[32,32], index: 10, kind: input, shape index: {}]
  %s11 = inlined_call_operand.vmem [shape: f32[1,32], index: 11, kind: input, shape index: {}]
  %s12 = inlined_call_operand.hbm [shape: f32[32,64], index: 12, kind: input, shape index: {}]
  %s13 = inlined_call_operand.vmem [shape: f32[1,64], index: 13, kind: input, shape index: {}]
  %s14 = inlined_call_operand.vmem [shape: f32[64,32], index: 14, kind: input, shape index: {}]
  %s15 = inlined_call_operand.vmem [shape: f32[1,32], index: 15, kind: input, shape index: {}]
  %s16 = inlined_call_operand.vmem [shape: f32[1,32], index: 16, kind: input, shape index: {}]
  %s17 = inlined_call_operand.vmem [shape: f32[1,32], index: 17, kind: input, shape index: {}]
  %s18 = inlined_call_operand.vmem [shape: f32[1,32], index: 18, kind: input, shape index: {}]
  %s19 = inlined_call_operand.vmem [shape: f32[1,32], index: 19, kind: input, shape index: {}]
  %s20 = inlined_call_operand.vmem [shape: f32[1,32], index: 20, kind: input, shape index: {}]
  %s21 = inlined_call_operand.vmem [shape: f32[1,32], index: 21, kind: input, shape index: {}]
  %s22 = inlined_call_operand.hbm [shape: f32[2,8,32], index: 22, kind: output, shape index: {}]
  %s23 = sld [smem:[#allocation0]]
  $region141: #{decoder_layer.1} parent=0
    _
  %s25 = ssub.s32 1, %s23
  %s26 = scalar_select 0, %s25, %s23
  $region1: #{decoder_layer.1} parent=0
    #allocation2 [shape = 'u8[8192]{0}', space=vmem, size = 0x2000, scoped, tag = 'input window, operand 0']
    #allocation3 [shape = 's32[2]{0}', space=sflag, size = 0x8, scoped, tag = 'scoped memory for decoder_layer.1']
    #allocation4 [shape = 's32[2]{0}', space=sflag, size = 0x8, scoped, tag = 'scoped memory for decoder_layer.1']
    #allocation5 [shape = 'u8[16384]{0}', space=vmem, size = 0x4000, scoped, tag = 'input window, operand 6, single buffered']
    #allocation6 [shape = 's32[1]{0}', space=sflag, size = 0x4, scoped, tag = 'scoped memory for decoder_layer.1']
    #allocation7 [shape = 'u8[16384]{0}', space=vmem, size = 0x4000, scoped, tag = 'input window, operand 8, single buffered']
    #allocation8 [shape = 'u8[16384]{0}', space=vmem, size = 0x4000, scoped, tag = 'input window, operand 10, single buffered']
    #allocation9 [shape = 's32[1]{0}', space=sflag, size = 0x4, scoped, tag = 'scoped memory for decoder_layer.1']
    #allocation10 [shape = 'u8[16384]{0}', space=vmem, size = 0x4000, scoped, tag = 'input window, operand 12, single buffered']
    #allocation11 [shape = 'u8[8192]{0}', space=vmem, size = 0x2000, scoped, tag = 'output window, operand 0']
    %27 = vsyncpa [#allocation3], 0
    %s28 = scalar_lea.sflag [#allocation3], 1
    %29 = vsyncpa %s28, 0
    %30 = vsyncpa [#allocation6], 0
    %31 = vsyncpa [#allocation9], 0
    %32 = vsyncpa [#allocation4], 0
    %s33 = scalar_lea.sflag [#allocation4], 1
    %34 = vsyncpa %s33, 0
    loop: start=0, step=1, limit=4
    $region2: #{decoder_layer.1} parent=1 // loop_pre_header
      _
    $region3: #{decoder_layer.1} parent=1 // loop_header
      %s36 = sphi 0, %s40
      %p37 = scmp.ge.s32.totalorder %s36, 4
      %s46 = sphi 0, %s48
      %s49 = sphi 0, %s46
      %s50 = sphi 0, %s49
      %s66 = sphi 0, %s50
      %s72 = sphi 0, %s74
      %s75 = sphi 0, %s72
      %s76 = sphi 0, %s75
      %s92 = sphi 0, %s76
      %s96 = sphi 0, %s96
      %s98 = sphi 0, %s96
      %s99 = sphi 0, %s98
      %s113 = sphi 0, %s99
      %s117 = sphi 0, %s117
      %s119 = sphi 0, %s117
      %s120 = sphi 0, %s119
      %s134 = sphi 0, %s120
      %s138 = sphi 0, %s138
      %s140 = sphi 0, %s138
      %s141 = sphi 0, %s140
      %s155 = sphi 0, %s141
      %s159 = sphi 0, %s159
      %s161 = sphi 0, %s159
      %s162 = sphi 0, %s161
      %s176 = sphi 0, %s162
      %s180 = sphi 0, %s180
      %s182 = sphi 0, %s180
      %s183 = sphi 0, %s182
      %s197 = sphi 0, %s183
      %s201 = sphi 0, %s201
      %s203 = sphi 0, %s201
      %s204 = sphi 0, %s203
      %s218 = sphi 0, %s204
      %s222 = sphi 0, %s222
      %s224 = sphi 0, %s222
      %s225 = sphi 0, %s224
      %s239 = sphi 0, %s225
      %s243 = sphi 0, %s243
      %s245 = sphi 0, %s243
      %s246 = sphi 0, %s245
      %s260 = sphi 0, %s246
      %s264 = sphi 0, %s264
      %s266 = sphi 0, %s264
      %s267 = sphi 0, %s266
      %s281 = sphi 0, %s267
      %s285 = sphi 0, %s285
      %s287 = sphi 0, %s285
      %s288 = sphi 0, %s287
      %s302 = sphi 0, %s288
      %s306 = sphi 0, %s306
      %s308 = sphi 0, %s306
      %s309 = sphi 0, %s308
      %s323 = sphi 0, %s309
      %s327 = sphi 0, %s327
      %s329 = sphi 0, %s327
      %s330 = sphi 0, %s329
      %s344 = sphi 0, %s330
      %s348 = sphi 0, %s348
      %s350 = sphi 0, %s348
      %s351 = sphi 0, %s350
      %s365 = sphi 0, %s351
      %s369 = sphi 0, %s369
      %s371 = sphi 0, %s369
      %s372 = sphi 0, %s371
      %s386 = sphi 0, %s372
      %s390 = sphi 0, %s390
      %s392 = sphi 0, %s390
      %s393 = sphi 0, %s392
      %s407 = sphi 0, %s393
      %s411 = sphi 0, %s411
      %s413 = sphi 0, %s411
      %s414 = sphi 0, %s413
      %s428 = sphi 0, %s414
      %s432 = sphi 0, %s432
      %s434 = sphi 0, %s432
      %s435 = sphi 0, %s434
      %s449 = sphi 0, %s435
      %s453 = sphi 0, %s453
      %s455 = sphi 0, %s453
      %s456 = sphi 0, %s455
      %s470 = sphi 0, %s456
      %s474 = sphi 0, %s474
      %s476 = sphi 0, %s474
      %s477 = sphi 0, %s476
      %s491 = sphi 0, %s477
      %s495 = sphi 0, %s495
      %s497 = sphi 0, %s495
      %s498 = sphi 0, %s497
      %s512 = sphi 0, %s498
      %s518 = sphi 0, %s520
      %s521 = sphi 0, %s518
      %s522 = sphi 0, %s521
      %s538 = sphi 0, %s522
    $region4: #{decoder_layer.1} parent=1 // loop_header_branch
      %39 = sbr.rel (%p37) target = $region8
    $region5: #{decoder_layer.1} parent=1 // loop_body
      %s41 = ssub.s32 %s36, 1
      %s42 = ssub.s32 %s36, 2
      %s43 = sadd.s32 %s36, 1
      %s44 = ssub.s32 %s36, %s43
      %p45 = scmp.eq.s32.totalorder %s44, 0
      %s47 = sadd.s32 %s46, 1
      %s48 = scalar_select %p45, %s46, %s47
      %p51 = pneg %p45
      %p52 = scmp.eq.s32.totalorder %s36, 1
      %p53 = por %p51, %p52
      %p54 = scmp.ne.s32.totalorder %s46, %s49
      %p55 = scmp.eq.s32.totalorder %s36, 0
      %p56 = por %p54, %p55
      %p57 = scmp.ne.s32.totalorder %s46, %s49
      %p58 = scmp.eq.s32.totalorder %s41, 1
      %p59 = por %p57, %p58
      %p60 = scmp.ne.s32.totalorder %s49, %s50
      %p61 = scmp.eq.s32.totalorder %s41, 0
      %p62 = por %p60, %p61
      %p63 = scmp.ne.s32.totalorder %s49, %s50
      %p64 = scmp.eq.s32.totalorder %s42, 1
      %p65 = por %p63, %p64
      %p67 = scmp.ne.s32.totalorder %s50, %s66
      %p68 = scmp.eq.s32.totalorder %s42, 0
      %p69 = por %p67, %p68
      %s70 = ssub.s32 %s36, %s43
      %p71 = scmp.eq.s32.totalorder %s70, 0
      %s73 = sadd.s32 %s72, 1
      %s74 = scalar_select %p71, %s72, %s73
      %p77 = pneg %p71
      %p78 = scmp.eq.s32.totalorder %s36, 1
      %p79 = por %p77, %p78
      %p80 = scmp.ne.s32.totalorder %s72, %s75
      %p81 = scmp.eq.s32.totalorder %s36, 0
      %p82 = por %p80, %p81
      %p83 = scmp.ne.s32.totalorder %s72, %s75
      %p84 = scmp.eq.s32.totalorder %s41, 1
      %p85 = por %p83, %p84
      %p86 = scmp.ne.s32.totalorder %s75, %s76
      %p87 = scmp.eq.s32.totalorder %s41, 0
      %p88 = por %p86, %p87
      %p89 = scmp.ne.s32.totalorder %s75, %s76
      %p90 = scmp.eq.s32.totalorder %s42, 1
      %p91 = por %p89, %p90
      %p93 = scmp.ne.s32.totalorder %s76, %s92
      %p94 = scmp.eq.s32.totalorder %s42, 0
      %p95 = por %p93, %p94
      %s97 = sadd.s32 %s96, 1
      %p100 = scmp.eq.s32.totalorder %s36, 1
      %p101 = scmp.ne.s32.totalorder %s96, %s98
      %p102 = scmp.eq.s32.totalorder %s36, 0
      %p103 = por %p101, %p102
      %p104 = scmp.ne.s32.totalorder %s96, %s98
      %p105 = scmp.eq.s32.totalorder %s41, 1
      %p106 = por %p104, %p105
      %p107 = scmp.ne.s32.totalorder %s98, %s99
      %p108 = scmp.eq.s32.totalorder %s41, 0
      %p109 = por %p107, %p108
      %p110 = scmp.ne.s32.totalorder %s98, %s99
      %p111 = scmp.eq.s32.totalorder %s42, 1
      %p112 = por %p110, %p111
      %p114 = scmp.ne.s32.totalorder %s99, %s113
      %p115 = scmp.eq.s32.totalorder %s42, 0
      %p116 = por %p114, %p115
      %s118 = sadd.s32 %s117, 1
      %p121 = scmp.eq.s32.totalorder %s36, 1
      %p122 = scmp.ne.s32.totalorder %s117, %s119
      %p123 = scmp.eq.s32.totalorder %s36, 0
      %p124 = por %p122, %p123
      %p125 = scmp.ne.s32.totalorder %s117, %s119
      %p126 = scmp.eq.s32.totalorder %s41, 1
      %p127 = por %p125, %p126
      %p128 = scmp.ne.s32.totalorder %s119, %s120
      %p129 = scmp.eq.s32.totalorder %s41, 0
      %p130 = por %p128, %p129
      %p131 = scmp.ne.s32.totalorder %s119, %s120
      %p132 = scmp.eq.s32.totalorder %s42, 1
      %p133 = por %p131, %p132
      %p135 = scmp.ne.s32.totalorder %s120, %s134
      %p136 = scmp.eq.s32.totalorder %s42, 0
      %p137 = por %p135, %p136
      %s139 = sadd.s32 %s138, 1
      %p142 = scmp.eq.s32.totalorder %s36, 1
      %p143 = scmp.ne.s32.totalorder %s138, %s140
      %p144 = scmp.eq.s32.totalorder %s36, 0
      %p145 = por %p143, %p144
      %p146 = scmp.ne.s32.totalorder %s138, %s140
      %p147 = scmp.eq.s32.totalorder %s41, 1
      %p148 = por %p146, %p147
      %p149 = scmp.ne.s32.totalorder %s140, %s141
      %p150 = scmp.eq.s32.totalorder %s41, 0
      %p151 = por %p149, %p150
      %p152 = scmp.ne.s32.totalorder %s140, %s141
      %p153 = scmp.eq.s32.totalorder %s42, 1
      %p154 = por %p152, %p153
      %p156 = scmp.ne.s32.totalorder %s141, %s155
      %p157 = scmp.eq.s32.totalorder %s42, 0
      %p158 = por %p156, %p157
      %s160 = sadd.s32 %s159, 1
      %p163 = scmp.eq.s32.totalorder %s36, 1
      %p164 = scmp.ne.s32.totalorder %s159, %s161
      %p165 = scmp.eq.s32.totalorder %s36, 0
      %p166 = por %p164, %p165
      %p167 = scmp.ne.s32.totalorder %s159, %s161
      %p168 = scmp.eq.s32.totalorder %s41, 1
      %p169 = por %p167, %p168
      %p170 = scmp.ne.s32.totalorder %s161, %s162
      %p171 = scmp.eq.s32.totalorder %s41, 0
      %p172 = por %p170, %p171
      %p173 = scmp.ne.s32.totalorder %s161, %s162
      %p174 = scmp.eq.s32.totalorder %s42, 1
      %p175 = por %p173, %p174
      %p177 = scmp.ne.s32.totalorder %s162, %s176
      %p178 = scmp.eq.s32.totalorder %s42, 0
      %p179 = por %p177, %p178
      %s181 = sadd.s32 %s180, 1
      %p184 = scmp.eq.s32.totalorder %s36, 1
      %p185 = scmp.ne.s32.totalorder %s180, %s182
      %p186 = scmp.eq.s32.totalorder %s36, 0
      %p187 = por %p185, %p186
      %p188 = scmp.ne.s32.totalorder %s180, %s182
      %p189 = scmp.eq.s32.totalorder %s41, 1
      %p190 = por %p188, %p189
      %p191 = scmp.ne.s32.totalorder %s182, %s183
      %p192 = scmp.eq.s32.totalorder %s41, 0
      %p193 = por %p191, %p192
      %p194 = scmp.ne.s32.totalorder %s182, %s183
      %p195 = scmp.eq.s32.totalorder %s42, 1
      %p196 = por %p194, %p195
      %p198 = scmp.ne.s32.totalorder %s183, %s197
      %p199 = scmp.eq.s32.totalorder %s42, 0
      %p200 = por %p198, %p199
      %s202 = sadd.s32 %s201, 1
      %p205 = scmp.eq.s32.totalorder %s36, 1
      %p206 = scmp.ne.s32.totalorder %s201, %s203
      %p207 = scmp.eq.s32.totalorder %s36, 0
      %p208 = por %p206, %p207
      %p209 = scmp.ne.s32.totalorder %s201, %s203
      %p210 = scmp.eq.s32.totalorder %s41, 1
      %p211 = por %p209, %p210
      %p212 = scmp.ne.s32.totalorder %s203, %s204
      %p213 = scmp.eq.s32.totalorder %s41, 0
      %p214 = por %p212, %p213
      %p215 = scmp.ne.s32.totalorder %s203, %s204
      %p216 = scmp.eq.s32.totalorder %s42, 1
      %p217 = por %p215, %p216
      %p219 = scmp.ne.s32.totalorder %s204, %s218
      %p220 = scmp.eq.s32.totalorder %s42, 0
      %p221 = por %p219, %p220
      %s223 = sadd.s32 %s222, 1
      %p226 = scmp.eq.s32.totalorder %s36, 1
      %p227 = scmp.ne.s32.totalorder %s222, %s224
      %p228 = scmp.eq.s32.totalorder %s36, 0
      %p229 = por %p227, %p228
      %p230 = scmp.ne.s32.totalorder %s222, %s224
      %p231 = scmp.eq.s32.totalorder %s41, 1
      %p232 = por %p230, %p231
      %p233 = scmp.ne.s32.totalorder %s224, %s225
      %p234 = scmp.eq.s32.totalorder %s41, 0
      %p235 = por %p233, %p234
      %p236 = scmp.ne.s32.totalorder %s224, %s225
      %p237 = scmp.eq.s32.totalorder %s42, 1
      %p238 = por %p236, %p237
      %p240 = scmp.ne.s32.totalorder %s225, %s239
      %p241 = scmp.eq.s32.totalorder %s42, 0
      %p242 = por %p240, %p241
      %s244 = sadd.s32 %s243, 1
      %p247 = scmp.eq.s32.totalorder %s36, 1
      %p248 = scmp.ne.s32.totalorder %s243, %s245
      %p249 = scmp.eq.s32.totalorder %s36, 0
      %p250 = por %p248, %p249
      %p251 = scmp.ne.s32.totalorder %s243, %s245
      %p252 = scmp.eq.s32.totalorder %s41, 1
      %p253 = por %p251, %p252
      %p254 = scmp.ne.s32.totalorder %s245, %s246
      %p255 = scmp.eq.s32.totalorder %s41, 0
      %p256 = por %p254, %p255
      %p257 = scmp.ne.s32.totalorder %s245, %s246
      %p258 = scmp.eq.s32.totalorder %s42, 1
      %p259 = por %p257, %p258
      %p261 = scmp.ne.s32.totalorder %s246, %s260
      %p262 = scmp.eq.s32.totalorder %s42, 0
      %p263 = por %p261, %p262
      %s265 = sadd.s32 %s264, 1
      %p268 = scmp.eq.s32.totalorder %s36, 1
      %p269 = scmp.ne.s32.totalorder %s264, %s266
      %p270 = scmp.eq.s32.totalorder %s36, 0
      %p271 = por %p269, %p270
      %p272 = scmp.ne.s32.totalorder %s264, %s266
      %p273 = scmp.eq.s32.totalorder %s41, 1
      %p274 = por %p272, %p273
      %p275 = scmp.ne.s32.totalorder %s266, %s267
      %p276 = scmp.eq.s32.totalorder %s41, 0
      %p277 = por %p275, %p276
      %p278 = scmp.ne.s32.totalorder %s266, %s267
      %p279 = scmp.eq.s32.totalorder %s42, 1
      %p280 = por %p278, %p279
      %p282 = scmp.ne.s32.totalorder %s267, %s281
      %p283 = scmp.eq.s32.totalorder %s42, 0
      %p284 = por %p282, %p283
      %s286 = sadd.s32 %s285, 1
      %p289 = scmp.eq.s32.totalorder %s36, 1
      %p290 = scmp.ne.s32.totalorder %s285, %s287
      %p291 = scmp.eq.s32.totalorder %s36, 0
      %p292 = por %p290, %p291
      %p293 = scmp.ne.s32.totalorder %s285, %s287
      %p294 = scmp.eq.s32.totalorder %s41, 1
      %p295 = por %p293, %p294
      %p296 = scmp.ne.s32.totalorder %s287, %s288
      %p297 = scmp.eq.s32.totalorder %s41, 0
      %p298 = por %p296, %p297
      %p299 = scmp.ne.s32.totalorder %s287, %s288
      %p300 = scmp.eq.s32.totalorder %s42, 1
      %p301 = por %p299, %p300
      %p303 = scmp.ne.s32.totalorder %s288, %s302
      %p304 = scmp.eq.s32.totalorder %s42, 0
      %p305 = por %p303, %p304
      %s307 = sadd.s32 %s306, 1
      %p310 = scmp.eq.s32.totalorder %s36, 1
      %p311 = scmp.ne.s32.totalorder %s306, %s308
      %p312 = scmp.eq.s32.totalorder %s36, 0
      %p313 = por %p311, %p312
      %p314 = scmp.ne.s32.totalorder %s306, %s308
      %p315 = scmp.eq.s32.totalorder %s41, 1
      %p316 = por %p314, %p315
      %p317 = scmp.ne.s32.totalorder %s308, %s309
      %p318 = scmp.eq.s32.totalorder %s41, 0
      %p319 = por %p317, %p318
      %p320 = scmp.ne.s32.totalorder %s308, %s309
      %p321 = scmp.eq.s32.totalorder %s42, 1
      %p322 = por %p320, %p321
      %p324 = scmp.ne.s32.totalorder %s309, %s323
      %p325 = scmp.eq.s32.totalorder %s42, 0
      %p326 = por %p324, %p325
      %s328 = sadd.s32 %s327, 1
      %p331 = scmp.eq.s32.totalorder %s36, 1
      %p332 = scmp.ne.s32.totalorder %s327, %s329
      %p333 = scmp.eq.s32.totalorder %s36, 0
      %p334 = por %p332, %p333
      %p335 = scmp.ne.s32.totalorder %s327, %s329
      %p336 = scmp.eq.s32.totalorder %s41, 1
      %p337 = por %p335, %p336
      %p338 = scmp.ne.s32.totalorder %s329, %s330
      %p339 = scmp.eq.s32.totalorder %s41, 0
      %p340 = por %p338, %p339
      %p341 = scmp.ne.s32.totalorder %s329, %s330
      %p342 = scmp.eq.s32.totalorder %s42, 1
      %p343 = por %p341, %p342
      %p345 = scmp.ne.s32.totalorder %s330, %s344
      %p346 = scmp.eq.s32.totalorder %s42, 0
      %p347 = por %p345, %p346
      %s349 = sadd.s32 %s348, 1
      %p352 = scmp.eq.s32.totalorder %s36, 1
      %p353 = scmp.ne.s32.totalorder %s348, %s350
      %p354 = scmp.eq.s32.totalorder %s36, 0
      %p355 = por %p353, %p354
      %p356 = scmp.ne.s32.totalorder %s348, %s350
      %p357 = scmp.eq.s32.totalorder %s41, 1
      %p358 = por %p356, %p357
      %p359 = scmp.ne.s32.totalorder %s350, %s351
      %p360 = scmp.eq.s32.totalorder %s41, 0
      %p361 = por %p359, %p360
      %p362 = scmp.ne.s32.totalorder %s350, %s351
      %p363 = scmp.eq.s32.totalorder %s42, 1
      %p364 = por %p362, %p363
      %p366 = scmp.ne.s32.totalorder %s351, %s365
      %p367 = scmp.eq.s32.totalorder %s42, 0
      %p368 = por %p366, %p367
      %s370 = sadd.s32 %s369, 1
      %p373 = scmp.eq.s32.totalorder %s36, 1
      %p374 = scmp.ne.s32.totalorder %s369, %s371
      %p375 = scmp.eq.s32.totalorder %s36, 0
      %p376 = por %p374, %p375
      %p377 = scmp.ne.s32.totalorder %s369, %s371
      %p378 = scmp.eq.s32.totalorder %s41, 1
      %p379 = por %p377, %p378
      %p380 = scmp.ne.s32.totalorder %s371, %s372
      %p381 = scmp.eq.s32.totalorder %s41, 0
      %p382 = por %p380, %p381
      %p383 = scmp.ne.s32.totalorder %s371, %s372
      %p384 = scmp.eq.s32.totalorder %s42, 1
      %p385 = por %p383, %p384
      %p387 = scmp.ne.s32.totalorder %s372, %s386
      %p388 = scmp.eq.s32.totalorder %s42, 0
      %p389 = por %p387, %p388
      %s391 = sadd.s32 %s390, 1
      %p394 = scmp.eq.s32.totalorder %s36, 1
      %p395 = scmp.ne.s32.totalorder %s390, %s392
      %p396 = scmp.eq.s32.totalorder %s36, 0
      %p397 = por %p395, %p396
      %p398 = scmp.ne.s32.totalorder %s390, %s392
      %p399 = scmp.eq.s32.totalorder %s41, 1
      %p400 = por %p398, %p399
      %p401 = scmp.ne.s32.totalorder %s392, %s393
      %p402 = scmp.eq.s32.totalorder %s41, 0
      %p403 = por %p401, %p402
      %p404 = scmp.ne.s32.totalorder %s392, %s393
      %p405 = scmp.eq.s32.totalorder %s42, 1
      %p406 = por %p404, %p405
      %p408 = scmp.ne.s32.totalorder %s393, %s407
      %p409 = scmp.eq.s32.totalorder %s42, 0
      %p410 = por %p408, %p409
      %s412 = sadd.s32 %s411, 1
      %p415 = scmp.eq.s32.totalorder %s36, 1
      %p416 = scmp.ne.s32.totalorder %s411, %s413
      %p417 = scmp.eq.s32.totalorder %s36, 0
      %p418 = por %p416, %p417
      %p419 = scmp.ne.s32.totalorder %s411, %s413
      %p420 = scmp.eq.s32.totalorder %s41, 1
      %p421 = por %p419, %p420
      %p422 = scmp.ne.s32.totalorder %s413, %s414
      %p423 = scmp.eq.s32.totalorder %s41, 0
      %p424 = por %p422, %p423
      %p425 = scmp.ne.s32.totalorder %s413, %s414
      %p426 = scmp.eq.s32.totalorder %s42, 1
      %p427 = por %p425, %p426
      %p429 = scmp.ne.s32.totalorder %s414, %s428
      %p430 = scmp.eq.s32.totalorder %s42, 0
      %p431 = por %p429, %p430
      %s433 = sadd.s32 %s432, 1
      %p436 = scmp.eq.s32.totalorder %s36, 1
      %p437 = scmp.ne.s32.totalorder %s432, %s434
      %p438 = scmp.eq.s32.totalorder %s36, 0
      %p439 = por %p437, %p438
      %p440 = scmp.ne.s32.totalorder %s432, %s434
      %p441 = scmp.eq.s32.totalorder %s41, 1
      %p442 = por %p440, %p441
      %p443 = scmp.ne.s32.totalorder %s434, %s435
      %p444 = scmp.eq.s32.totalorder %s41, 0
      %p445 = por %p443, %p444
      %p446 = scmp.ne.s32.totalorder %s434, %s435
      %p447 = scmp.eq.s32.totalorder %s42, 1
      %p448 = por %p446, %p447
      %p450 = scmp.ne.s32.totalorder %s435, %s449
      %p451 = scmp.eq.s32.totalorder %s42, 0
      %p452 = por %p450, %p451
      %s454 = sadd.s32 %s453, 1
      %p457 = scmp.eq.s32.totalorder %s36, 1
      %p458 = scmp.ne.s32.totalorder %s453, %s455
      %p459 = scmp.eq.s32.totalorder %s36, 0
      %p460 = por %p458, %p459
      %p461 = scmp.ne.s32.totalorder %s453, %s455
      %p462 = scmp.eq.s32.totalorder %s41, 1
      %p463 = por %p461, %p462
      %p464 = scmp.ne.s32.totalorder %s455, %s456
      %p465 = scmp.eq.s32.totalorder %s41, 0
      %p466 = por %p464, %p465
      %p467 = scmp.ne.s32.totalorder %s455, %s456
      %p468 = scmp.eq.s32.totalorder %s42, 1
      %p469 = por %p467, %p468
      %p471 = scmp.ne.s32.totalorder %s456, %s470
      %p472 = scmp.eq.s32.totalorder %s42, 0
      %p473 = por %p471, %p472
      %s475 = sadd.s32 %s474, 1
      %p478 = scmp.eq.s32.totalorder %s36, 1
      %p479 = scmp.ne.s32.totalorder %s474, %s476
      %p480 = scmp.eq.s32.totalorder %s36, 0
      %p481 = por %p479, %p480
      %p482 = scmp.ne.s32.totalorder %s474, %s476
      %p483 = scmp.eq.s32.totalorder %s41, 1
      %p484 = por %p482, %p483
      %p485 = scmp.ne.s32.totalorder %s476, %s477
      %p486 = scmp.eq.s32.totalorder %s41, 0
      %p487 = por %p485, %p486
      %p488 = scmp.ne.s32.totalorder %s476, %s477
      %p489 = scmp.eq.s32.totalorder %s42, 1
      %p490 = por %p488, %p489
      %p492 = scmp.ne.s32.totalorder %s477, %s491
      %p493 = scmp.eq.s32.totalorder %s42, 0
      %p494 = por %p492, %p493
      %s496 = sadd.s32 %s495, 1
      %p499 = scmp.eq.s32.totalorder %s36, 1
      %p500 = scmp.ne.s32.totalorder %s495, %s497
      %p501 = scmp.eq.s32.totalorder %s36, 0
      %p502 = por %p500, %p501
      %p503 = scmp.ne.s32.totalorder %s495, %s497
      %p504 = scmp.eq.s32.totalorder %s41, 1
      %p505 = por %p503, %p504
      %p506 = scmp.ne.s32.totalorder %s497, %s498
      %p507 = scmp.eq.s32.totalorder %s41, 0
      %p508 = por %p506, %p507
      %p509 = scmp.ne.s32.totalorder %s497, %s498
      %p510 = scmp.eq.s32.totalorder %s42, 1
      %p511 = por %p509, %p510
      %p513 = scmp.ne.s32.totalorder %s498, %s512
      %p514 = scmp.eq.s32.totalorder %s42, 0
      %p515 = por %p513, %p514
      %s516 = ssub.s32 %s36, %s43
      %p517 = scmp.eq.s32.totalorder %s516, 0
      %s519 = sadd.s32 %s518, 1
      %s520 = scalar_select %p517, %s518, %s519
      %p523 = pneg %p517
      %p524 = scmp.eq.s32.totalorder %s36, 1
      %p525 = por %p523, %p524
      %p526 = scmp.ne.s32.totalorder %s518, %s521
      %p527 = scmp.eq.s32.totalorder %s36, 0
      %p528 = por %p526, %p527
      %p529 = scmp.ne.s32.totalorder %s518, %s521
      %p530 = scmp.eq.s32.totalorder %s41, 1
      %p531 = por %p529, %p530
      %p532 = scmp.ne.s32.totalorder %s521, %s522
      %p533 = scmp.eq.s32.totalorder %s41, 0
      %p534 = por %p532, %p533
      %p535 = scmp.ne.s32.totalorder %s521, %s522
      %p536 = scmp.eq.s32.totalorder %s42, 1
      %p537 = por %p535, %p536
      %p539 = scmp.ne.s32.totalorder %s522, %s538
      %p540 = scmp.eq.s32.totalorder %s42, 0
      %p541 = por %p539, %p540
      %p542 = scmp.le.s32.totalorder 1, %s36
      %p543 = scmp.lt.s32.totalorder %s36, 3
      %p544 = pnand %p542, %p543
      %p545 = pneg %p544
      // Predicated region
      $region9: #{decoder_layer.1} parent=5 // pred_check
        _
      $region10: #{decoder_layer.1} parent=5 // pred_check_branch
        %547 = sbr.rel (%p544) target = $region12
      $region11: #{decoder_layer.1} parent=5 // pred_region
        %s548 = ssub.s32 %s36, 1
        // Predicated region
        $region13: #{decoder_layer.1} parent=11 // pred_check
          %p549 = pneg %p109
        $region14: #{decoder_layer.1} parent=11 // pred_check_branch
          %551 = sbr.rel (%p549) target = $region16
        $region15: #{decoder_layer.1} parent=11 // pred_region
          _
        $region16: #{decoder_layer.1} parent=11 // pred_fallthru
          _
        // Predicated region
        $region17: #{decoder_layer.1} parent=11 // pred_check
          %p552 = pneg %p130
        $region18: #{decoder_layer.1} parent=11 // pred_check_branch
          %554 = sbr.rel (%p552) target = $region20
        $region19: #{decoder_layer.1} parent=11 // pred_region
          _
        $region20: #{decoder_layer.1} parent=11 // pred_fallthru
          _
        // Predicated region
        $region21: #{decoder_layer.1} parent=11 // pred_check
          %p555 = pneg %p151
        $region22: #{decoder_layer.1} parent=11 // pred_check_branch
          %557 = sbr.rel (%p555) target = $region24
        $region23: #{decoder_layer.1} parent=11 // pred_region
          _
        $region24: #{decoder_layer.1} parent=11 // pred_fallthru
          _
        // Predicated region
        $region25: #{decoder_layer.1} parent=11 // pred_check
          %p558 = pneg %p172
        $region26: #{decoder_layer.1} parent=11 // pred_check_branch
          %560 = sbr.rel (%p558) target = $region28
        $region27: #{decoder_layer.1} parent=11 // pred_region
          _
        $region28: #{decoder_layer.1} parent=11 // pred_fallthru
          _
        // Predicated region
        $region29: #{decoder_layer.1} parent=11 // pred_check
          %p561 = pneg %p193
        $region30: #{decoder_layer.1} parent=11 // pred_check_branch
          %563 = sbr.rel (%p561) target = $region32
        $region31: #{decoder_layer.1} parent=11 // pred_region
          %s565 = ssub.s32 512, 512
          %566 = vsyncadd [#allocation6], %s565
          %s567 = sshll.u32 [#allocation5], 4
          %s568 = int_to_ptr.vmem [resolvable:$true] %s567
          %573 = dma.hbm_to_vmem [thread:$0]  %s6, 512, %s568, [#allocation6], 128, 128, 8
        $region32: #{decoder_layer.1} parent=11 // pred_fallthru
          _
        // Predicated region
        $region33: #{decoder_layer.1} parent=11 // pred_check
          %p574 = pneg %p214
        $region34: #{decoder_layer.1} parent=11 // pred_check_branch
          %576 = sbr.rel (%p574) target = $region36
        $region35: #{decoder_layer.1} parent=11 // pred_region
          _
        $region36: #{decoder_layer.1} parent=11 // pred_fallthru
          _
        // Predicated region
        $region37: #{decoder_layer.1} parent=11 // pred_check
          %p577 = pneg %p235
        $region38: #{decoder_layer.1} parent=11 // pred_check_branch
          %579 = sbr.rel (%p577) target = $region40
        $region39: #{decoder_layer.1} parent=11 // pred_region
          %s581 = ssub.s32 512, 512
          %582 = vsyncadd [#allocation6], %s581
          %s583 = sshll.u32 [#allocation7], 4
          %s584 = int_to_ptr.vmem [resolvable:$true] %s583
          %589 = dma.hbm_to_vmem [thread:$0]  %s8, 512, %s584, [#allocation6], 128, 128, 8
        $region40: #{decoder_layer.1} parent=11 // pred_fallthru
          _
        // Predicated region
        $region41: #{decoder_layer.1} parent=11 // pred_check
          %p590 = pneg %p256
        $region42: #{decoder_layer.1} parent=11 // pred_check_branch
          %592 = sbr.rel (%p590) target = $region44
        $region43: #{decoder_layer.1} parent=11 // pred_region
          _
        $region44: #{decoder_layer.1} parent=11 // pred_fallthru
          _
        // Predicated region
        $region45: #{decoder_layer.1} parent=11 // pred_check
          %p593 = pneg %p277
        $region46: #{decoder_layer.1} parent=11 // pred_check_branch
          %595 = sbr.rel (%p593) target = $region48
        $region47: #{decoder_layer.1} parent=11 // pred_region
          %s597 = ssub.s32 512, 512
          %598 = vsyncadd [#allocation9], %s597
          %s599 = sshll.u32 [#allocation8], 4
          %s600 = int_to_ptr.vmem [resolvable:$true] %s599
          %605 = dma.hbm_to_vmem [thread:$0]  %s10, 512, %s600, [#allocation9], 128, 128, 8
        $region48: #{decoder_layer.1} parent=11 // pred_fallthru
          _
        // Predicated region
        $region49: #{decoder_layer.1} parent=11 // pred_check
          %p606 = pneg %p298
        $region50: #{decoder_layer.1} parent=11 // pred_check_branch
          %608 = sbr.rel (%p606) target = $region52
        $region51: #{decoder_layer.1} parent=11 // pred_region
          _
        $region52: #{decoder_layer.1} parent=11 // pred_fallthru
          _
        // Predicated region
        $region53: #{decoder_layer.1} parent=11 // pred_check
          %p609 = pneg %p319
        $region54: #{decoder_layer.1} parent=11 // pred_check_branch
          %611 = sbr.rel (%p609) target = $region56
        $region55: #{decoder_layer.1} parent=11 // pred_region
          %s613 = ssub.s32 512, 512
          %614 = vsyncadd [#allocation9], %s613
          %s615 = sshll.u32 [#allocation10], 4
          %s616 = int_to_ptr.vmem [resolvable:$true] %s615
          %621 = dma.hbm_to_vmem [thread:$0]  %s12, 512, %s616, [#allocation9], 128, 128, 8
        $region56: #{decoder_layer.1} parent=11 // pred_fallthru
          _
        // Predicated region
        $region57: #{decoder_layer.1} parent=11 // pred_check
          %p622 = pneg %p340
        $region58: #{decoder_layer.1} parent=11 // pred_check_branch
          %624 = sbr.rel (%p622) target = $region60
        $region59: #{decoder_layer.1} parent=11 // pred_region
          _
        $region60: #{decoder_layer.1} parent=11 // pred_fallthru
          _
        // Predicated region
        $region61: #{decoder_layer.1} parent=11 // pred_check
          %p625 = pneg %p361
        $region62: #{decoder_layer.1} parent=11 // pred_check_branch
          %627 = sbr.rel (%p625) target = $region64
        $region63: #{decoder_layer.1} parent=11 // pred_region
          _
        $region64: #{decoder_layer.1} parent=11 // pred_fallthru
          _
        // Predicated region
        $region65: #{decoder_layer.1} parent=11 // pred_check
          %p628 = pneg %p382
        $region66: #{decoder_layer.1} parent=11 // pred_check_branch
          %630 = sbr.rel (%p628) target = $region68
        $region67: #{decoder_layer.1} parent=11 // pred_region
          _
        $region68: #{decoder_layer.1} parent=11 // pred_fallthru
          _
        // Predicated region
        $region69: #{decoder_layer.1} parent=11 // pred_check
          %p631 = pneg %p403
        $region70: #{decoder_layer.1} parent=11 // pred_check_branch
          %633 = sbr.rel (%p631) target = $region72
        $region71: #{decoder_layer.1} parent=11 // pred_region
          _
        $region72: #{decoder_layer.1} parent=11 // pred_fallthru
          _
        // Predicated region
        $region73: #{decoder_layer.1} parent=11 // pred_check
          %p634 = pneg %p424
        $region74: #{decoder_layer.1} parent=11 // pred_check_branch
          %636 = sbr.rel (%p634) target = $region76
        $region75: #{decoder_layer.1} parent=11 // pred_region
          _
        $region76: #{decoder_layer.1} parent=11 // pred_fallthru
          _
        // Predicated region
        $region77: #{decoder_layer.1} parent=11 // pred_check
          %p637 = pneg %p445
        $region78: #{decoder_layer.1} parent=11 // pred_check_branch
          %639 = sbr.rel (%p637) target = $region80
        $region79: #{decoder_layer.1} parent=11 // pred_region
          _
        $region80: #{decoder_layer.1} parent=11 // pred_fallthru
          _
        // Predicated region
        $region81: #{decoder_layer.1} parent=11 // pred_check
          %p640 = pneg %p466
        $region82: #{decoder_layer.1} parent=11 // pred_check_branch
          %642 = sbr.rel (%p640) target = $region84
        $region83: #{decoder_layer.1} parent=11 // pred_region
          _
        $region84: #{decoder_layer.1} parent=11 // pred_fallthru
          _
        // Predicated region
        $region85: #{decoder_layer.1} parent=11 // pred_check
          %p643 = pneg %p487
        $region86: #{decoder_layer.1} parent=11 // pred_check_branch
          %645 = sbr.rel (%p643) target = $region88
        $region87: #{decoder_layer.1} parent=11 // pred_region
          _
        $region88: #{decoder_layer.1} parent=11 // pred_fallthru
          _
        // Predicated region
        $region89: #{decoder_layer.1} parent=11 // pred_check
          %p646 = pneg %p508
        $region90: #{decoder_layer.1} parent=11 // pred_check_branch
          %648 = sbr.rel (%p646) target = $region92
        $region91: #{decoder_layer.1} parent=11 // pred_region
          _
        $region92: #{decoder_layer.1} parent=11 // pred_fallthru
          _
      $region12: #{decoder_layer.1} parent=5 // pred_fallthru
        _
      %p649 = scmp.lt.s32.totalorder %s36, 2
      // Predicated region
      $region93: #{decoder_layer.1} parent=5 // pred_check
        %p650 = pneg %p649
      $region94: #{decoder_layer.1} parent=5 // pred_check_branch
        %652 = sbr.rel (%p650) target = $region96
      $region95: #{decoder_layer.1} parent=5 // pred_region
        // Predicated region
        $region97: #{decoder_layer.1} parent=95 // pred_check
          %p653 = pneg %p56
        $region98: #{decoder_layer.1} parent=95 // pred_check_branch
          %655 = sbr.rel (%p653) target = $region100
        $region99: #{decoder_layer.1} parent=95 // pred_region
          %s656 = sand.u32 %s46, 1
          %s657 = scalar_lea.sflag [#allocation3], %s656
          %s658 = sand.u32 %s46, 1
          %s659 = smul.addr %s658, 8
          %s660 = scalar_lea.vmem [#allocation2], %s659
          %s662 = ssub.s32 128, 128
          %663 = vsyncadd %s657, %s662
          %s664 = smul.addr %s36, 128
          %s665 = scalar_lea.hbm %s0, %s664
          %s667 = sshll.u32 %s660, 4
          %s668 = int_to_ptr.vmem [resolvable:$true] %s667
          %670 = dma.hbm_to_vmem [thread:$0]  %s665, 128, %s668, %s657
        $region100: #{decoder_layer.1} parent=95 // pred_fallthru
          _
        // Predicated region
        $region101: #{decoder_layer.1} parent=95 // pred_check
          %p671 = pneg %p82
        $region102: #{decoder_layer.1} parent=95 // pred_check_branch
          %673 = sbr.rel (%p671) target = $region104
        $region103: #{decoder_layer.1} parent=95 // pred_region
          %p674 = scmp.lt.s32.totalorder %s36, 1
          %s675 = scalar_select %p674, %s36, 1
          %s676 = smul.addr %s675, 2
          %s677 = smul.addr %s676, 8
          %s678 = scalar_lea.vmem %s1, %s677
        $region104: #{decoder_layer.1} parent=95 // pred_fallthru
          _
      $region96: #{decoder_layer.1} parent=5 // pred_fallthru
        _
      %p679 = scmp.le.s32.totalorder 1, %s36
      %p680 = scmp.lt.s32.totalorder %s36, 3
      %p681 = pnand %p679, %p680
      %p682 = pneg %p681
      // Predicated region
      $region105: #{decoder_layer.1} parent=5 // pred_check
        _
      $region106: #{decoder_layer.1} parent=5 // pred_check_branch
        %684 = sbr.rel (%p681) target = $region108
      $region107: #{decoder_layer.1} parent=5 // pred_region
        %s685 = ssub.s32 %s36, 1
        %s686 = sand.u32 %s49, 1
        %s687 = scalar_lea.sflag [#allocation3], %s686
        %s688 = sand.u32 %s49, 1
        %s689 = smul.addr %s688, 8
        %s690 = scalar_lea.vmem [#allocation2], %s689
        // Predicated region
        $region109: #{decoder_layer.1} parent=107 // pred_check
          %p691 = pneg %p62
        $region110: #{decoder_layer.1} parent=107 // pred_check_branch
          %693 = sbr.rel (%p691) target = $region112
        $region111: #{decoder_layer.1} parent=107 // pred_region
          %694 = dma.done %s687, 128
        $region112: #{decoder_layer.1} parent=107 // pred_fallthru
          _
        // Predicated region
        $region113: #{decoder_layer.1} parent=107 // pred_check
          %p695 = pneg %p193
        $region114: #{decoder_layer.1} parent=107 // pred_check_branch
          %697 = sbr.rel (%p695) target = $region116
        $region115: #{decoder_layer.1} parent=107 // pred_region
          %698 = dma.done [#allocation6], 512
        $region116: #{decoder_layer.1} parent=107 // pred_fallthru
          _
        // Predicated region
        $region117: #{decoder_layer.1} parent=107 // pred_check
          %p699 = pneg %p235
        $region118: #{decoder_layer.1} parent=107 // pred_check_branch
          %701 = sbr.rel (%p699) target = $region120
        $region119: #{decoder_layer.1} parent=107 // pred_region
          %702 = dma.done [#allocation6], 512
        $region120: #{decoder_layer.1} parent=107 // pred_fallthru
          _
        // Predicated region
        $region121: #{decoder_layer.1} parent=107 // pred_check
          %p703 = pneg %p277
        $region122: #{decoder_layer.1} parent=107 // pred_check_branch
          %705 = sbr.rel (%p703) target = $region124
        $region123: #{decoder_layer.1} parent=107 // pred_region
          %706 = dma.done [#allocation9], 512
        $region124: #{decoder_layer.1} parent=107 // pred_fallthru
          _
        // Predicated region
        $region125: #{decoder_layer.1} parent=107 // pred_check
          %p707 = pneg %p319
        $region126: #{decoder_layer.1} parent=107 // pred_check_branch
          %709 = sbr.rel (%p707) target = $region128
        $region127: #{decoder_layer.1} parent=107 // pred_region
          %710 = dma.done [#allocation9], 512
        $region128: #{decoder_layer.1} parent=107 // pred_fallthru
          _
        %s711 = sand.u32 %s49, 1
        %s712 = scalar_lea.sflag [#allocation3], %s711
        %s713 = sand.u32 %s49, 1
        %s714 = smul.addr %s713, 8
        %s715 = scalar_lea.vmem [#allocation2], %s714
        %p716 = pneg %p62
        %p717 = pneg %p59
        %p718 = scmp.lt.s32.totalorder %s41, 1
        %s719 = scalar_select %p718, %s41, 1
        %s720 = smul.addr %s719, 2
        %s721 = smul.addr %s720, 8
        %s722 = scalar_lea.vmem %s1, %s721
        %p723 = pneg %p88
        %p724 = pneg %p85
        %p725 = pneg %p109
        %p726 = pneg %p106
        %p727 = pneg %p130
        %p728 = pneg %p127
        %p729 = pneg %p151
        %p730 = pneg %p148
        %p731 = pneg %p172
        %p732 = pneg %p169
        %p733 = pneg %p193
        %p734 = pneg %p190
        %p735 = pneg %p214
        %p736 = pneg %p211
        %p737 = pneg %p235
        %p738 = pneg %p232
        %p739 = pneg %p256
        %p740 = pneg %p253
        %p741 = pneg %p277
        %p742 = pneg %p274
        %p743 = pneg %p298
        %p744 = pneg %p295
        %p745 = pneg %p319
        %p746 = pneg %p316
        %p747 = pneg %p340
        %p748 = pneg %p337
        %p749 = pneg %p361
        %p750 = pneg %p358
        %p751 = pneg %p382
        %p752 = pneg %p379
        %p753 = pneg %p403
        %p754 = pneg %p400
        %p755 = pneg %p424
        %p756 = pneg %p421
        %p757 = pneg %p445
        %p758 = pneg %p442
        %p759 = pneg %p466
        %p760 = pneg %p463
        %p761 = pneg %p487
        %p762 = pneg %p484
        %p763 = pneg %p508
        %p764 = pneg %p505
        %p765 = pneg %p534
        %p766 = pneg %p531
        %s767 = sand.u32 %s521, 1
        %s768 = scalar_lea.sflag [#allocation4], %s767
        %s769 = sand.u32 %s521, 1
        %s770 = smul.addr %s769, 8
        %s771 = scalar_lea.vmem [#allocation11], %s770
        %p772 = scmp.lt.s32.totalorder %s41, 1
        %s773 = scalar_select %p772, %s41, 1
        %s774 = smul.addr %s773, 2
        %s775 = smul.addr %s774, 8
        %s776 = scalar_lea.vmem %s1, %s775
        %v777 = vld [vmem:[%s690] sm:$0xff]
        %v778 = vld [vmem:[%s776] sm:$0xff]
        %v779 = vld [vmem:[%s776 + $0x8] sm:$0xff]
        %v780 = vld [vmem:[%s2] sm:$0xff]
        %v781 = vld [vmem:[%s2 + $0x8] sm:$0xff]
        %v782 = vld [vmem:[%s2 + $0x10] sm:$0xff]
        %v783 = vld [vmem:[%s2 + $0x18] sm:$0xff]
        %v784 = vld [vmem:[%s3] sm:$0x1]
        %v786 = vlaneseq
        %v787 = vshrl.u32 %v786, 7
        %v788 = vsub.s32 0, %v787
        %v789 = vrot.slane %v784, %v788
        %vm791 = vcmask 261120
        %v793 = vsel %vm791, %v777, 0
        %795 = vmatprep.subr.mxu0 0.0
        %796 = vmatpush1.msra.mxu0 %v780
        %797 = vmatprep.subr.mxu0 0.0
        %798 = vmatpush1.msra.mxu0 %v781
        %799 = vmatprep.subr.mxu0 0.0
        %800 = vmatpush1.msra.mxu0 %v782
        %801 = vmatprep.subr.mxu0 0.0
        %802 = vmatpush1.msra.mxu0 %v783
        %803 = vmatprep.subr.mxu0 0.0
        %804 = vmatpush1.msra.mxu0 0.0
        %805 = vmatprep.subr.mxu0 0.0
        %806 = vmatpush1.msra.mxu0 0.0
        %807 = vmatprep.subr.mxu0 0.0
        %808 = vmatpush1.msra.mxu0 0.0
        %809 = vmatprep.subr.mxu0 0.0
        %810 = vmatpush1.msra.mxu0 0.0
        %811 = vmatprep.subr.mxu0 0.0
        %812 = vmatpush1.msra.mxu0 0.0
        %813 = vmatprep.subr.mxu0 0.0
        %814 = vmatpush1.msra.mxu0 0.0
        %815 = vmatprep.subr.mxu0 0.0
        %816 = vmatpush1.msra.mxu0 0.0
        %817 = vmatprep.subr.mxu0 0.0
        %818 = vmatpush1.msra.mxu0 0.0
        %819 = vmatprep.subr.mxu0 0.0
        %820 = vmatpush1.msra.mxu0 0.0
        %821 = vmatprep.subr.mxu0 0.0
        %822 = vmatpush1.msra.mxu0 0.0
        %823 = vmatprep.subr.mxu0 0.0
        %824 = vmatpush1.msra.mxu0 0.0
        %825 = vmatprep.subr.mxu0 0.0
        %826 = vmatpush1.msra.mxu0 0.0
        %827 = vmatprep.subr.mxu0 0.0
        %828 = vmatpush1.msra.mxu0 0.0
        %829 = vmatprep.subr.mxu0 0.0
        %830 = vmatpush1.msra.mxu0 0.0
        %831 = vmatprep.subr.mxu0 0.0
        %832 = vmatpush1.msra.mxu0 0.0
        %833 = vmatprep.subr.mxu0 0.0
        %834 = vmatpush1.msra.mxu0 0.0
        %835 = vmatprep.subr.mxu0 0.0
        %836 = vmatpush1.msra.mxu0 0.0
        %837 = vmatprep.subr.mxu0 0.0
        %838 = vmatpush1.msra.mxu0 0.0
        %839 = vmatprep.subr.mxu0 0.0
        %840 = vmatpush1.msra.mxu0 0.0
        %841 = vmatprep.subr.mxu0 0.0
        %842 = vmatpush1.msra.mxu0 0.0
        %843 = vmatprep.subr.mxu0 0.0
        %844 = vmatpush1.msra.mxu0 0.0
        %845 = vmatprep.subr.mxu0 0.0
        %846 = vmatpush1.msra.mxu0 0.0
        %847 = vmatprep.subr.mxu0 0.0
        %848 = vmatpush1.msra.mxu0 0.0
        %849 = vmatprep.subr.mxu0 0.0
        %850 = vmatpush1.msra.mxu0 0.0
        %851 = vmatprep.subr.mxu0 0.0
        %852 = vmatpush1.msra.mxu0 0.0
        %853 = vmatprep.subr.mxu0 0.0
        %854 = vmatpush1.msra.mxu0 0.0
        %855 = vmatprep.subr.mxu0 0.0
        %856 = vmatpush1.msra.mxu0 0.0
        %857 = vmatprep.subr.mxu0 0.0
        %858 = vmatpush1.msra.mxu0 0.0
        %859 = vmatprep.mubr.f32.mxu0 0.0
        %860 = vmatmul.mubr.f32.gmra.mrb[0].mxu0 %v793
        %v861 = vpop.f32.mrb[0].mxu0
        %v862 = vadd.f32 %v789, %v861
        %v863 = vpop.f32.mrb[0].mxu0
        %864 = vdwg.mxu0
        %866 = vrot.lane.b32.xlu0 %v862, 96
        %v867 = vpop.permute.xlu0 %866
        %vm868 = vcmask 64512
        %v869 = vsel %vm868, %v862, 0
        %v871 = vsel %vm868, %v867, 0
        %873 = vmatprep.subr.mxu0 0.0
        %874 = vmatpush1.xpose.msra.mxu0 %v871
        %875 = vmatprep.subr.mxu0 0.0
        %876 = vmatpush1.xpose.msra.mxu0 0.0
        %877 = vmatprep.subr.mxu0 0.0
        %878 = vmatpush1.xpose.msra.mxu0 0.0
        %879 = vmatprep.subr.mxu0 0.0
        %880 = vmatpush1.xpose.msra.mxu0 0.0
        %881 = vmatprep.subr.mxu0 0.0
        %882 = vmatpush1.xpose.msra.mxu0 0.0
        %883 = vmatprep.subr.mxu0 0.0
        %884 = vmatpush1.xpose.msra.mxu0 0.0
        %885 = vmatprep.subr.mxu0 0.0
        %886 = vmatpush1.xpose.msra.mxu0 0.0
        %887 = vmatprep.subr.mxu0 0.0
        %888 = vmatpush1.xpose.msra.mxu0 0.0
        %889 = vmatprep.subr.mxu0 0.0
        %890 = vmatpush1.xpose.msra.mxu0 0.0
        %891 = vmatprep.subr.mxu0 0.0
        %892 = vmatpush1.xpose.msra.mxu0 0.0
        %893 = vmatprep.subr.mxu0 0.0
        %894 = vmatpush1.xpose.msra.mxu0 0.0
        %895 = vmatprep.subr.mxu0 0.0
        %896 = vmatpush1.xpose.msra.mxu0 0.0
        %897 = vmatprep.subr.mxu0 0.0
        %898 = vmatpush1.xpose.msra.mxu0 0.0
        %899 = vmatprep.subr.mxu0 0.0
        %900 = vmatpush1.xpose.msra.mxu0 0.0
        %901 = vmatprep.subr.mxu0 0.0
        %902 = vmatpush1.xpose.msra.mxu0 0.0
        %903 = vmatprep.subr.mxu0 0.0
        %904 = vmatpush1.xpose.msra.mxu0 0.0
        %905 = vmatprep.subr.mxu0 0.0
        %906 = vmatpush1.xpose.msra.mxu0 0.0
        %907 = vmatprep.subr.mxu0 0.0
        %908 = vmatpush1.xpose.msra.mxu0 0.0
        %909 = vmatprep.subr.mxu0 0.0
        %910 = vmatpush1.xpose.msra.mxu0 0.0
        %911 = vmatprep.subr.mxu0 0.0
        %912 = vmatpush1.xpose.msra.mxu0 0.0
        %913 = vmatprep.subr.mxu0 0.0
        %914 = vmatpush1.xpose.msra.mxu0 0.0
        %915 = vmatprep.subr.mxu0 0.0
        %916 = vmatpush1.xpose.msra.mxu0 0.0
        %917 = vmatprep.subr.mxu0 0.0
        %918 = vmatpush1.xpose.msra.mxu0 0.0
        %919 = vmatprep.subr.mxu0 0.0
        %920 = vmatpush1.xpose.msra.mxu0 0.0
        %921 = vmatprep.subr.mxu0 0.0
        %922 = vmatpush1.xpose.msra.mxu0 0.0
        %923 = vmatprep.subr.mxu0 0.0
        %924 = vmatpush1.xpose.msra.mxu0 0.0
        %925 = vmatprep.subr.mxu0 0.0
        %926 = vmatpush1.xpose.msra.mxu0 0.0
        %927 = vmatprep.subr.mxu0 0.0
        %928 = vmatpush1.xpose.msra.mxu0 0.0
        %929 = vmatprep.subr.mxu0 0.0
        %930 = vmatpush1.xpose.msra.mxu0 0.0
        %931 = vmatprep.subr.mxu0 0.0
        %932 = vmatpush1.xpose.msra.mxu0 0.0
        %933 = vmatprep.subr.mxu0 0.0
        %934 = vmatpush1.xpose.msra.mxu0 0.0
        %935 = vmatprep.subr.mxu0 0.0
        %936 = vmatpush1.xpose.msra.mxu0 0.0
        %937 = vmatprep.mubr.f32.mxu0 0.0
        %938 = vmatmul.mubr.f32.gmra.mrb[0].mxu0 %v869
        %v939 = vpop.f32.mrb[0].mxu0
        %v940 = vadd.f32 0.0, %v939
        %v941 = vpop.f32.mrb[0].mxu0
        %942 = vdwg.mxu0
        %v943 = vmul.f32 %v940, 0.35355338
        %v944 = vsel %vm868, %v943, -inf
        %945 = vmax.xlane.f32.xlu0 %v944
        %v946 = vpop.xlane.xlu0 %945
        %v947 = vsub.f32 %v943, %v946
        %v948 = vmul.f32 %v947, 1.442695
        %v949 = vpow.pop %v948
        %v950 = vsel %vm868, %v949, 0.0
        %951 = vadd.xlane.f32.xlu0 %v950
        %v952 = vpop.xlane.xlu0 %951
        %v953 = vrcp.pop %v952
        %v954 = vmul.f32 %v949, %v953
        %955 = vrot.lane.b32.xlu0 %v862, 64
        %v956 = vpop.permute.xlu0 %955
        %v959 = vsel %vm868, %v954, 0
        %961 = vmatprep.subr.mxu0 0.0
        %962 = vmatpush1.msra.mxu0 %v956
        %963 = vmatprep.subr.mxu0 0.0
        %964 = vmatpush1.msra.mxu0 0.0
        %965 = vmatprep.subr.mxu0 0.0
        %966 = vmatpush1.msra.mxu0 0.0
        %967 = vmatprep.subr.mxu0 0.0
        %968 = vmatpush1.msra.mxu0 0.0
        %969 = vmatprep.subr.mxu0 0.0
        %970 = vmatpush1.msra.mxu0 0.0
        %971 = vmatprep.subr.mxu0 0.0
        %972 = vmatpush1.msra.mxu0 0.0
        %973 = vmatprep.subr.mxu0 0.0
        %974 = vmatpush1.msra.mxu0 0.0
        %975 = vmatprep.subr.mxu0 0.0
        %976 = vmatpush1.msra.mxu0 0.0
        %977 = vmatprep.subr.mxu0 0.0
        %978 = vmatpush1.msra.mxu0 0.0
        %979 = vmatprep.subr.mxu0 0.0
        %980 = vmatpush1.msra.mxu0 0.0
        %981 = vmatprep.subr.mxu0 0.0
        %982 = vmatpush1.msra.mxu0 0.0
        %983 = vmatprep.subr.mxu0 0.0
        %984 = vmatpush1.msra.mxu0 0.0
        %985 = vmatprep.subr.mxu0 0.0
        %986 = vmatpush1.msra.mxu0 0.0
        %987 = vmatprep.subr.mxu0 0.0
        %988 = vmatpush1.msra.mxu0 0.0
        %989 = vmatprep.subr.mxu0 0.0
        %990 = vmatpush1.msra.mxu0 0.0
        %991 = vmatprep.subr.mxu0 0.0
        %992 = vmatpush1.msra.mxu0 0.0
        %993 = vmatprep.subr.mxu0 0.0
        %994 = vmatpush1.msra.mxu0 0.0
        %995 = vmatprep.subr.mxu0 0.0
        %996 = vmatpush1.msra.mxu0 0.0
        %997 = vmatprep.subr.mxu0 0.0
        %998 = vmatpush1.msra.mxu0 0.0
        %999 = vmatprep.subr.mxu0 0.0
        %1000 = vmatpush1.msra.mxu0 0.0
        %1001 = vmatprep.subr.mxu0 0.0
        %1002 = vmatpush1.msra.mxu0 0.0
        %1003 = vmatprep.subr.mxu0 0.0
        %1004 = vmatpush1.msra.mxu0 0.0
        %1005 = vmatprep.subr.mxu0 0.0
        %1006 = vmatpush1.msra.mxu0 0.0
        %1007 = vmatprep.subr.mxu0 0.0
        %1008 = vmatpush1.msra.mxu0 0.0
        %1009 = vmatprep.subr.mxu0 0.0
        %1010 = vmatpush1.msra.mxu0 0.0
        %1011 = vmatprep.subr.mxu0 0.0
        %1012 = vmatpush1.msra.mxu0 0.0
        %1013 = vmatprep.subr.mxu0 0.0
        %1014 = vmatpush1.msra.mxu0 0.0
        %1015 = vmatprep.subr.mxu0 0.0
        %1016 = vmatpush1.msra.mxu0 0.0
        %1017 = vmatprep.subr.mxu0 0.0
        %1018 = vmatpush1.msra.mxu0 0.0
        %1019 = vmatprep.subr.mxu0 0.0
        %1020 = vmatpush1.msra.mxu0 0.0
        %1021 = vmatprep.subr.mxu0 0.0
        %1022 = vmatpush1.msra.mxu0 0.0
        %1023 = vmatprep.subr.mxu0 0.0
        %1024 = vmatpush1.msra.mxu0 0.0
        %1025 = vmatprep.mubr.f32.mxu0 0.0
        %1026 = vmatmul.mubr.f32.gmra.mrb[0].mxu0 %v959
        %v1027 = vpop.f32.mrb[0].mxu0
        %v1028 = vadd.f32 0.0, %v1027
        %v1029 = vpop.f32.mrb[0].mxu0
        %1030 = vdwg.mxu0
        %1031 = vrot.lane.b32.xlu0 %v862, 120
        %v1032 = vpop.permute.xlu0 %1031
        %1033 = vrot.lane.b32.xlu0 %v862, 88
        %v1034 = vpop.permute.xlu0 %1033
        %v1035 = vsel %vm868, %v1032, 0
        %v1037 = vsel %vm868, %v1034, 0
        %1039 = vmatprep.subr.mxu0 0.0
        %1040 = vmatpush1.xpose.msra.mxu0 %v1037
        %1041 = vmatprep.subr.mxu0 0.0
        %1042 = vmatpush1.xpose.msra.mxu0 0.0
        %1043 = vmatprep.subr.mxu0 0.0
        %1044 = vmatpush1.xpose.msra.mxu0 0.0
        %1045 = vmatprep.subr.mxu0 0.0
        %1046 = vmatpush1.xpose.msra.mxu0 0.0
        %1047 = vmatprep.subr.mxu0 0.0
        %1048 = vmatpush1.xpose.msra.mxu0 0.0
        %1049 = vmatprep.subr.mxu0 0.0
        %1050 = vmatpush1.xpose.msra.mxu0 0.0
        %1051 = vmatprep.subr.mxu0 0.0
        %1052 = vmatpush1.xpose.msra.mxu0 0.0
        %1053 = vmatprep.subr.mxu0 0.0
        %1054 = vmatpush1.xpose.msra.mxu0 0.0
        %1055 = vmatprep.subr.mxu0 0.0
        %1056 = vmatpush1.xpose.msra.mxu0 0.0
        %1057 = vmatprep.subr.mxu0 0.0
        %1058 = vmatpush1.xpose.msra.mxu0 0.0
        %1059 = vmatprep.subr.mxu0 0.0
        %1060 = vmatpush1.xpose.msra.mxu0 0.0
        %1061 = vmatprep.subr.mxu0 0.0
        %1062 = vmatpush1.xpose.msra.mxu0 0.0
        %1063 = vmatprep.subr.mxu0 0.0
        %1064 = vmatpush1.xpose.msra.mxu0 0.0
        %1065 = vmatprep.subr.mxu0 0.0
        %1066 = vmatpush1.xpose.msra.mxu0 0.0
        %1067 = vmatprep.subr.mxu0 0.0
        %1068 = vmatpush1.xpose.msra.mxu0 0.0
        %1069 = vmatprep.subr.mxu0 0.0
        %1070 = vmatpush1.xpose.msra.mxu0 0.0
        %1071 = vmatprep.subr.mxu0 0.0
        %1072 = vmatpush1.xpose.msra.mxu0 0.0
        %1073 = vmatprep.subr.mxu0 0.0
        %1074 = vmatpush1.xpose.msra.mxu0 0.0
        %1075 = vmatprep.subr.mxu0 0.0
        %1076 = vmatpush1.xpose.msra.mxu0 0.0
        %1077 = vmatprep.subr.mxu0 0.0
        %1078 = vmatpush1.xpose.msra.mxu0 0.0
        %1079 = vmatprep.subr.mxu0 0.0
        %1080 = vmatpush1.xpose.msra.mxu0 0.0
        %1081 = vmatprep.subr.mxu0 0.0
        %1082 = vmatpush1.xpose.msra.mxu0 0.0
        %1083 = vmatprep.subr.mxu0 0.0
        %1084 = vmatpush1.xpose.msra.mxu0 0.0
        %1085 = vmatprep.subr.mxu0 0.0
        %1086 = vmatpush1.xpose.msra.mxu0 0.0
        %1087 = vmatprep.subr.mxu0 0.0
        %1088 = vmatpush1.xpose.msra.mxu0 0.0
        %1089 = vmatprep.subr.mxu0 0.0
        %1090 = vmatpush1.xpose.msra.mxu0 0.0
        %1091 = vmatprep.subr.mxu0 0.0
        %1092 = vmatpush1.xpose.msra.mxu0 0.0
        %1093 = vmatprep.subr.mxu0 0.0
        %1094 = vmatpush1.xpose.msra.mxu0 0.0
        %1095 = vmatprep.subr.mxu0 0.0
        %1096 = vmatpush1.xpose.msra.mxu0 0.0
        %1097 = vmatprep.subr.mxu0 0.0
        %1098 = vmatpush1.xpose.msra.mxu0 0.0
        %1099 = vmatprep.subr.mxu0 0.0
        %1100 = vmatpush1.xpose.msra.mxu0 0.0
        %1101 = vmatprep.subr.mxu0 0.0
        %1102 = vmatpush1.xpose.msra.mxu0 0.0
        %1103 = vmatprep.mubr.f32.mxu0 0.0
        %1104 = vmatmul.mubr.f32.gmra.mrb[0].mxu0 %v1035
        %v1105 = vpop.f32.mrb[0].mxu0
        %v1106 = vadd.f32 0.0, %v1105
        %v1107 = vpop.f32.mrb[0].mxu0
        %1108 = vdwg.mxu0
        %v1109 = vmul.f32 %v1106, 0.35355338
        %v1110 = vsel %vm868, %v1109, -inf
        %1111 = vmax.xlane.f32.xlu0 %v1110
        %v1112 = vpop.xlane.xlu0 %1111
        %v1113 = vsub.f32 %v1109, %v1112
        %v1114 = vmul.f32 %v1113, 1.442695
        %v1115 = vpow.pop %v1114
        %v1116 = vsel %vm868, %v1115, 0.0
        %1117 = vadd.xlane.f32.xlu0 %v1116
        %v1118 = vpop.xlane.xlu0 %1117
        %v1119 = vrcp.pop %v1118
        %v1120 = vmul.f32 %v1115, %v1119
        %1121 = vrot.lane.b32.xlu0 %v862, 56
        %v1122 = vpop.permute.xlu0 %1121
        %v1125 = vsel %vm868, %v1120, 0
        %1127 = vmatprep.subr.mxu0 0.0
        %1128 = vmatpush1.msra.mxu0 %v1122
        %1129 = vmatprep.subr.mxu0 0.0
        %1130 = vmatpush1.msra.mxu0 0.0
        %1131 = vmatprep.subr.mxu0 0.0
        %1132 = vmatpush1.msra.mxu0 0.0
        %1133 = vmatprep.subr.mxu0 0.0
        %1134 = vmatpush1.msra.mxu0 0.0
        %1135 = vmatprep.subr.mxu0 0.0
        %1136 = vmatpush1.msra.mxu0 0.0
        %1137 = vmatprep.subr.mxu0 0.0
        %1138 = vmatpush1.msra.mxu0 0.0
        %1139 = vmatprep.subr.mxu0 0.0
        %1140 = vmatpush1.msra.mxu0 0.0
        %1141 = vmatprep.subr.mxu0 0.0
        %1142 = vmatpush1.msra.mxu0 0.0
        %1143 = vmatprep.subr.mxu0 0.0
        %1144 = vmatpush1.msra.mxu0 0.0
        %1145 = vmatprep.subr.mxu0 0.0
        %1146 = vmatpush1.msra.mxu0 0.0
        %1147 = vmatprep.subr.mxu0 0.0
        %1148 = vmatpush1.msra.mxu0 0.0
        %1149 = vmatprep.subr.mxu0 0.0
        %1150 = vmatpush1.msra.mxu0 0.0
        %1151 = vmatprep.subr.mxu0 0.0
        %1152 = vmatpush1.msra.mxu0 0.0
        %1153 = vmatprep.subr.mxu0 0.0
        %1154 = vmatpush1.msra.mxu0 0.0
        %1155 = vmatprep.subr.mxu0 0.0
        %1156 = vmatpush1.msra.mxu0 0.0
        %1157 = vmatprep.subr.mxu0 0.0
        %1158 = vmatpush1.msra.mxu0 0.0
        %1159 = vmatprep.subr.mxu0 0.0
        %1160 = vmatpush1.msra.mxu0 0.0
        %1161 = vmatprep.subr.mxu0 0.0
        %1162 = vmatpush1.msra.mxu0 0.0
        %1163 = vmatprep.subr.mxu0 0.0
        %1164 = vmatpush1.msra.mxu0 0.0
        %1165 = vmatprep.subr.mxu0 0.0
        %1166 = vmatpush1.msra.mxu0 0.0
        %1167 = vmatprep.subr.mxu0 0.0
        %1168 = vmatpush1.msra.mxu0 0.0
        %1169 = vmatprep.subr.mxu0 0.0
        %1170 = vmatpush1.msra.mxu0 0.0
        %1171 = vmatprep.subr.mxu0 0.0
        %1172 = vmatpush1.msra.mxu0 0.0
        %1173 = vmatprep.subr.mxu0 0.0
        %1174 = vmatpush1.msra.mxu0 0.0
        %1175 = vmatprep.subr.mxu0 0.0
        %1176 = vmatpush1.msra.mxu0 0.0
        %1177 = vmatprep.subr.mxu0 0.0
        %1178 = vmatpush1.msra.mxu0 0.0
        %1179 = vmatprep.subr.mxu0 0.0
        %1180 = vmatpush1.msra.mxu0 0.0
        %1181 = vmatprep.subr.mxu0 0.0
        %1182 = vmatpush1.msra.mxu0 0.0
        %1183 = vmatprep.subr.mxu0 0.0
        %1184 = vmatpush1.msra.mxu0 0.0
        %1185 = vmatprep.subr.mxu0 0.0
        %1186 = vmatpush1.msra.mxu0 0.0
        %1187 = vmatprep.subr.mxu0 0.0
        %1188 = vmatpush1.msra.mxu0 0.0
        %1189 = vmatprep.subr.mxu0 0.0
        %1190 = vmatpush1.msra.mxu0 0.0
        %1191 = vmatprep.mubr.f32.mxu0 0.0
        %1192 = vmatmul.mubr.f32.gmra.mrb[0].mxu0 %v1125
        %v1193 = vpop.f32.mrb[0].mxu0
        %v1194 = vadd.f32 0.0, %v1193
        %v1195 = vpop.f32.mrb[0].mxu0
        %1196 = vdwg.mxu0
        %1197 = vrot.lane.b32.xlu0 %v862, 112
        %v1198 = vpop.permute.xlu0 %1197
        %1199 = vrot.lane.b32.xlu0 %v862, 80
        %v1200 = vpop.permute.xlu0 %1199
        %v1201 = vsel %vm868, %v1198, 0
        %v1203 = vsel %vm868, %v1200, 0
        %1205 = vmatprep.subr.mxu0 0.0
        %1206 = vmatpush1.xpose.msra.mxu0 %v1203
        %1207 = vmatprep.subr.mxu0 0.0
        %1208 = vmatpush1.xpose.msra.mxu0 0.0
        %1209 = vmatprep.subr.mxu0 0.0
        %1210 = vmatpush1.xpose.msra.mxu0 0.0
        %1211 = vmatprep.subr.mxu0 0.0
        %1212 = vmatpush1.xpose.msra.mxu0 0.0
        %1213 = vmatprep.subr.mxu0 0.0
        %1214 = vmatpush1.xpose.msra.mxu0 0.0
        %1215 = vmatprep.subr.mxu0 0.0
        %1216 = vmatpush1.xpose.msra.mxu0 0.0
        %1217 = vmatprep.subr.mxu0 0.0
        %1218 = vmatpush1.xpose.msra.mxu0 0.0
        %1219 = vmatprep.subr.mxu0 0.0
        %1220 = vmatpush1.xpose.msra.mxu0 0.0
        %1221 = vmatprep.subr.mxu0 0.0
        %1222 = vmatpush1.xpose.msra.mxu0 0.0
        %1223 = vmatprep.subr.mxu0 0.0
        %1224 = vmatpush1.xpose.msra.mxu0 0.0
        %1225 = vmatprep.subr.mxu0 0.0
        %1226 = vmatpush1.xpose.msra.mxu0 0.0
        %1227 = vmatprep.subr.mxu0 0.0
        %1228 = vmatpush1.xpose.msra.mxu0 0.0
        %1229 = vmatprep.subr.mxu0 0.0
        %1230 = vmatpush1.xpose.msra.mxu0 0.0
        %1231 = vmatprep.subr.mxu0 0.0
        %1232 = vmatpush1.xpose.msra.mxu0 0.0
        %1233 = vmatprep.subr.mxu0 0.0
        %1234 = vmatpush1.xpose.msra.mxu0 0.0
        %1235 = vmatprep.subr.mxu0 0.0
        %1236 = vmatpush1.xpose.msra.mxu0 0.0
        %1237 = vmatprep.subr.mxu0 0.0
        %1238 = vmatpush1.xpose.msra.mxu0 0.0
        %1239 = vmatprep.subr.mxu0 0.0
        %1240 = vmatpush1.xpose.msra.mxu0 0.0
        %1241 = vmatprep.subr.mxu0 0.0
        %1242 = vmatpush1.xpose.msra.mxu0 0.0
        %1243 = vmatprep.subr.mxu0 0.0
        %1244 = vmatpush1.xpose.msra.mxu0 0.0
        %1245 = vmatprep.subr.mxu0 0.0
        %1246 = vmatpush1.xpose.msra.mxu0 0.0
        %1247 = vmatprep.subr.mxu0 0.0
        %1248 = vmatpush1.xpose.msra.mxu0 0.0
        %1249 = vmatprep.subr.mxu0 0.0
        %1250 = vmatpush1.xpose.msra.mxu0 0.0
        %1251 = vmatprep.subr.mxu0 0.0
        %1252 = vmatpush1.xpose.msra.mxu0 0.0
        %1253 = vmatprep.subr.mxu0 0.0
        %1254 = vmatpush1.xpose.msra.mxu0 0.0
        %1255 = vmatprep.subr.mxu0 0.0
        %1256 = vmatpush1.xpose.msra.mxu0 0.0
        %1257 = vmatprep.subr.mxu0 0.0
        %1258 = vmatpush1.xpose.msra.mxu0 0.0
        %1259 = vmatprep.subr.mxu0 0.0
        %1260 = vmatpush1.xpose.msra.mxu0 0.0
        %1261 = vmatprep.subr.mxu0 0.0
        %1262 = vmatpush1.xpose.msra.mxu0 0.0
        %1263 = vmatprep.subr.mxu0 0.0
        %1264 = vmatpush1.xpose.msra.mxu0 0.0
        %1265 = vmatprep.subr.mxu0 0.0
        %1266 = vmatpush1.xpose.msra.mxu0 0.0
        %1267 = vmatprep.subr.mxu0 0.0
        %1268 = vmatpush1.xpose.msra.mxu0 0.0
        %1269 = vmatprep.mubr.f32.mxu0 0.0
        %1270 = vmatmul.mubr.f32.gmra.mrb[0].mxu0 %v1201
        %v1271 = vpop.f32.mrb[0].mxu0
        %v1272 = vadd.f32 0.0, %v1271
        %v1273 = vpop.f32.mrb[0].mxu0
        %1274 = vdwg.mxu0
        %v1275 = vmul.f32 %v1272, 0.35355338
        %v1276 = vsel %vm868, %v1275, -inf
        %1277 = vmax.xlane.f32.xlu0 %v1276
        %v1278 = vpop.xlane.xlu0 %1277
        %v1279 = vsub.f32 %v1275, %v1278
        %v1280 = vmul.f32 %v1279, 1.442695
        %v1281 = vpow.pop %v1280
        %v1282 = vsel %vm868, %v1281, 0.0
        %1283 = vadd.xlane.f32.xlu0 %v1282
        %v1284 = vpop.xlane.xlu0 %1283
        %v1285 = vrcp.pop %v1284
        %v1286 = vmul.f32 %v1281, %v1285
        %1287 = vrot.lane.b32.xlu0 %v862, 48
        %v1288 = vpop.permute.xlu0 %1287
        %v1291 = vsel %vm868, %v1286, 0
        %1293 = vmatprep.subr.mxu0 0.0
        %1294 = vmatpush1.msra.mxu0 %v1288
        %1295 = vmatprep.subr.mxu0 0.0
        %1296 = vmatpush1.msra.mxu0 0.0
        %1297 = vmatprep.subr.mxu0 0.0
        %1298 = vmatpush1.msra.mxu0 0.0
        %1299 = vmatprep.subr.mxu0 0.0
        %1300 = vmatpush1.msra.mxu0 0.0
        %1301 = vmatprep.subr.mxu0 0.0
        %1302 = vmatpush1.msra.mxu0 0.0
        %1303 = vmatprep.subr.mxu0 0.0
        %1304 = vmatpush1.msra.mxu0 0.0
        %1305 = vmatprep.subr.mxu0 0.0
        %1306 = vmatpush1.msra.mxu0 0.0
        %1307 = vmatprep.subr.mxu0 0.0
        %1308 = vmatpush1.msra.mxu0 0.0
        %1309 = vmatprep.subr.mxu0 0.0
        %1310 = vmatpush1.msra.mxu0 0.0
        %1311 = vmatprep.subr.mxu0 0.0
        %1312 = vmatpush1.msra.mxu0 0.0
        %1313 = vmatprep.subr.mxu0 0.0
        %1314 = vmatpush1.msra.mxu0 0.0
        %1315 = vmatprep.subr.mxu0 0.0
        %1316 = vmatpush1.msra.mxu0 0.0
        %1317 = vmatprep.subr.mxu0 0.0
        %1318 = vmatpush1.msra.mxu0 0.0
        %1319 = vmatprep.subr.mxu0 0.0
        %1320 = vmatpush1.msra.mxu0 0.0
        %1321 = vmatprep.subr.mxu0 0.0
        %1322 = vmatpush1.msra.mxu0 0.0
        %1323 = vmatprep.subr.mxu0 0.0
        %1324 = vmatpush1.msra.mxu0 0.0
        %1325 = vmatprep.subr.mxu0 0.0
        %1326 = vmatpush1.msra.mxu0 0.0
        %1327 = vmatprep.subr.mxu0 0.0
        %1328 = vmatpush1.msra.mxu0 0.0
        %1329 = vmatprep.subr.mxu0 0.0
        %1330 = vmatpush1.msra.mxu0 0.0
        %1331 = vmatprep.subr.mxu0 0.0
        %1332 = vmatpush1.msra.mxu0 0.0
        %1333 = vmatprep.subr.mxu0 0.0
        %1334 = vmatpush1.msra.mxu0 0.0
        %1335 = vmatprep.subr.mxu0 0.0
        %1336 = vmatpush1.msra.mxu0 0.0
        %1337 = vmatprep.subr.mxu0 0.0
        %1338 = vmatpush1.msra.mxu0 0.0
        %1339 = vmatprep.subr.mxu0 0.0
        %1340 = vmatpush1.msra.mxu0 0.0
        %1341 = vmatprep.subr.mxu0 0.0
        %1342 = vmatpush1.msra.mxu0 0.0
        %1343 = vmatprep.subr.mxu0 0.0
        %1344 = vmatpush1.msra.mxu0 0.0
        %1345 = vmatprep.subr.mxu0 0.0
        %1346 = vmatpush1.msra.mxu0 0.0
        %1347 = vmatprep.subr.mxu0 0.0
        %1348 = vmatpush1.msra.mxu0 0.0
        %1349 = vmatprep.subr.mxu0 0.0
        %1350 = vmatpush1.msra.mxu0 0.0
        %1351 = vmatprep.subr.mxu0 0.0
        %1352 = vmatpush1.msra.mxu0 0.0
        %1353 = vmatprep.subr.mxu0 0.0
        %1354 = vmatpush1.msra.mxu0 0.0
        %1355 = vmatprep.subr.mxu0 0.0
        %1356 = vmatpush1.msra.mxu0 0.0
        %1357 = vmatprep.mubr.f32.mxu0 0.0
        %1358 = vmatmul.mubr.f32.gmra.mrb[0].mxu0 %v1291
        %v1359 = vpop.f32.mrb[0].mxu0
        %v1360 = vadd.f32 0.0, %v1359
        %v1361 = vpop.f32.mrb[0].mxu0
        %1362 = vdwg.mxu0
        %1363 = vrot.lane.b32.xlu0 %v862, 104
        %v1364 = vpop.permute.xlu0 %1363
        %1365 = vrot.lane.b32.xlu0 %v862, 72
        %v1366 = vpop.permute.xlu0 %1365
        %v1367 = vsel %vm868, %v1364, 0
        %v1369 = vsel %vm868, %v1366, 0
        %1371 = vmatprep.subr.mxu0 0.0
        %1372 = vmatpush1.xpose.msra.mxu0 %v1369
        %1373 = vmatprep.subr.mxu0 0.0
        %1374 = vmatpush1.xpose.msra.mxu0 0.0
        %1375 = vmatprep.subr.mxu0 0.0
        %1376 = vmatpush1.xpose.msra.mxu0 0.0
        %1377 = vmatprep.subr.mxu0 0.0
        %1378 = vmatpush1.xpose.msra.mxu0 0.0
        %1379 = vmatprep.subr.mxu0 0.0
        %1380 = vmatpush1.xpose.msra.mxu0 0.0
        %1381 = vmatprep.subr.mxu0 0.0
        %1382 = vmatpush1.xpose.msra.mxu0 0.0
        %1383 = vmatprep.subr.mxu0 0.0
        %1384 = vmatpush1.xpose.msra.mxu0 0.0
        %1385 = vmatprep.subr.mxu0 0.0
        %1386 = vmatpush1.xpose.msra.mxu0 0.0
        %1387 = vmatprep.subr.mxu0 0.0
        %1388 = vmatpush1.xpose.msra.mxu0 0.0
        %1389 = vmatprep.subr.mxu0 0.0
        %1390 = vmatpush1.xpose.msra.mxu0 0.0
        %1391 = vmatprep.subr.mxu0 0.0
        %1392 = vmatpush1.xpose.msra.mxu0 0.0
        %1393 = vmatprep.subr.mxu0 0.0
        %1394 = vmatpush1.xpose.msra.mxu0 0.0
        %1395 = vmatprep.subr.mxu0 0.0
        %1396 = vmatpush1.xpose.msra.mxu0 0.0
        %1397 = vmatprep.subr.mxu0 0.0
        %1398 = vmatpush1.xpose.msra.mxu0 0.0
        %1399 = vmatprep.subr.mxu0 0.0
        %1400 = vmatpush1.xpose.msra.mxu0 0.0
        %1401 = vmatprep.subr.mxu0 0.0
        %1402 = vmatpush1.xpose.msra.mxu0 0.0
        %1403 = vmatprep.subr.mxu0 0.0
        %1404 = vmatpush1.xpose.msra.mxu0 0.0
        %1405 = vmatprep.subr.mxu0 0.0
        %1406 = vmatpush1.xpose.msra.mxu0 0.0
        %1407 = vmatprep.subr.mxu0 0.0
        %1408 = vmatpush1.xpose.msra.mxu0 0.0
        %1409 = vmatprep.subr.mxu0 0.0
        %1410 = vmatpush1.xpose.msra.mxu0 0.0
        %1411 = vmatprep.subr.mxu0 0.0
        %1412 = vmatpush1.xpose.msra.mxu0 0.0
        %1413 = vmatprep.subr.mxu0 0.0
        %1414 = vmatpush1.xpose.msra.mxu0 0.0
        %1415 = vmatprep.subr.mxu0 0.0
        %1416 = vmatpush1.xpose.msra.mxu0 0.0
        %1417 = vmatprep.subr.mxu0 0.0
        %1418 = vmatpush1.xpose.msra.mxu0 0.0
        %1419 = vmatprep.subr.mxu0 0.0
        %1420 = vmatpush1.xpose.msra.mxu0 0.0
        %1421 = vmatprep.subr.mxu0 0.0
        %1422 = vmatpush1.xpose.msra.mxu0 0.0
        %1423 = vmatprep.subr.mxu0 0.0
        %1424 = vmatpush1.xpose.msra.mxu0 0.0
        %1425 = vmatprep.subr.mxu0 0.0
        %1426 = vmatpush1.xpose.msra.mxu0 0.0
        %1427 = vmatprep.subr.mxu0 0.0
        %1428 = vmatpush1.xpose.msra.mxu0 0.0
        %1429 = vmatprep.subr.mxu0 0.0
        %1430 = vmatpush1.xpose.msra.mxu0 0.0
        %1431 = vmatprep.subr.mxu0 0.0
        %1432 = vmatpush1.xpose.msra.mxu0 0.0
        %1433 = vmatprep.subr.mxu0 0.0
        %1434 = vmatpush1.xpose.msra.mxu0 0.0
        %1435 = vmatprep.mubr.f32.mxu0 0.0
        %1436 = vmatmul.mubr.f32.gmra.mrb[0].mxu0 %v1367
        %v1437 = vpop.f32.mrb[0].mxu0
        %v1438 = vadd.f32 0.0, %v1437
        %v1439 = vpop.f32.mrb[0].mxu0
        %1440 = vdwg.mxu0
        %v1441 = vmul.f32 %v1438, 0.35355338
        %v1442 = vsel %vm868, %v1441, -inf
        %1443 = vmax.xlane.f32.xlu0 %v1442
        %v1444 = vpop.xlane.xlu0 %1443
        %v1445 = vsub.f32 %v1441, %v1444
        %v1446 = vmul.f32 %v1445, 1.442695
        %v1447 = vpow.pop %v1446
        %v1448 = vsel %vm868, %v1447, 0.0
        %1449 = vadd.xlane.f32.xlu0 %v1448
        %v1450 = vpop.xlane.xlu0 %1449
        %v1451 = vrcp.pop %v1450
        %v1452 = vmul.f32 %v1447, %v1451
        %1453 = vrot.lane.b32.xlu0 %v862, 40
        %v1454 = vpop.permute.xlu0 %1453
        %v1457 = vsel %vm868, %v1452, 0
        %1459 = vmatprep.subr.mxu0 0.0
        %1460 = vmatpush1.msra.mxu0 %v1454
        %1461 = vmatprep.subr.mxu0 0.0
        %1462 = vmatpush1.msra.mxu0 0.0
        %1463 = vmatprep.subr.mxu0 0.0
        %1464 = vmatpush1.msra.mxu0 0.0
        %1465 = vmatprep.subr.mxu0 0.0
        %1466 = vmatpush1.msra.mxu0 0.0
        %1467 = vmatprep.subr.mxu0 0.0
        %1468 = vmatpush1.msra.mxu0 0.0
        %1469 = vmatprep.subr.mxu0 0.0
        %1470 = vmatpush1.msra.mxu0 0.0
        %1471 = vmatprep.subr.mxu0 0.0
        %1472 = vmatpush1.msra.mxu0 0.0
        %1473 = vmatprep.subr.mxu0 0.0
        %1474 = vmatpush1.msra.mxu0 0.0
        %1475 = vmatprep.subr.mxu0 0.0
        %1476 = vmatpush1.msra.mxu0 0.0
        %1477 = vmatprep.subr.mxu0 0.0
        %1478 = vmatpush1.msra.mxu0 0.0
        %1479 = vmatprep.subr.mxu0 0.0
        %1480 = vmatpush1.msra.mxu0 0.0
        %1481 = vmatprep.subr.mxu0 0.0
        %1482 = vmatpush1.msra.mxu0 0.0
        %1483 = vmatprep.subr.mxu0 0.0
        %1484 = vmatpush1.msra.mxu0 0.0
        %1485 = vmatprep.subr.mxu0 0.0
        %1486 = vmatpush1.msra.mxu0 0.0
        %1487 = vmatprep.subr.mxu0 0.0
        %1488 = vmatpush1.msra.mxu0 0.0
        %1489 = vmatprep.subr.mxu0 0.0
        %1490 = vmatpush1.msra.mxu0 0.0
        %1491 = vmatprep.subr.mxu0 0.0
        %1492 = vmatpush1.msra.mxu0 0.0
        %1493 = vmatprep.subr.mxu0 0.0
        %1494 = vmatpush1.msra.mxu0 0.0
        %1495 = vmatprep.subr.mxu0 0.0
        %1496 = vmatpush1.msra.mxu0 0.0
        %1497 = vmatprep.subr.mxu0 0.0
        %1498 = vmatpush1.msra.mxu0 0.0
        %1499 = vmatprep.subr.mxu0 0.0
        %1500 = vmatpush1.msra.mxu0 0.0
        %1501 = vmatprep.subr.mxu0 0.0
        %1502 = vmatpush1.msra.mxu0 0.0
        %1503 = vmatprep.subr.mxu0 0.0
        %1504 = vmatpush1.msra.mxu0 0.0
        %1505 = vmatprep.subr.mxu0 0.0
        %1506 = vmatpush1.msra.mxu0 0.0
        %1507 = vmatprep.subr.mxu0 0.0
        %1508 = vmatpush1.msra.mxu0 0.0
        %1509 = vmatprep.subr.mxu0 0.0
        %1510 = vmatpush1.msra.mxu0 0.0
        %1511 = vmatprep.subr.mxu0 0.0
        %1512 = vmatpush1.msra.mxu0 0.0
        %1513 = vmatprep.subr.mxu0 0.0
        %1514 = vmatpush1.msra.mxu0 0.0
        %1515 = vmatprep.subr.mxu0 0.0
        %1516 = vmatpush1.msra.mxu0 0.0
        %1517 = vmatprep.subr.mxu0 0.0
        %1518 = vmatpush1.msra.mxu0 0.0
        %1519 = vmatprep.subr.mxu0 0.0
        %1520 = vmatpush1.msra.mxu0 0.0
        %1521 = vmatprep.subr.mxu0 0.0
        %1522 = vmatpush1.msra.mxu0 0.0
        %1523 = vmatprep.mubr.f32.mxu0 0.0
        %1524 = vmatmul.mubr.f32.gmra.mrb[0].mxu0 %v1457
        %v1525 = vpop.f32.mrb[0].mxu0
        %v1526 = vadd.f32 0.0, %v1525
        %v1527 = vpop.f32.mrb[0].mxu0
        %1528 = vdwg.mxu0
        %1530 = vrot.lane.b32.xlu0 %v1194, 8
        %v1531 = vpop.permute.xlu0 %1530
        %1534 = vrot.lane.b32.xlu0 %v1360, 16
        %v1535 = vpop.permute.xlu0 %1534
        %1538 = vrot.lane.b32.xlu0 %v1526, 24
        %v1539 = vpop.permute.xlu0 %1538
        %v1541 = vsel %vm868, %v1028, %v1531
        %vm1542 = vcmask 130048
        %v1543 = vsel %vm1542, %v1541, %v1535
        %vm1544 = vcmask 195584
        %v1545 = vsel %vm1544, %v1543, %v1539
        %v1546 = vld [vmem:[%s4] sm:$0xff]
        %v1547 = vld [vmem:[%s4 + $0x8] sm:$0xff]
        %v1548 = vld [vmem:[%s4 + $0x10] sm:$0xff]
        %v1549 = vld [vmem:[%s4 + $0x18] sm:$0xff]
        %v1550 = vld [vmem:[%s5] sm:$0x1]
        %v1552 = vlaneseq
        %v1553 = vshrl.u32 %v1552, 7
        %v1554 = vsub.s32 0, %v1553
        %v1555 = vrot.slane %v1550, %v1554
        %v1558 = vsel %vm791, %v1545, 0
        %1560 = vmatprep.subr.mxu0 0.0
        %1561 = vmatpush1.msra.mxu0 %v1546
        %1562 = vmatprep.subr.mxu0 0.0
        %1563 = vmatpush1.msra.mxu0 %v1547
        %1564 = vmatprep.subr.mxu0 0.0
        %1565 = vmatpush1.msra.mxu0 %v1548
        %1566 = vmatprep.subr.mxu0 0.0
        %1567 = vmatpush1.msra.mxu0 %v1549
        %1568 = vmatprep.subr.mxu0 0.0
        %1569 = vmatpush1.msra.mxu0 0.0
        %1570 = vmatprep.subr.mxu0 0.0
        %1571 = vmatpush1.msra.mxu0 0.0
        %1572 = vmatprep.subr.mxu0 0.0
        %1573 = vmatpush1.msra.mxu0 0.0
        %1574 = vmatprep.subr.mxu0 0.0
        %1575 = vmatpush1.msra.mxu0 0.0
        %1576 = vmatprep.subr.mxu0 0.0
        %1577 = vmatpush1.msra.mxu0 0.0
        %1578 = vmatprep.subr.mxu0 0.0
        %1579 = vmatpush1.msra.mxu0 0.0
        %1580 = vmatprep.subr.mxu0 0.0
        %1581 = vmatpush1.msra.mxu0 0.0
        %1582 = vmatprep.subr.mxu0 0.0
        %1583 = vmatpush1.msra.mxu0 0.0
        %1584 = vmatprep.subr.mxu0 0.0
        %1585 = vmatpush1.msra.mxu0 0.0
        %1586 = vmatprep.subr.mxu0 0.0
        %1587 = vmatpush1.msra.mxu0 0.0
        %1588 = vmatprep.subr.mxu0 0.0
        %1589 = vmatpush1.msra.mxu0 0.0
        %1590 = vmatprep.subr.mxu0 0.0
        %1591 = vmatpush1.msra.mxu0 0.0
        %1592 = vmatprep.subr.mxu0 0.0
        %1593 = vmatpush1.msra.mxu0 0.0
        %1594 = vmatprep.subr.mxu0 0.0
        %1595 = vmatpush1.msra.mxu0 0.0
        %1596 = vmatprep.subr.mxu0 0.0
        %1597 = vmatpush1.msra.mxu0 0.0
        %1598 = vmatprep.subr.mxu0 0.0
        %1599 = vmatpush1.msra.mxu0 0.0
        %1600 = vmatprep.subr.mxu0 0.0
        %1601 = vmatpush1.msra.mxu0 0.0
        %1602 = vmatprep.subr.mxu0 0.0
        %1603 = vmatpush1.msra.mxu0 0.0
        %1604 = vmatprep.subr.mxu0 0.0
        %1605 = vmatpush1.msra.mxu0 0.0
        %1606 = vmatprep.subr.mxu0 0.0
        %1607 = vmatpush1.msra.mxu0 0.0
        %1608 = vmatprep.subr.mxu0 0.0
        %1609 = vmatpush1.msra.mxu0 0.0
        %1610 = vmatprep.subr.mxu0 0.0
        %1611 = vmatpush1.msra.mxu0 0.0
        %1612 = vmatprep.subr.mxu0 0.0
        %1613 = vmatpush1.msra.mxu0 0.0
        %1614 = vmatprep.subr.mxu0 0.0
        %1615 = vmatpush1.msra.mxu0 0.0
        %1616 = vmatprep.subr.mxu0 0.0
        %1617 = vmatpush1.msra.mxu0 0.0
        %1618 = vmatprep.subr.mxu0 0.0
        %1619 = vmatpush1.msra.mxu0 0.0
        %1620 = vmatprep.subr.mxu0 0.0
        %1621 = vmatpush1.msra.mxu0 0.0
        %1622 = vmatprep.subr.mxu0 0.0
        %1623 = vmatpush1.msra.mxu0 0.0
        %1624 = vmatprep.mubr.f32.mxu0 0.0
        %1625 = vmatmul.mubr.f32.gmra.mrb[0].mxu0 %v1558
        %v1626 = vpop.f32.mrb[0].mxu0
        %v1627 = vadd.f32 %v1555, %v1626
        %v1628 = vpop.f32.mrb[0].mxu0
        %1629 = vdwg.mxu0
        %v1630 = vld [vmem:[%s16] sm:$0x1]
        %v1631 = vld [vmem:[%s17] sm:$0x1]
        %v1632 = vadd.f32 %v1627, %v777
        %v1633 = vsel %vm791, %v1632, 0.0
        %1634 = vadd.xlane.f32.xlu0 %v1633
        %v1635 = vpop.xlane.xlu0 %1634
        %v1636 = vrcp.pop 32.0
        %v1637 = vmul.f32 %v1635, %v1636
        %v1638 = vsub.f32 %v1632, %v1637
        %v1639 = vmul.f32 %v1638, %v1638
        %v1640 = vsel %vm791, %v1639, 0.0
        %1641 = vadd.xlane.f32.xlu0 %v1640
        %v1642 = vpop.xlane.xlu0 %1641
        %v1643 = vmul.f32 %v1642, %v1636
        %v1644 = vadd.f32 %v1643, 1e-12
        %v1645 = vrsqrt.pop %v1644
        %v1646 = vmul.f32 %v1638, %v1645
        %v1648 = vlaneseq
        %v1649 = vshrl.u32 %v1648, 7
        %v1650 = vsub.s32 0, %v1649
        %v1651 = vrot.slane %v1630, %v1650
        %v1653 = vmul.f32 %v1651, %v1646
        %v1655 = vlaneseq
        %v1656 = vshrl.u32 %v1655, 7
        %v1657 = vsub.s32 0, %v1656
        %v1658 = vrot.slane %v1631, %v1657
        %v1660 = vadd.f32 %v1653, %v1658
        %v1661 = vld [vmem:[#allocation5] sm:$0xff]
        %v1662 = vld [vmem:[#allocation5 + $0x8] sm:$0xff]
        %v1663 = vld [vmem:[#allocation5 + $0x10] sm:$0xff]
        %v1664 = vld [vmem:[#allocation5 + $0x18] sm:$0xff]
        %v1665 = vld [vmem:[%s7] sm:$0x1]
        %v1667 = vlaneseq
        %v1668 = vshrl.u32 %v1667, 7
        %v1669 = vsub.s32 0, %v1668
        %v1670 = vrot.slane %v1665, %v1669
        %v1673 = vsel %vm791, %v1660, 0
        %1675 = vmatprep.subr.mxu0 0.0
        %1676 = vmatpush1.msra.mxu0 %v1661
        %1677 = vmatprep.subr.mxu0 0.0
        %1678 = vmatpush1.msra.mxu0 %v1662
        %1679 = vmatprep.subr.mxu0 0.0
        %1680 = vmatpush1.msra.mxu0 %v1663
        %1681 = vmatprep.subr.mxu0 0.0
        %1682 = vmatpush1.msra.mxu0 %v1664
        %1683 = vmatprep.subr.mxu0 0.0
        %1684 = vmatpush1.msra.mxu0 0.0
        %1685 = vmatprep.subr.mxu0 0.0
        %1686 = vmatpush1.msra.mxu0 0.0
        %1687 = vmatprep.subr.mxu0 0.0
        %1688 = vmatpush1.msra.mxu0 0.0
        %1689 = vmatprep.subr.mxu0 0.0
        %1690 = vmatpush1.msra.mxu0 0.0
        %1691 = vmatprep.subr.mxu0 0.0
        %1692 = vmatpush1.msra.mxu0 0.0
        %1693 = vmatprep.subr.mxu0 0.0
        %1694 = vmatpush1.msra.mxu0 0.0
        %1695 = vmatprep.subr.mxu0 0.0
        %1696 = vmatpush1.msra.mxu0 0.0
        %1697 = vmatprep.subr.mxu0 0.0
        %1698 = vmatpush1.msra.mxu0 0.0
        %1699 = vmatprep.subr.mxu0 0.0
        %1700 = vmatpush1.msra.mxu0 0.0
        %1701 = vmatprep.subr.mxu0 0.0
        %1702 = vmatpush1.msra.mxu0 0.0
        %1703 = vmatprep.subr.mxu0 0.0
        %1704 = vmatpush1.msra.mxu0 0.0
        %1705 = vmatprep.subr.mxu0 0.0
        %1706 = vmatpush1.msra.mxu0 0.0
        %1707 = vmatprep.subr.mxu0 0.0
        %1708 = vmatpush1.msra.mxu0 0.0
        %1709 = vmatprep.subr.mxu0 0.0
        %1710 = vmatpush1.msra.mxu0 0.0
        %1711 = vmatprep.subr.mxu0 0.0
        %1712 = vmatpush1.msra.mxu0 0.0
        %1713 = vmatprep.subr.mxu0 0.0
        %1714 = vmatpush1.msra.mxu0 0.0
        %1715 = vmatprep.subr.mxu0 0.0
        %1716 = vmatpush1.msra.mxu0 0.0
        %1717 = vmatprep.subr.mxu0 0.0
        %1718 = vmatpush1.msra.mxu0 0.0
        %1719 = vmatprep.subr.mxu0 0.0
        %1720 = vmatpush1.msra.mxu0 0.0
        %1721 = vmatprep.subr.mxu0 0.0
        %1722 = vmatpush1.msra.mxu0 0.0
        %1723 = vmatprep.subr.mxu0 0.0
        %1724 = vmatpush1.msra.mxu0 0.0
        %1725 = vmatprep.subr.mxu0 0.0
        %1726 = vmatpush1.msra.mxu0 0.0
        %1727 = vmatprep.subr.mxu0 0.0
        %1728 = vmatpush1.msra.mxu0 0.0
        %1729 = vmatprep.subr.mxu0 0.0
        %1730 = vmatpush1.msra.mxu0 0.0
        %1731 = vmatprep.subr.mxu0 0.0
        %1732 = vmatpush1.msra.mxu0 0.0
        %1733 = vmatprep.subr.mxu0 0.0
        %1734 = vmatpush1.msra.mxu0 0.0
        %1735 = vmatprep.subr.mxu0 0.0
        %1736 = vmatpush1.msra.mxu0 0.0
        %1737 = vmatprep.subr.mxu0 0.0
        %1738 = vmatpush1.msra.mxu0 0.0
        %1739 = vmatprep.mubr.f32.mxu0 0.0
        %1740 = vmatmul.mubr.f32.gmra.mrb[0].mxu0 %v1673
        %v1741 = vpop.f32.mrb[0].mxu0
        %v1742 = vadd.f32 %v1670, %v1741
        %v1743 = vpop.f32.mrb[0].mxu0
        %1744 = vdwg.mxu0
        %v1745 = vld [vmem:[#allocation7] sm:$0xff]
        %v1746 = vld [vmem:[#allocation7 + $0x8] sm:$0xff]
        %v1747 = vld [vmem:[#allocation7 + $0x10] sm:$0xff]
        %v1748 = vld [vmem:[#allocation7 + $0x18] sm:$0xff]
        %v1749 = vld [vmem:[%s9] sm:$0x1]
        %v1751 = vlaneseq
        %v1752 = vshrl.u32 %v1751, 7
        %v1753 = vsub.s32 0, %v1752
        %v1754 = vrot.slane %v1749, %v1753
        %v1757 = vsel %vm791, %v778, 0
        %v1760 = vsel %vm791, %v779, 0
        %1762 = vmatprep.subr.mxu0 0.0
        %1763 = vmatpush1.msra.mxu0 %v1745
        %1764 = vmatprep.subr.mxu0 0.0
        %1765 = vmatpush1.msra.mxu0 %v1746
        %1766 = vmatprep.subr.mxu0 0.0
        %1767 = vmatpush1.msra.mxu0 %v1747
        %1768 = vmatprep.subr.mxu0 0.0
        %1769 = vmatpush1.msra.mxu0 %v1748
        %1770 = vmatprep.subr.mxu0 0.0
        %1771 = vmatpush1.msra.mxu0 0.0
        %1772 = vmatprep.subr.mxu0 0.0
        %1773 = vmatpush1.msra.mxu0 0.0
        %1774 = vmatprep.subr.mxu0 0.0
        %1775 = vmatpush1.msra.mxu0 0.0
        %1776 = vmatprep.subr.mxu0 0.0
        %1777 = vmatpush1.msra.mxu0 0.0
        %1778 = vmatprep.subr.mxu0 0.0
        %1779 = vmatpush1.msra.mxu0 0.0
        %1780 = vmatprep.subr.mxu0 0.0
        %1781 = vmatpush1.msra.mxu0 0.0
        %1782 = vmatprep.subr.mxu0 0.0
        %1783 = vmatpush1.msra.mxu0 0.0
        %1784 = vmatprep.subr.mxu0 0.0
        %1785 = vmatpush1.msra.mxu0 0.0
        %1786 = vmatprep.subr.mxu0 0.0
        %1787 = vmatpush1.msra.mxu0 0.0
        %1788 = vmatprep.subr.mxu0 0.0
        %1789 = vmatpush1.msra.mxu0 0.0
        %1790 = vmatprep.subr.mxu0 0.0
        %1791 = vmatpush1.msra.mxu0 0.0
        %1792 = vmatprep.subr.mxu0 0.0
        %1793 = vmatpush1.msra.mxu0 0.0
        %1794 = vmatprep.subr.mxu0 0.0
        %1795 = vmatpush1.msra.mxu0 0.0
        %1796 = vmatprep.subr.mxu0 0.0
        %1797 = vmatpush1.msra.mxu0 0.0
        %1798 = vmatprep.subr.mxu0 0.0
        %1799 = vmatpush1.msra.mxu0 0.0
        %1800 = vmatprep.subr.mxu0 0.0
        %1801 = vmatpush1.msra.mxu0 0.0
        %1802 = vmatprep.subr.mxu0 0.0
        %1803 = vmatpush1.msra.mxu0 0.0
        %1804 = vmatprep.subr.mxu0 0.0
        %1805 = vmatpush1.msra.mxu0 0.0
        %1806 = vmatprep.subr.mxu0 0.0
        %1807 = vmatpush1.msra.mxu0 0.0
        %1808 = vmatprep.subr.mxu0 0.0
        %1809 = vmatpush1.msra.mxu0 0.0
        %1810 = vmatprep.subr.mxu0 0.0
        %1811 = vmatpush1.msra.mxu0 0.0
        %1812 = vmatprep.subr.mxu0 0.0
        %1813 = vmatpush1.msra.mxu0 0.0
        %1814 = vmatprep.subr.mxu0 0.0
        %1815 = vmatpush1.msra.mxu0 0.0
        %1816 = vmatprep.subr.mxu0 0.0
        %1817 = vmatpush1.msra.mxu0 0.0
        %1818 = vmatprep.subr.mxu0 0.0
        %1819 = vmatpush1.msra.mxu0 0.0
        %1820 = vmatprep.subr.mxu0 0.0
        %1821 = vmatpush1.msra.mxu0 0.0
        %1822 = vmatprep.subr.mxu0 0.0
        %1823 = vmatpush1.msra.mxu0 0.0
        %1824 = vmatprep.subr.mxu0 0.0
        %1825 = vmatpush1.msra.mxu0 0.0
        %1826 = vmatprep.mubr.f32.mxu0 0.0
        %1827 = vmatmul.mubr.f32.gmra.mrb[0].mxu0 %v1757
        %v1828 = vpop.f32.mrb[0].mxu0
        %v1829 = vadd.f32 %v1754, %v1828
        %v1830 = vpop.f32.mrb[0].mxu0
        %1831 = vmatprep.mubr.f32.mxu0 0.0
        %1832 = vmatmul.mubr.f32.gmra.mrb[0].mxu0 %v1760
        %v1833 = vpop.f32.mrb[0].mxu0
        %v1834 = vadd.f32 %v1754, %v1833
        %v1835 = vpop.f32.mrb[0].mxu0
        %1836 = vdwg.mxu0
        %v1838 = vsel %vm868, %v1742, 0
        %v1841 = vsel %vm868, %v1829, 0
        %v1844 = vsel %vm868, %v1834, 0
        %1846 = vmatprep.subr.mxu0 0.0
        %1847 = vmatpush1.xpose.msra.mxu0 %v1841
        %1848 = vmatprep.subr.mxu0 0.0
        %1849 = vmatpush1.xpose.msra.mxu0 %v1844
        %1850 = vmatprep.subr.mxu0 0.0
        %1851 = vmatpush1.xpose.msra.mxu0 0.0
        %1852 = vmatprep.subr.mxu0 0.0
        %1853 = vmatpush1.xpose.msra.mxu0 0.0
        %1854 = vmatprep.subr.mxu0 0.0
        %1855 = vmatpush1.xpose.msra.mxu0 0.0
        %1856 = vmatprep.subr.mxu0 0.0
        %1857 = vmatpush1.xpose.msra.mxu0 0.0
        %1858 = vmatprep.subr.mxu0 0.0
        %1859 = vmatpush1.xpose.msra.mxu0 0.0
        %1860 = vmatprep.subr.mxu0 0.0
        %1861 = vmatpush1.xpose.msra.mxu0 0.0
        %1862 = vmatprep.subr.mxu0 0.0
        %1863 = vmatpush1.xpose.msra.mxu0 0.0
        %1864 = vmatprep.subr.mxu0 0.0
        %1865 = vmatpush1.xpose.msra.mxu0 0.0
        %1866 = vmatprep.subr.mxu0 0.0
        %1867 = vmatpush1.xpose.msra.mxu0 0.0
        %1868 = vmatprep.subr.mxu0 0.0
        %1869 = vmatpush1.xpose.msra.mxu0 0.0
        %1870 = vmatprep.subr.mxu0 0.0
        %1871 = vmatpush1.xpose.msra.mxu0 0.0
        %1872 = vmatprep.subr.mxu0 0.0
        %1873 = vmatpush1.xpose.msra.mxu0 0.0
        %1874 = vmatprep.subr.mxu0 0.0
        %1875 = vmatpush1.xpose.msra.mxu0 0.0
        %1876 = vmatprep.subr.mxu0 0.0
        %1877 = vmatpush1.xpose.msra.mxu0 0.0
        %1878 = vmatprep.subr.mxu0 0.0
        %1879 = vmatpush1.xpose.msra.mxu0 0.0
        %1880 = vmatprep.subr.mxu0 0.0
        %1881 = vmatpush1.xpose.msra.mxu0 0.0
        %1882 = vmatprep.subr.mxu0 0.0
        %1883 = vmatpush1.xpose.msra.mxu0 0.0
        %1884 = vmatprep.subr.mxu0 0.0
        %1885 = vmatpush1.xpose.msra.mxu0 0.0
        %1886 = vmatprep.subr.mxu0 0.0
        %1887 = vmatpush1.xpose.msra.mxu0 0.0
        %1888 = vmatprep.subr.mxu0 0.0
        %1889 = vmatpush1.xpose.msra.mxu0 0.0
        %1890 = vmatprep.subr.mxu0 0.0
        %1891 = vmatpush1.xpose.msra.mxu0 0.0
        %1892 = vmatprep.subr.mxu0 0.0
        %1893 = vmatpush1.xpose.msra.mxu0 0.0
        %1894 = vmatprep.subr.mxu0 0.0
        %1895 = vmatpush1.xpose.msra.mxu0 0.0
        %1896 = vmatprep.subr.mxu0 0.0
        %1897 = vmatpush1.xpose.msra.mxu0 0.0
        %1898 = vmatprep.subr.mxu0 0.0
        %1899 = vmatpush1.xpose.msra.mxu0 0.0
        %1900 = vmatprep.subr.mxu0 0.0
        %1901 = vmatpush1.xpose.msra.mxu0 0.0
        %1902 = vmatprep.subr.mxu0 0.0
        %1903 = vmatpush1.xpose.msra.mxu0 0.0
        %1904 = vmatprep.subr.mxu0 0.0
        %1905 = vmatpush1.xpose.msra.mxu0 0.0
        %1906 = vmatprep.subr.mxu0 0.0
        %1907 = vmatpush1.xpose.msra.mxu0 0.0
        %1908 = vmatprep.subr.mxu0 0.0
        %1909 = vmatpush1.xpose.msra.mxu0 0.0
        %1910 = vmatprep.mubr.f32.mxu0 0.0
        %1911 = vmatmul.mubr.f32.gmra.mrb[0].mxu0 %v1838
        %v1912 = vpop.f32.mrb[0].mxu0
        %v1913 = vadd.f32 0.0, %v1912
        %v1914 = vpop.f32.mrb[0].mxu0
        %1915 = vdwg.mxu0
        %v1916 = vmul.f32 %v1913, 0.35355338
        %v1917 = vsel %vm1542, %v1916, -inf
        %1918 = vmax.xlane.f32.xlu0 %v1917
        %v1919 = vpop.xlane.xlu0 %1918
        %v1920 = vsub.f32 %v1916, %v1919
        %v1921 = vmul.f32 %v1920, 1.442695
        %v1922 = vpow.pop %v1921
        %v1923 = vsel %vm1542, %v1922, 0.0
        %1924 = vadd.xlane.f32.xlu0 %v1923
        %v1925 = vpop.xlane.xlu0 %1924
        %v1926 = vrcp.pop %v1925
        %v1927 = vmul.f32 %v1922, %v1926
        %1928 = vrot.lane.b32.xlu0 %v1829, 96
        %v1929 = vpop.permute.xlu0 %1928
        %1930 = vrot.lane.b32.xlu0 %v1834, 96
        %v1931 = vpop.permute.xlu0 %1930
        %v1935 = vsel %vm1542, %v1927, 0
        %1937 = vmatprep.subr.mxu0 0.0
        %1938 = vmatpush1.msra.mxu0 %v1929
        %1939 = vmatprep.subr.mxu0 0.0
        %1940 = vmatpush1.msra.mxu0 %v1931
        %1941 = vmatprep.subr.mxu0 0.0
        %1942 = vmatpush1.msra.mxu0 0.0
        %1943 = vmatprep.subr.mxu0 0.0
        %1944 = vmatpush1.msra.mxu0 0.0
        %1945 = vmatprep.subr.mxu0 0.0
        %1946 = vmatpush1.msra.mxu0 0.0
        %1947 = vmatprep.subr.mxu0 0.0
        %1948 = vmatpush1.msra.mxu0 0.0
        %1949 = vmatprep.subr.mxu0 0.0
        %1950 = vmatpush1.msra.mxu0 0.0
        %1951 = vmatprep.subr.mxu0 0.0
        %1952 = vmatpush1.msra.mxu0 0.0
        %1953 = vmatprep.subr.mxu0 0.0
        %1954 = vmatpush1.msra.mxu0 0.0
        %1955 = vmatprep.subr.mxu0 0.0
        %1956 = vmatpush1.msra.mxu0 0.0
        %1957 = vmatprep.subr.mxu0 0.0
        %1958 = vmatpush1.msra.mxu0 0.0
        %1959 = vmatprep.subr.mxu0 0.0
        %1960 = vmatpush1.msra.mxu0 0.0
        %1961 = vmatprep.subr.mxu0 0.0
        %1962 = vmatpush1.msra.mxu0 0.0
        %1963 = vmatprep.subr.mxu0 0.0
        %1964 = vmatpush1.msra.mxu0 0.0
        %1965 = vmatprep.subr.mxu0 0.0
        %1966 = vmatpush1.msra.mxu0 0.0
        %1967 = vmatprep.subr.mxu0 0.0
        %1968 = vmatpush1.msra.mxu0 0.0
        %1969 = vmatprep.subr.mxu0 0.0
        %1970 = vmatpush1.msra.mxu0 0.0
        %1971 = vmatprep.subr.mxu0 0.0
        %1972 = vmatpush1.msra.mxu0 0.0
        %1973 = vmatprep.subr.mxu0 0.0
        %1974 = vmatpush1.msra.mxu0 0.0
        %1975 = vmatprep.subr.mxu0 0.0
        %1976 = vmatpush1.msra.mxu0 0.0
        %1977 = vmatprep.subr.mxu0 0.0
        %1978 = vmatpush1.msra.mxu0 0.0
        %1979 = vmatprep.subr.mxu0 0.0
        %1980 = vmatpush1.msra.mxu0 0.0
        %1981 = vmatprep.subr.mxu0 0.0
        %1982 = vmatpush1.msra.mxu0 0.0
        %1983 = vmatprep.subr.mxu0 0.0
        %1984 = vmatpush1.msra.mxu0 0.0
        %1985 = vmatprep.subr.mxu0 0.0
        %1986 = vmatpush1.msra.mxu0 0.0
        %1987 = vmatprep.subr.mxu0 0.0
        %1988 = vmatpush1.msra.mxu0 0.0
        %1989 = vmatprep.subr.mxu0 0.0
        %1990 = vmatpush1.msra.mxu0 0.0
        %1991 = vmatprep.subr.mxu0 0.0
        %1992 = vmatpush1.msra.mxu0 0.0
        %1993 = vmatprep.subr.mxu0 0.0
        %1994 = vmatpush1.msra.mxu0 0.0
        %1995 = vmatprep.subr.mxu0 0.0
        %1996 = vmatpush1.msra.mxu0 0.0
        %1997 = vmatprep.subr.mxu0 0.0
        %1998 = vmatpush1.msra.mxu0 0.0
        %1999 = vmatprep.subr.mxu0 0.0
        %2000 = vmatpush1.msra.mxu0 0.0
        %2001 = vmatprep.mubr.f32.mxu0 0.0
        %2002 = vmatmul.mubr.f32.gmra.mrb[0].mxu0 %v1935
        %v2003 = vpop.f32.mrb[0].mxu0
        %v2004 = vadd.f32 0.0, %v2003
        %v2005 = vpop.f32.mrb[0].mxu0
        %2006 = vdwg.mxu0
        %2007 = vrot.lane.b32.xlu0 %v1742, 120
        %v2008 = vpop.permute.xlu0 %2007
        %2009 = vrot.lane.b32.xlu0 %v1829, 120
        %v2010 = vpop.permute.xlu0 %2009
        %2011 = vrot.lane.b32.xlu0 %v1834, 120
        %v2012 = vpop.permute.xlu0 %2011
        %v2013 = vsel %vm868, %v2008, 0
        %v2015 = vsel %vm868, %v2010, 0
        %v2017 = vsel %vm868, %v2012, 0
        %2019 = vmatprep.subr.mxu0 0.0
        %2020 = vmatpush1.xpose.msra.mxu0 %v2015
        %2021 = vmatprep.subr.mxu0 0.0
        %2022 = vmatpush1.xpose.msra.mxu0 %v2017
        %2023 = vmatprep.subr.mxu0 0.0
        %2024 = vmatpush1.xpose.msra.mxu0 0.0
        %2025 = vmatprep.subr.mxu0 0.0
        %2026 = vmatpush1.xpose.msra.mxu0 0.0
        %2027 = vmatprep.subr.mxu0 0.0
        %2028 = vmatpush1.xpose.msra.mxu0 0.0
        %2029 = vmatprep.subr.mxu0 0.0
        %2030 = vmatpush1.xpose.msra.mxu0 0.0
        %2031 = vmatprep.subr.mxu0 0.0
        %2032 = vmatpush1.xpose.msra.mxu0 0.0
        %2033 = vmatprep.subr.mxu0 0.0
        %2034 = vmatpush1.xpose.msra.mxu0 0.0
        %2035 = vmatprep.subr.mxu0 0.0
        %2036 = vmatpush1.xpose.msra.mxu0 0.0
        %2037 = vmatprep.subr.mxu0 0.0
        %2038 = vmatpush1.xpose.msra.mxu0 0.0
        %2039 = vmatprep.subr.mxu0 0.0
        %2040 = vmatpush1.xpose.msra.mxu0 0.0
        %2041 = vmatprep.subr.mxu0 0.0
        %2042 = vmatpush1.xpose.msra.mxu0 0.0
        %2043 = vmatprep.subr.mxu0 0.0
        %2044 = vmatpush1.xpose.msra.mxu0 0.0
        %2045 = vmatprep.subr.mxu0 0.0
        %2046 = vmatpush1.xpose.msra.mxu0 0.0
        %2047 = vmatprep.subr.mxu0 0.0
        %2048 = vmatpush1.xpose.msra.mxu0 0.0
        %2049 = vmatprep.subr.mxu0 0.0
        %2050 = vmatpush1.xpose.msra.mxu0 0.0
        %2051 = vmatprep.subr.mxu0 0.0
        %2052 = vmatpush1.xpose.msra.mxu0 0.0
        %2053 = vmatprep.subr.mxu0 0.0
        %2054 = vmatpush1.xpose.msra.mxu0 0.0
        %2055 = vmatprep.subr.mxu0 0.0
        %2056 = vmatpush1.xpose.msra.mxu0 0.0
        %2057 = vmatprep.subr.mxu0 0.0
        %2058 = vmatpush1.xpose.msra.mxu0 0.0
        %2059 = vmatprep.subr.mxu0 0.0
        %2060 = vmatpush1.xpose.msra.mxu0 0.0
        %2061 = vmatprep.subr.mxu0 0.0
        %2062 = vmatpush1.xpose.msra.mxu0 0.0
        %2063 = vmatprep.subr.mxu0 0.0
        %2064 = vmatpush1.xpose.msra.mxu0 0.0
        %2065 = vmatprep.subr.mxu0 0.0
        %2066 = vmatpush1.xpose.msra.mxu0 0.0
        %2067 = vmatprep.subr.mxu0 0.0
        %2068 = vmatpush1.xpose.msra.mxu0 0.0
        %2069 = vmatprep.subr.mxu0 0.0
        %2070 = vmatpush1.xpose.msra.mxu0 0.0
        %2071 = vmatprep.subr.mxu0 0.0
        %2072 = vmatpush1.xpose.msra.mxu0 0.0
        %2073 = vmatprep.subr.mxu0 0.0
        %2074 = vmatpush1.xpose.msra.mxu0 0.0
        %2075 = vmatprep.subr.mxu0 0.0
        %2076 = vmatpush1.xpose.msra.mxu0 0.0
        %2077 = vmatprep.subr.mxu0 0.0
        %2078 = vmatpush1.xpose.msra.mxu0 0.0
        %2079 = vmatprep.subr.mxu0 0.0
        %2080 = vmatpush1.xpose.msra.mxu0 0.0
        %2081 = vmatprep.subr.mxu0 0.0
        %2082 = vmatpush1.xpose.msra.mxu0 0.0
        %2083 = vmatprep.mubr.f32.mxu0 0.0
        %2084 = vmatmul.mubr.f32.gmra.mrb[0].mxu0 %v2013
        %v2085 = vpop.f32.mrb[0].mxu0
        %v2086 = vadd.f32 0.0, %v2085
        %v2087 = vpop.f32.mrb[0].mxu0
        %2088 = vdwg.mxu0
        %v2089 = vmul.f32 %v2086, 0.35355338
        %v2090 = vsel %vm1542, %v2089, -inf
        %2091 = vmax.xlane.f32.xlu0 %v2090
        %v2092 = vpop.xlane.xlu0 %2091
        %v2093 = vsub.f32 %v2089, %v2092
        %v2094 = vmul.f32 %v2093, 1.442695
        %v2095 = vpow.pop %v2094
        %v2096 = vsel %vm1542, %v2095, 0.0
        %2097 = vadd.xlane.f32.xlu0 %v2096
        %v2098 = vpop.xlane.xlu0 %2097
        %v2099 = vrcp.pop %v2098
        %v2100 = vmul.f32 %v2095, %v2099
        %2101 = vrot.lane.b32.xlu0 %v1829, 88
        %v2102 = vpop.permute.xlu0 %2101
        %2103 = vrot.lane.b32.xlu0 %v1834, 88
        %v2104 = vpop.permute.xlu0 %2103
        %v2108 = vsel %vm1542, %v2100, 0
        %2110 = vmatprep.subr.mxu0 0.0
        %2111 = vmatpush1.msra.mxu0 %v2102
        %2112 = vmatprep.subr.mxu0 0.0
        %2113 = vmatpush1.msra.mxu0 %v2104
        %2114 = vmatprep.subr.mxu0 0.0
        %2115 = vmatpush1.msra.mxu0 0.0
        %2116 = vmatprep.subr.mxu0 0.0
        %2117 = vmatpush1.msra.mxu0 0.0
        %2118 = vmatprep.subr.mxu0 0.0
        %2119 = vmatpush1.msra.mxu0 0.0
        %2120 = vmatprep.subr.mxu0 0.0
        %2121 = vmatpush1.msra.mxu0 0.0
        %2122 = vmatprep.subr.mxu0 0.0
        %2123 = vmatpush1.msra.mxu0 0.0
        %2124 = vmatprep.subr.mxu0 0.0
        %2125 = vmatpush1.msra.mxu0 0.0
        %2126 = vmatprep.subr.mxu0 0.0
        %2127 = vmatpush1.msra.mxu0 0.0
        %2128 = vmatprep.subr.mxu0 0.0
        %2129 = vmatpush1.msra.mxu0 0.0
        %2130 = vmatprep.subr.mxu0 0.0
        %2131 = vmatpush1.msra.mxu0 0.0
        %2132 = vmatprep.subr.mxu0 0.0
        %2133 = vmatpush1.msra.mxu0 0.0
        %2134 = vmatprep.subr.mxu0 0.0
        %2135 = vmatpush1.msra.mxu0 0.0
        %2136 = vmatprep.subr.mxu0 0.0
        %2137 = vmatpush1.msra.mxu0 0.0
        %2138 = vmatprep.subr.mxu0 0.0
        %2139 = vmatpush1.msra.mxu0 0.0
        %2140 = vmatprep.subr.mxu0 0.0
        %2141 = vmatpush1.msra.mxu0 0.0
        %2142 = vmatprep.subr.mxu0 0.0
        %2143 = vmatpush1.msra.mxu0 0.0
        %2144 = vmatprep.subr.mxu0 0.0
        %2145 = vmatpush1.msra.mxu0 0.0
        %2146 = vmatprep.subr.mxu0 0.0
        %2147 = vmatpush1.msra.mxu0 0.0
        %2148 = vmatprep.subr.mxu0 0.0
        %2149 = vmatpush1.msra.mxu0 0.0
        %2150 = vmatprep.subr.mxu0 0.0
        %2151 = vmatpush1.msra.mxu0 0.0
        %2152 = vmatprep.subr.mxu0 0.0
        %2153 = vmatpush1.msra.mxu0 0.0
        %2154 = vmatprep.subr.mxu0 0.0
        %2155 = vmatpush1.msra.mxu0 0.0
        %2156 = vmatprep.subr.mxu0 0.0
        %2157 = vmatpush1.msra.mxu0 0.0
        %2158 = vmatprep.subr.mxu0 0.0
        %2159 = vmatpush1.msra.mxu0 0.0
        %2160 = vmatprep.subr.mxu0 0.0
        %2161 = vmatpush1.msra.mxu0 0.0
        %2162 = vmatprep.subr.mxu0 0.0
        %2163 = vmatpush1.msra.mxu0 0.0
        %2164 = vmatprep.subr.mxu0 0.0
        %2165 = vmatpush1.msra.mxu0 0.0
        %2166 = vmatprep.subr.mxu0 0.0
        %2167 = vmatpush1.msra.mxu0 0.0
        %2168 = vmatprep.subr.mxu0 0.0
        %2169 = vmatpush1.msra.mxu0 0.0
        %2170 = vmatprep.subr.mxu0 0.0
        %2171 = vmatpush1.msra.mxu0 0.0
        %2172 = vmatprep.subr.mxu0 0.0
        %2173 = vmatpush1.msra.mxu0 0.0
        %2174 = vmatprep.mubr.f32.mxu0 0.0
        %2175 = vmatmul.mubr.f32.gmra.mrb[0].mxu0 %v2108
        %v2176 = vpop.f32.mrb[0].mxu0
        %v2177 = vadd.f32 0.0, %v2176
        %v2178 = vpop.f32.mrb[0].mxu0
        %2179 = vdwg.mxu0
        %2180 = vrot.lane.b32.xlu0 %v1742, 112
        %v2181 = vpop.permute.xlu0 %2180
        %2182 = vrot.lane.b32.xlu0 %v1829, 112
        %v2183 = vpop.permute.xlu0 %2182
        %2184 = vrot.lane.b32.xlu0 %v1834, 112
        %v2185 = vpop.permute.xlu0 %2184
        %v2186 = vsel %vm868, %v2181, 0
        %v2188 = vsel %vm868, %v2183, 0
        %v2190 = vsel %vm868, %v2185, 0
        %2192 = vmatprep.subr.mxu0 0.0
        %2193 = vmatpush1.xpose.msra.mxu0 %v2188
        %2194 = vmatprep.subr.mxu0 0.0
        %2195 = vmatpush1.xpose.msra.mxu0 %v2190
        %2196 = vmatprep.subr.mxu0 0.0
        %2197 = vmatpush1.xpose.msra.mxu0 0.0
        %2198 = vmatprep.subr.mxu0 0.0
        %2199 = vmatpush1.xpose.msra.mxu0 0.0
        %2200 = vmatprep.subr.mxu0 0.0
        %2201 = vmatpush1.xpose.msra.mxu0 0.0
        %2202 = vmatprep.subr.mxu0 0.0
        %2203 = vmatpush1.xpose.msra.mxu0 0.0
        %2204 = vmatprep.subr.mxu0 0.0
        %2205 = vmatpush1.xpose.msra.mxu0 0.0
        %2206 = vmatprep.subr.mxu0 0.0
        %2207 = vmatpush1.xpose.msra.mxu0 0.0
        %2208 = vmatprep.subr.mxu0 0.0
        %2209 = vmatpush1.xpose.msra.mxu0 0.0
        %2210 = vmatprep.subr.mxu0 0.0
        %2211 = vmatpush1.xpose.msra.mxu0 0.0
        %2212 = vmatprep.subr.mxu0 0.0
        %2213 = vmatpush1.xpose.msra.mxu0 0.0
        %2214 = vmatprep.subr.mxu0 0.0
        %2215 = vmatpush1.xpose.msra.mxu0 0.0
        %2216 = vmatprep.subr.mxu0 0.0
        %2217 = vmatpush1.xpose.msra.mxu0 0.0
        %2218 = vmatprep.subr.mxu0 0.0
        %2219 = vmatpush1.xpose.msra.mxu0 0.0
        %2220 = vmatprep.subr.mxu0 0.0
        %2221 = vmatpush1.xpose.msra.mxu0 0.0
        %2222 = vmatprep.subr.mxu0 0.0
        %2223 = vmatpush1.xpose.msra.mxu0 0.0
        %2224 = vmatprep.subr.mxu0 0.0
        %2225 = vmatpush1.xpose.msra.mxu0 0.0
        %2226 = vmatprep.subr.mxu0 0.0
        %2227 = vmatpush1.xpose.msra.mxu0 0.0
        %2228 = vmatprep.subr.mxu0 0.0
        %2229 = vmatpush1.xpose.msra.mxu0 0.0
        %2230 = vmatprep.subr.mxu0 0.0
        %2231 = vmatpush1.xpose.msra.mxu0 0.0
        %2232 = vmatprep.subr.mxu0 0.0
        %2233 = vmatpush1.xpose.msra.mxu0 0.0
        %2234 = vmatprep.subr.mxu0 0.0
        %2235 = vmatpush1.xpose.msra.mxu0 0.0
        %2236 = vmatprep.subr.mxu0 0.0
        %2237 = vmatpush1.xpose.msra.mxu0 0.0
        %2238 = vmatprep.subr.mxu0 0.0
        %2239 = vmatpush1.xpose.msra.mxu0 0.0
        %2240 = vmatprep.subr.mxu0 0.0
        %2241 = vmatpush1.xpose.msra.mxu0 0.0
        %2242 = vmatprep.subr.mxu0 0.0
        %2243 = vmatpush1.xpose.msra.mxu0 0.0
        %2244 = vmatprep.subr.mxu0 0.0
        %2245 = vmatpush1.xpose.msra.mxu0 0.0
        %2246 = vmatprep.subr.mxu0 0.0
        %2247 = vmatpush1.xpose.msra.mxu0 0.0
        %2248 = vmatprep.subr.mxu0 0.0
        %2249 = vmatpush1.xpose.msra.mxu0 0.0
        %2250 = vmatprep.subr.mxu0 0.0
        %2251 = vmatpush1.xpose.msra.mxu0 0.0
        %2252 = vmatprep.subr.mxu0 0.0
        %2253 = vmatpush1.xpose.msra.mxu0 0.0
        %2254 = vmatprep.subr.mxu0 0.0
        %2255 = vmatpush1.xpose.msra.mxu0 0.0
        %2256 = vmatprep.mubr.f32.mxu0 0.0
        %2257 = vmatmul.mubr.f32.gmra.mrb[0].mxu0 %v2186
        %v2258 = vpop.f32.mrb[0].mxu0
        %v2259 = vadd.f32 0.0, %v2258
        %v2260 = vpop.f32.mrb[0].mxu0
        %2261 = vdwg.mxu0
        %v2262 = vmul.f32 %v2259, 0.35355338
        %v2263 = vsel %vm1542, %v2262, -inf
        %2264 = vmax.xlane.f32.xlu0 %v2263
        %v2265 = vpop.xlane.xlu0 %2264
        %v2266 = vsub.f32 %v2262, %v2265
        %v2267 = vmul.f32 %v2266, 1.442695
        %v2268 = vpow.pop %v2267
        %v2269 = vsel %vm1542, %v2268, 0.0
        %2270 = vadd.xlane.f32.xlu0 %v2269
        %v2271 = vpop.xlane.xlu0 %2270
        %v2272 = vrcp.pop %v2271
        %v2273 = vmul.f32 %v2268, %v2272
        %2274 = vrot.lane.b32.xlu0 %v1829, 80
        %v2275 = vpop.permute.xlu0 %2274
        %2276 = vrot.lane.b32.xlu0 %v1834, 80
        %v2277 = vpop.permute.xlu0 %2276
        %v2281 = vsel %vm1542, %v2273, 0
        %2283 = vmatprep.subr.mxu0 0.0
        %2284 = vmatpush1.msra.mxu0 %v2275
        %2285 = vmatprep.subr.mxu0 0.0
        %2286 = vmatpush1.msra.mxu0 %v2277
        %2287 = vmatprep.subr.mxu0 0.0
        %2288 = vmatpush1.msra.mxu0 0.0
        %2289 = vmatprep.subr.mxu0 0.0
        %2290 = vmatpush1.msra.mxu0 0.0
        %2291 = vmatprep.subr.mxu0 0.0
        %2292 = vmatpush1.msra.mxu0 0.0
        %2293 = vmatprep.subr.mxu0 0.0
        %2294 = vmatpush1.msra.mxu0 0.0
        %2295 = vmatprep.subr.mxu0 0.0
        %2296 = vmatpush1.msra.mxu0 0.0
        %2297 = vmatprep.subr.mxu0 0.0
        %2298 = vmatpush1.msra.mxu0 0.0
        %2299 = vmatprep.subr.mxu0 0.0
        %2300 = vmatpush1.msra.mxu0 0.0
        %2301 = vmatprep.subr.mxu0 0.0
        %2302 = vmatpush1.msra.mxu0 0.0
        %2303 = vmatprep.subr.mxu0 0.0
        %2304 = vmatpush1.msra.mxu0 0.0
        %2305 = vmatprep.subr.mxu0 0.0
        %2306 = vmatpush1.msra.mxu0 0.0
        %2307 = vmatprep.subr.mxu0 0.0
        %2308 = vmatpush1.msra.mxu0 0.0
        %2309 = vmatprep.subr.mxu0 0.0
        %2310 = vmatpush1.msra.mxu0 0.0
        %2311 = vmatprep.subr.mxu0 0.0
        %2312 = vmatpush1.msra.mxu0 0.0
        %2313 = vmatprep.subr.mxu0 0.0
        %2314 = vmatpush1.msra.mxu0 0.0
        %2315 = vmatprep.subr.mxu0 0.0
        %2316 = vmatpush1.msra.mxu0 0.0
        %2317 = vmatprep.subr.mxu0 0.0
        %2318 = vmatpush1.msra.mxu0 0.0
        %2319 = vmatprep.subr.mxu0 0.0
        %2320 = vmatpush1.msra.mxu0 0.0
        %2321 = vmatprep.subr.mxu0 0.0
        %2322 = vmatpush1.msra.mxu0 0.0
        %2323 = vmatprep.subr.mxu0 0.0
        %2324 = vmatpush1.msra.mxu0 0.0
        %2325 = vmatprep.subr.mxu0 0.0
        %2326 = vmatpush1.msra.mxu0 0.0
        %2327 = vmatprep.subr.mxu0 0.0
        %2328 = vmatpush1.msra.mxu0 0.0
        %2329 = vmatprep.subr.mxu0 0.0
        %2330 = vmatpush1.msra.mxu0 0.0
        %2331 = vmatprep.subr.mxu0 0.0
        %2332 = vmatpush1.msra.mxu0 0.0
        %2333 = vmatprep.subr.mxu0 0.0
        %2334 = vmatpush1.msra.mxu0 0.0
        %2335 = vmatprep.subr.mxu0 0.0
        %2336 = vmatpush1.msra.mxu0 0.0
        %2337 = vmatprep.subr.mxu0 0.0
        %2338 = vmatpush1.msra.mxu0 0.0
        %2339 = vmatprep.subr.mxu0 0.0
        %2340 = vmatpush1.msra.mxu0 0.0
        %2341 = vmatprep.subr.mxu0 0.0
        %2342 = vmatpush1.msra.mxu0 0.0
        %2343 = vmatprep.subr.mxu0 0.0
        %2344 = vmatpush1.msra.mxu0 0.0
        %2345 = vmatprep.subr.mxu0 0.0
        %2346 = vmatpush1.msra.mxu0 0.0
        %2347 = vmatprep.mubr.f32.mxu0 0.0
        %2348 = vmatmul.mubr.f32.gmra.mrb[0].mxu0 %v2281
        %v2349 = vpop.f32.mrb[0].mxu0
        %v2350 = vadd.f32 0.0, %v2349
        %v2351 = vpop.f32.mrb[0].mxu0
        %2352 = vdwg.mxu0
        %2353 = vrot.lane.b32.xlu0 %v1742, 104
        %v2354 = vpop.permute.xlu0 %2353
        %2355 = vrot.lane.b32.xlu0 %v1829, 104
        %v2356 = vpop.permute.xlu0 %2355
        %2357 = vrot.lane.b32.xlu0 %v1834, 104
        %v2358 = vpop.permute.xlu0 %2357
        %v2359 = vsel %vm868, %v2354, 0
        %v2361 = vsel %vm868, %v2356, 0
        %v2363 = vsel %vm868, %v2358, 0
        %2365 = vmatprep.subr.mxu0 0.0
        %2366 = vmatpush1.xpose.msra.mxu0 %v2361
        %2367 = vmatprep.subr.mxu0 0.0
        %2368 = vmatpush1.xpose.msra.mxu0 %v2363
        %2369 = vmatprep.subr.mxu0 0.0
        %2370 = vmatpush1.xpose.msra.mxu0 0.0
        %2371 = vmatprep.subr.mxu0 0.0
        %2372 = vmatpush1.xpose.msra.mxu0 0.0
        %2373 = vmatprep.subr.mxu0 0.0
        %2374 = vmatpush1.xpose.msra.mxu0 0.0
        %2375 = vmatprep.subr.mxu0 0.0
        %2376 = vmatpush1.xpose.msra.mxu0 0.0
        %2377 = vmatprep.subr.mxu0 0.0
        %2378 = vmatpush1.xpose.msra.mxu0 0.0
        %2379 = vmatprep.subr.mxu0 0.0
        %2380 = vmatpush1.xpose.msra.mxu0 0.0
        %2381 = vmatprep.subr.mxu0 0.0
        %2382 = vmatpush1.xpose.msra.mxu0 0.0
        %2383 = vmatprep.subr.mxu0 0.0
        %2384 = vmatpush1.xpose.msra.mxu0 0.0
        %2385 = vmatprep.subr.mxu0 0.0
        %2386 = vmatpush1.xpose.msra.mxu0 0.0
        %2387 = vmatprep.subr.mxu0 0.0
        %2388 = vmatpush1.xpose.msra.mxu0 0.0
        %2389 = vmatprep.subr.mxu0 0.0
        %2390 = vmatpush1.xpose.msra.mxu0 0.0
        %2391 = vmatprep.subr.mxu0 0.0
        %2392 = vmatpush1.xpose.msra.mxu0 0.0
        %2393 = vmatprep.subr.mxu0 0.0
        %2394 = vmatpush1.xpose.msra.mxu0 0.0
        %2395 = vmatprep.subr.mxu0 0.0
        %2396 = vmatpush1.xpose.msra.mxu0 0.0
        %2397 = vmatprep.subr.mxu0 0.0
        %2398 = vmatpush1.xpose.msra.mxu0 0.0
        %2399 = vmatprep.subr.mxu0 0.0
        %2400 = vmatpush1.xpose.msra.mxu0 0.0
        %2401 = vmatprep.subr.mxu0 0.0
        %2402 = vmatpush1.xpose.msra.mxu0 0.0
        %2403 = vmatprep.subr.mxu0 0.0
        %2404 = vmatpush1.xpose.msra.mxu0 0.0
        %2405 = vmatprep.subr.mxu0 0.0
        %2406 = vmatpush1.xpose.msra.mxu0 0.0
        %2407 = vmatprep.subr.mxu0 0.0
        %2408 = vmatpush1.xpose.msra.mxu0 0.0
        %2409 = vmatprep.subr.mxu0 0.0
        %2410 = vmatpush1.xpose.msra.mxu0 0.0
        %2411 = vmatprep.subr.mxu0 0.0
        %2412 = vmatpush1.xpose.msra.mxu0 0.0
        %2413 = vmatprep.subr.mxu0 0.0
        %2414 = vmatpush1.xpose.msra.mxu0 0.0
        %2415 = vmatprep.subr.mxu0 0.0
        %2416 = vmatpush1.xpose.msra.mxu0 0.0
        %2417 = vmatprep.subr.mxu0 0.0
        %2418 = vmatpush1.xpose.msra.mxu0 0.0
        %2419 = vmatprep.subr.mxu0 0.0
        %2420 = vmatpush1.xpose.msra.mxu0 0.0
        %2421 = vmatprep.subr.mxu0 0.0
        %2422 = vmatpush1.xpose.msra.mxu0 0.0
        %2423 = vmatprep.subr.mxu0 0.0
        %2424 = vmatpush1.xpose.msra.mxu0 0.0
        %2425 = vmatprep.subr.mxu0 0.0
        %2426 = vmatpush1.xpose.msra.mxu0 0.0
        %2427 = vmatprep.subr.mxu0 0.0
        %2428 = vmatpush1.xpose.msra.mxu0 0.0
        %2429 = vmatprep.mubr.f32.mxu0 0.0
        %2430 = vmatmul.mubr.f32.gmra.mrb[0].mxu0 %v2359
        %v2431 = vpop.f32.mrb[0].mxu0
        %v2432 = vadd.f32 0.0, %v2431
        %v2433 = vpop.f32.mrb[0].mxu0
        %2434 = vdwg.mxu0
        %v2435 = vmul.f32 %v2432, 0.35355338
        %v2436 = vsel %vm1542, %v2435, -inf
        %2437 = vmax.xlane.f32.xlu0 %v2436
        %v2438 = vpop.xlane.xlu0 %2437
        %v2439 = vsub.f32 %v2435, %v2438
        %v2440 = vmul.f32 %v2439, 1.442695
        %v2441 = vpow.pop %v2440
        %v2442 = vsel %vm1542, %v2441, 0.0
        %2443 = vadd.xlane.f32.xlu0 %v2442
        %v2444 = vpop.xlane.xlu0 %2443
        %v2445 = vrcp.pop %v2444
        %v2446 = vmul.f32 %v2441, %v2445
        %2447 = vrot.lane.b32.xlu0 %v1829, 72
        %v2448 = vpop.permute.xlu0 %2447
        %2449 = vrot.lane.b32.xlu0 %v1834, 72
        %v2450 = vpop.permute.xlu0 %2449
        %v2454 = vsel %vm1542, %v2446, 0
        %2456 = vmatprep.subr.mxu0 0.0
        %2457 = vmatpush1.msra.mxu0 %v2448
        %2458 = vmatprep.subr.mxu0 0.0
        %2459 = vmatpush1.msra.mxu0 %v2450
        %2460 = vmatprep.subr.mxu0 0.0
        %2461 = vmatpush1.msra.mxu0 0.0
        %2462 = vmatprep.subr.mxu0 0.0
        %2463 = vmatpush1.msra.mxu0 0.0
        %2464 = vmatprep.subr.mxu0 0.0
        %2465 = vmatpush1.msra.mxu0 0.0
        %2466 = vmatprep.subr.mxu0 0.0
        %2467 = vmatpush1.msra.mxu0 0.0
        %2468 = vmatprep.subr.mxu0 0.0
        %2469 = vmatpush1.msra.mxu0 0.0
        %2470 = vmatprep.subr.mxu0 0.0
        %2471 = vmatpush1.msra.mxu0 0.0
        %2472 = vmatprep.subr.mxu0 0.0
        %2473 = vmatpush1.msra.mxu0 0.0
        %2474 = vmatprep.subr.mxu0 0.0
        %2475 = vmatpush1.msra.mxu0 0.0
        %2476 = vmatprep.subr.mxu0 0.0
        %2477 = vmatpush1.msra.mxu0 0.0
        %2478 = vmatprep.subr.mxu0 0.0
        %2479 = vmatpush1.msra.mxu0 0.0
        %2480 = vmatprep.subr.mxu0 0.0
        %2481 = vmatpush1.msra.mxu0 0.0
        %2482 = vmatprep.subr.mxu0 0.0
        %2483 = vmatpush1.msra.mxu0 0.0
        %2484 = vmatprep.subr.mxu0 0.0
        %2485 = vmatpush1.msra.mxu0 0.0
        %2486 = vmatprep.subr.mxu0 0.0
        %2487 = vmatpush1.msra.mxu0 0.0
        %2488 = vmatprep.subr.mxu0 0.0
        %2489 = vmatpush1.msra.mxu0 0.0
        %2490 = vmatprep.subr.mxu0 0.0
        %2491 = vmatpush1.msra.mxu0 0.0
        %2492 = vmatprep.subr.mxu0 0.0
        %2493 = vmatpush1.msra.mxu0 0.0
        %2494 = vmatprep.subr.mxu0 0.0
        %2495 = vmatpush1.msra.mxu0 0.0
        %2496 = vmatprep.subr.mxu0 0.0
        %2497 = vmatpush1.msra.mxu0 0.0
        %2498 = vmatprep.subr.mxu0 0.0
        %2499 = vmatpush1.msra.mxu0 0.0
        %2500 = vmatprep.subr.mxu0 0.0
        %2501 = vmatpush1.msra.mxu0 0.0
        %2502 = vmatprep.subr.mxu0 0.0
        %2503 = vmatpush1.msra.mxu0 0.0
        %2504 = vmatprep.subr.mxu0 0.0
        %2505 = vmatpush1.msra.mxu0 0.0
        %2506 = vmatprep.subr.mxu0 0.0
        %2507 = vmatpush1.msra.mxu0 0.0
        %2508 = vmatprep.subr.mxu0 0.0
        %2509 = vmatpush1.msra.mxu0 0.0
        %2510 = vmatprep.subr.mxu0 0.0
        %2511 = vmatpush1.msra.mxu0 0.0
        %2512 = vmatprep.subr.mxu0 0.0
        %2513 = vmatpush1.msra.mxu0 0.0
        %2514 = vmatprep.subr.mxu0 0.0
        %2515 = vmatpush1.msra.mxu0 0.0
        %2516 = vmatprep.subr.mxu0 0.0
        %2517 = vmatpush1.msra.mxu0 0.0
        %2518 = vmatprep.subr.mxu0 0.0
        %2519 = vmatpush1.msra.mxu0 0.0
        %2520 = vmatprep.mubr.f32.mxu0 0.0
        %2521 = vmatmul.mubr.f32.gmra.mrb[0].mxu0 %v2454
        %v2522 = vpop.f32.mrb[0].mxu0
        %v2523 = vadd.f32 0.0, %v2522
        %v2524 = vpop.f32.mrb[0].mxu0
        %2525 = vdwg.mxu0
        %2527 = vrot.lane.b32.xlu0 %v2177, 8
        %v2528 = vpop.permute.xlu0 %2527
        %2531 = vrot.lane.b32.xlu0 %v2350, 16
        %v2532 = vpop.permute.xlu0 %2531
        %2535 = vrot.lane.b32.xlu0 %v2523, 24
        %v2536 = vpop.permute.xlu0 %2535
        %v2538 = vsel %vm868, %v2004, %v2528
        %v2539 = vsel %vm1542, %v2538, %v2532
        %v2540 = vsel %vm1544, %v2539, %v2536
        %v2541 = vld [vmem:[#allocation8] sm:$0xff]
        %v2542 = vld [vmem:[#allocation8 + $0x8] sm:$0xff]
        %v2543 = vld [vmem:[#allocation8 + $0x10] sm:$0xff]
        %v2544 = vld [vmem:[#allocation8 + $0x18] sm:$0xff]
        %v2545 = vld [vmem:[%s11] sm:$0x1]
        %v2547 = vlaneseq
        %v2548 = vshrl.u32 %v2547, 7
        %v2549 = vsub.s32 0, %v2548
        %v2550 = vrot.slane %v2545, %v2549
        %v2553 = vsel %vm791, %v2540, 0
        %2555 = vmatprep.subr.mxu0 0.0
        %2556 = vmatpush1.msra.mxu0 %v2541
        %2557 = vmatprep.subr.mxu0 0.0
        %2558 = vmatpush1.msra.mxu0 %v2542
        %2559 = vmatprep.subr.mxu0 0.0
        %2560 = vmatpush1.msra.mxu0 %v2543
        %2561 = vmatprep.subr.mxu0 0.0
        %2562 = vmatpush1.msra.mxu0 %v2544
        %2563 = vmatprep.subr.mxu0 0.0
        %2564 = vmatpush1.msra.mxu0 0.0
        %2565 = vmatprep.subr.mxu0 0.0
        %2566 = vmatpush1.msra.mxu0 0.0
        %2567 = vmatprep.subr.mxu0 0.0
        %2568 = vmatpush1.msra.mxu0 0.0
        %2569 = vmatprep.subr.mxu0 0.0
        %2570 = vmatpush1.msra.mxu0 0.0
        %2571 = vmatprep.subr.mxu0 0.0
        %2572 = vmatpush1.msra.mxu0 0.0
        %2573 = vmatprep.subr.mxu0 0.0
        %2574 = vmatpush1.msra.mxu0 0.0
        %2575 = vmatprep.subr.mxu0 0.0
        %2576 = vmatpush1.msra.mxu0 0.0
        %2577 = vmatprep.subr.mxu0 0.0
        %2578 = vmatpush1.msra.mxu0 0.0
        %2579 = vmatprep.subr.mxu0 0.0
        %2580 = vmatpush1.msra.mxu0 0.0
        %2581 = vmatprep.subr.mxu0 0.0
        %2582 = vmatpush1.msra.mxu0 0.0
        %2583 = vmatprep.subr.mxu0 0.0
        %2584 = vmatpush1.msra.mxu0 0.0
        %2585 = vmatprep.subr.mxu0 0.0
        %2586 = vmatpush1.msra.mxu0 0.0
        %2587 = vmatprep.subr.mxu0 0.0
        %2588 = vmatpush1.msra.mxu0 0.0
        %2589 = vmatprep.subr.mxu0 0.0
        %2590 = vmatpush1.msra.mxu0 0.0
        %2591 = vmatprep.subr.mxu0 0.0
        %2592 = vmatpush1.msra.mxu0 0.0
        %2593 = vmatprep.subr.mxu0 0.0
        %2594 = vmatpush1.msra.mxu0 0.0
        %2595 = vmatprep.subr.mxu0 0.0
        %2596 = vmatpush1.msra.mxu0 0.0
        %2597 = vmatprep.subr.mxu0 0.0
        %2598 = vmatpush1.msra.mxu0 0.0
        %2599 = vmatprep.subr.mxu0 0.0
        %2600 = vmatpush1.msra.mxu0 0.0
        %2601 = vmatprep.subr.mxu0 0.0
        %2602 = vmatpush1.msra.mxu0 0.0
        %2603 = vmatprep.subr.mxu0 0.0
        %2604 = vmatpush1.msra.mxu0 0.0
        %2605 = vmatprep.subr.mxu0 0.0
        %2606 = vmatpush1.msra.mxu0 0.0
        %2607 = vmatprep.subr.mxu0 0.0
        %2608 = vmatpush1.msra.mxu0 0.0
        %2609 = vmatprep.subr.mxu0 0.0
        %2610 = vmatpush1.msra.mxu0 0.0
        %2611 = vmatprep.subr.mxu0 0.0
        %2612 = vmatpush1.msra.mxu0 0.0
        %2613 = vmatprep.subr.mxu0 0.0
        %2614 = vmatpush1.msra.mxu0 0.0
        %2615 = vmatprep.subr.mxu0 0.0
        %2616 = vmatpush1.msra.mxu0 0.0
        %2617 = vmatprep.subr.mxu0 0.0
        %2618 = vmatpush1.msra.mxu0 0.0
        %2619 = vmatprep.mubr.f32.mxu0 0.0
        %2620 = vmatmul.mubr.f32.gmra.mrb[0].mxu0 %v2553
        %v2621 = vpop.f32.mrb[0].mxu0
        %v2622 = vadd.f32 %v2550, %v2621
        %v2623 = vpop.f32.mrb[0].mxu0
        %2624 = vdwg.mxu0
        %v2625 = vld [vmem:[%s18] sm:$0x1]
        %v2626 = vld [vmem:[%s19] sm:$0x1]
        %v2627 = vadd.f32 %v2622, %v1660
        %v2628 = vsel %vm791, %v2627, 0.0
        %2629 = vadd.xlane.f32.xlu0 %v2628
        %v2630 = vpop.xlane.xlu0 %2629
        %v2631 = vmul.f32 %v2630, %v1636
        %v2632 = vsub.f32 %v2627, %v2631
        %v2633 = vmul.f32 %v2632, %v2632
        %v2634 = vsel %vm791, %v2633, 0.0
        %2635 = vadd.xlane.f32.xlu0 %v2634
        %v2636 = vpop.xlane.xlu0 %2635
        %v2637 = vmul.f32 %v2636, %v1636
        %v2638 = vadd.f32 %v2637, 1e-12
        %v2639 = vrsqrt.pop %v2638
        %v2640 = vmul.f32 %v2632, %v2639
        %v2642 = vlaneseq
        %v2643 = vshrl.u32 %v2642, 7
        %v2644 = vsub.s32 0, %v2643
        %v2645 = vrot.slane %v2625, %v2644
        %v2647 = vmul.f32 %v2645, %v2640
        %v2649 = vlaneseq
        %v2650 = vshrl.u32 %v2649, 7
        %v2651 = vsub.s32 0, %v2650
        %v2652 = vrot.slane %v2626, %v2651
        %v2654 = vadd.f32 %v2647, %v2652
        %v2655 = vld [vmem:[#allocation10] sm:$0xff]
        %v2656 = vld [vmem:[#allocation10 + $0x8] sm:$0xff]
        %v2657 = vld [vmem:[#allocation10 + $0x10] sm:$0xff]
        %v2658 = vld [vmem:[#allocation10 + $0x18] sm:$0xff]
        %v2659 = vld [vmem:[%s13] sm:$0x1]
        %v2661 = vlaneseq
        %v2662 = vshrl.u32 %v2661, 7
        %v2663 = vsub.s32 0, %v2662
        %v2664 = vrot.slane %v2659, %v2663
        %v2667 = vsel %vm791, %v2654, 0
        %2669 = vmatprep.subr.mxu0 0.0
        %2670 = vmatpush1.msra.mxu0 %v2655
        %2671 = vmatprep.subr.mxu0 0.0
        %2672 = vmatpush1.msra.mxu0 %v2656
        %2673 = vmatprep.subr.mxu0 0.0
        %2674 = vmatpush1.msra.mxu0 %v2657
        %2675 = vmatprep.subr.mxu0 0.0
        %2676 = vmatpush1.msra.mxu0 %v2658
        %2677 = vmatprep.subr.mxu0 0.0
        %2678 = vmatpush1.msra.mxu0 0.0
        %2679 = vmatprep.subr.mxu0 0.0
        %2680 = vmatpush1.msra.mxu0 0.0
        %2681 = vmatprep.subr.mxu0 0.0
        %2682 = vmatpush1.msra.mxu0 0.0
        %2683 = vmatprep.subr.mxu0 0.0
        %2684 = vmatpush1.msra.mxu0 0.0
        %2685 = vmatprep.subr.mxu0 0.0
        %2686 = vmatpush1.msra.mxu0 0.0
        %2687 = vmatprep.subr.mxu0 0.0
        %2688 = vmatpush1.msra.mxu0 0.0
        %2689 = vmatprep.subr.mxu0 0.0
        %2690 = vmatpush1.msra.mxu0 0.0
        %2691 = vmatprep.subr.mxu0 0.0
        %2692 = vmatpush1.msra.mxu0 0.0
        %2693 = vmatprep.subr.mxu0 0.0
        %2694 = vmatpush1.msra.mxu0 0.0
        %2695 = vmatprep.subr.mxu0 0.0
        %2696 = vmatpush1.msra.mxu0 0.0
        %2697 = vmatprep.subr.mxu0 0.0
        %2698 = vmatpush1.msra.mxu0 0.0
        %2699 = vmatprep.subr.mxu0 0.0
        %2700 = vmatpush1.msra.mxu0 0.0
        %2701 = vmatprep.subr.mxu0 0.0
        %2702 = vmatpush1.msra.mxu0 0.0
        %2703 = vmatprep.subr.mxu0 0.0
        %2704 = vmatpush1.msra.mxu0 0.0
        %2705 = vmatprep.subr.mxu0 0.0
        %2706 = vmatpush1.msra.mxu0 0.0
        %2707 = vmatprep.subr.mxu0 0.0
        %2708 = vmatpush1.msra.mxu0 0.0
        %2709 = vmatprep.subr.mxu0 0.0
        %2710 = vmatpush1.msra.mxu0 0.0
        %2711 = vmatprep.subr.mxu0 0.0
        %2712 = vmatpush1.msra.mxu0 0.0
        %2713 = vmatprep.subr.mxu0 0.0
        %2714 = vmatpush1.msra.mxu0 0.0
        %2715 = vmatprep.subr.mxu0 0.0
        %2716 = vmatpush1.msra.mxu0 0.0
        %2717 = vmatprep.subr.mxu0 0.0
        %2718 = vmatpush1.msra.mxu0 0.0
        %2719 = vmatprep.subr.mxu0 0.0
        %2720 = vmatpush1.msra.mxu0 0.0
        %2721 = vmatprep.subr.mxu0 0.0
        %2722 = vmatpush1.msra.mxu0 0.0
        %2723 = vmatprep.subr.mxu0 0.0
        %2724 = vmatpush1.msra.mxu0 0.0
        %2725 = vmatprep.subr.mxu0 0.0
        %2726 = vmatpush1.msra.mxu0 0.0
        %2727 = vmatprep.subr.mxu0 0.0
        %2728 = vmatpush1.msra.mxu0 0.0
        %2729 = vmatprep.subr.mxu0 0.0
        %2730 = vmatpush1.msra.mxu0 0.0
        %2731 = vmatprep.subr.mxu0 0.0
        %2732 = vmatpush1.msra.mxu0 0.0
        %2733 = vmatprep.mubr.f32.mxu0 0.0
        %2734 = vmatmul.mubr.f32.gmra.mrb[0].mxu0 %v2667
        %v2735 = vpop.f32.mrb[0].mxu0
        %v2736 = vadd.f32 %v2664, %v2735
        %v2737 = vpop.f32.mrb[0].mxu0
        %2738 = vdwg.mxu0
        %v2739 = vmax.f32 %v2736, 0.0
        %v2740 = vld [vmem:[%s14] sm:$0xff]
        %v2741 = vld [vmem:[%s14 + $0x8] sm:$0xff]
        %v2742 = vld [vmem:[%s14 + $0x10] sm:$0xff]
        %v2743 = vld [vmem:[%s14 + $0x18] sm:$0xff]
        %v2744 = vld [vmem:[%s14 + $0x20] sm:$0xff]
        %v2745 = vld [vmem:[%s14 + $0x28] sm:$0xff]
        %v2746 = vld [vmem:[%s14 + $0x30] sm:$0xff]
        %v2747 = vld [vmem:[%s14 + $0x38] sm:$0xff]
        %v2748 = vld [vmem:[%s15] sm:$0x1]
        %v2750 = vlaneseq
        %v2751 = vshrl.u32 %v2750, 7
        %v2752 = vsub.s32 0, %v2751
        %v2753 = vrot.slane %v2748, %v2752
        %vm2755 = vcmask 523264
        %v2757 = vsel %vm2755, %v2739, 0
        %2759 = vmatprep.subr.mxu0 0.0
        %2760 = vmatpush1.msra.mxu0 %v2740
        %2761 = vmatprep.subr.mxu0 0.0
        %2762 = vmatpush1.msra.mxu0 %v2741
        %2763 = vmatprep.subr.mxu0 0.0
        %2764 = vmatpush1.msra.mxu0 %v2742
        %2765 = vmatprep.subr.mxu0 0.0
        %2766 = vmatpush1.msra.mxu0 %v2743
        %2767 = vmatprep.subr.mxu0 0.0
        %2768 = vmatpush1.msra.mxu0 %v2744
        %2769 = vmatprep.subr.mxu0 0.0
        %2770 = vmatpush1.msra.mxu0 %v2745
        %2771 = vmatprep.subr.mxu0 0.0
        %2772 = vmatpush1.msra.mxu0 %v2746
        %2773 = vmatprep.subr.mxu0 0.0
        %2774 = vmatpush1.msra.mxu0 %v2747
        %2775 = vmatprep.subr.mxu0 0.0
        %2776 = vmatpush1.msra.mxu0 0.0
        %2777 = vmatprep.subr.mxu0 0.0
        %2778 = vmatpush1.msra.mxu0 0.0
        %2779 = vmatprep.subr.mxu0 0.0
        %2780 = vmatpush1.msra.mxu0 0.0
        %2781 = vmatprep.subr.mxu0 0.0
        %2782 = vmatpush1.msra.mxu0 0.0
        %2783 = vmatprep.subr.mxu0 0.0
        %2784 = vmatpush1.msra.mxu0 0.0
        %2785 = vmatprep.subr.mxu0 0.0
        %2786 = vmatpush1.msra.mxu0 0.0
        %2787 = vmatprep.subr.mxu0 0.0
        %2788 = vmatpush1.msra.mxu0 0.0
        %2789 = vmatprep.subr.mxu0 0.0
        %2790 = vmatpush1.msra.mxu0 0.0
        %2791 = vmatprep.subr.mxu0 0.0
        %2792 = vmatpush1.msra.mxu0 0.0
        %2793 = vmatprep.subr.mxu0 0.0
        %2794 = vmatpush1.msra.mxu0 0.0
        %2795 = vmatprep.subr.mxu0 0.0
        %2796 = vmatpush1.msra.mxu0 0.0
        %2797 = vmatprep.subr.mxu0 0.0
        %2798 = vmatpush1.msra.mxu0 0.0
        %2799 = vmatprep.subr.mxu0 0.0
        %2800 = vmatpush1.msra.mxu0 0.0
        %2801 = vmatprep.subr.mxu0 0.0
        %2802 = vmatpush1.msra.mxu0 0.0
        %2803 = vmatprep.subr.mxu0 0.0
        %2804 = vmatpush1.msra.mxu0 0.0
        %2805 = vmatprep.subr.mxu0 0.0
        %2806 = vmatpush1.msra.mxu0 0.0
        %2807 = vmatprep.subr.mxu0 0.0
        %2808 = vmatpush1.msra.mxu0 0.0
        %2809 = vmatprep.subr.mxu0 0.0
        %2810 = vmatpush1.msra.mxu0 0.0
        %2811 = vmatprep.subr.mxu0 0.0
        %2812 = vmatpush1.msra.mxu0 0.0
        %2813 = vmatprep.subr.mxu0 0.0
        %2814 = vmatpush1.msra.mxu0 0.0
        %2815 = vmatprep.subr.mxu0 0.0
        %2816 = vmatpush1.msra.mxu0 0.0
        %2817 = vmatprep.subr.mxu0 0.0
        %2818 = vmatpush1.msra.mxu0 0.0
        %2819 = vmatprep.subr.mxu0 0.0
        %2820 = vmatpush1.msra.mxu0 0.0
        %2821 = vmatprep.subr.mxu0 0.0
        %2822 = vmatpush1.msra.mxu0 0.0
        %2823 = vmatprep.mubr.f32.mxu0 0.0
        %2824 = vmatmul.mubr.f32.gmra.mrb[0].mxu0 %v2757
        %v2825 = vpop.f32.mrb[0].mxu0
        %v2826 = vadd.f32 %v2753, %v2825
        %v2827 = vpop.f32.mrb[0].mxu0
        %2828 = vdwg.mxu0
        %v2829 = vld [vmem:[%s20] sm:$0x1]
        %v2830 = vld [vmem:[%s21] sm:$0x1]
        %v2831 = vadd.f32 %v2826, %v2654
        %v2832 = vsel %vm791, %v2831, 0.0
        %2833 = vadd.xlane.f32.xlu0 %v2832
        %v2834 = vpop.xlane.xlu0 %2833
        %v2835 = vmul.f32 %v2834, %v1636
        %v2836 = vsub.f32 %v2831, %v2835
        %v2837 = vmul.f32 %v2836, %v2836
        %v2838 = vsel %vm791, %v2837, 0.0
        %2839 = vadd.xlane.f32.xlu0 %v2838
        %v2840 = vpop.xlane.xlu0 %2839
        %v2841 = vmul.f32 %v2840, %v1636
        %v2842 = vadd.f32 %v2841, 1e-12
        %v2843 = vrsqrt.pop %v2842
        %v2844 = vmul.f32 %v2836, %v2843
        %v2846 = vlaneseq
        %v2847 = vshrl.u32 %v2846, 7
        %v2848 = vsub.s32 0, %v2847
        %v2849 = vrot.slane %v2829, %v2848
        %v2851 = vmul.f32 %v2849, %v2844
        %v2853 = vlaneseq
        %v2854 = vshrl.u32 %v2853, 7
        %v2855 = vsub.s32 0, %v2854
        %v2856 = vrot.slane %v2830, %v2855
        %v2858 = vadd.f32 %v2851, %v2856
        %2859 = vst.msk [vmem:[%s771] sm:$0xff] %vm791, %v2858
        %s2860 = sand.u32 %s521, 1
        %s2861 = scalar_lea.sflag [#allocation4], %s2860
        %s2862 = sand.u32 %s521, 1
        %s2863 = smul.addr %s2862, 8
        %s2864 = scalar_lea.vmem [#allocation11], %s2863
        // Predicated region
        $region129: #{decoder_layer.1} parent=107 // pred_check
          %p2865 = pneg %p531
        $region130: #{decoder_layer.1} parent=107 // pred_check_branch
          %2867 = sbr.rel (%p2865) target = $region132
        $region131: #{decoder_layer.1} parent=107 // pred_region
          %s2869 = ssub.s32 128, 128
          %2870 = vsyncadd %s2861, %s2869
          %s2871 = smul.addr %s41, 128
          %s2872 = scalar_lea.hbm %s22, %s2871
          %s2874 = sshll.u32 %s2864, 4
          %s2875 = int_to_ptr.vmem [resolvable:$true] %s2874
          %2877 = dma.vmem_to_hbm [thread:$0]  %s2875, 128, %s2872, %s2861
        $region132: #{decoder_layer.1} parent=107 // pred_fallthru
          _
      $region108: #{decoder_layer.1} parent=5 // pred_fallthru
        _
      %p2878 = scmp.le.s32.totalorder 2, %s36
      // Predicated region
      $region133: #{decoder_layer.1} parent=5 // pred_check
        %p2879 = pneg %p2878
      $region134: #{decoder_layer.1} parent=5 // pred_check_branch
        %2881 = sbr.rel (%p2879) target = $region136
      $region135: #{decoder_layer.1} parent=5 // pred_region
        %s2882 = ssub.s32 %s36, 2
        // Predicated region
        $region137: #{decoder_layer.1} parent=135 // pred_check
          %p2883 = pneg %p537
        $region138: #{decoder_layer.1} parent=135 // pred_check_branch
          %2885 = sbr.rel (%p2883) target = $region140
        $region139: #{decoder_layer.1} parent=135 // pred_region
          %s2886 = sand.u32 %s522, 1
          %s2887 = scalar_lea.sflag [#allocation4], %s2886
          %s2888 = sand.u32 %s522, 1
          %s2889 = smul.addr %s2888, 8
          %s2890 = scalar_lea.vmem [#allocation11], %s2889
          %2891 = dma.done %s2887, 128
        $region140: #{decoder_layer.1} parent=135 // pred_fallthru
          _
      $region136: #{decoder_layer.1} parent=5 // pred_fallthru
        _
    $region6: #{decoder_layer.1} parent=1 // loop_footer
      %s40 = sadd.s32 1, %s36
    $region7: #{decoder_layer.1} parent=1 // loop_footer_branch
      %35 = sbr.rel target = $region3
    $region8: #{decoder_layer.1} parent=1 // loop_exit
      _
    %2892 = vsyncpa [#allocation3], 1
    %s2893 = scalar_lea.sflag [#allocation3], 1
    %2894 = vsyncpa %s2893, 1
    %2895 = vsyncpa [#allocation6], 1
    %2896 = vsyncpa [#allocation9], 1
    %2897 = vsyncpa [#allocation4], 1
    %s2898 = scalar_lea.sflag [#allocation4], 1
    %2899 = vsyncpa %s2898, 1

</llo_original>
